<compile_context>
chip_gen: v7x
topology: tpu7x:2x2x1
jax: 0.10.0
libtpu: 0.0.40
codegen_flags: <defaults>
</compile_context>

<pallas_src>
import jax
import jax.numpy as jnp
from jax.experimental import pallas as pl
from jax.experimental.pallas import tpu as pltpu


def _finetune_kernel(x_ref, wp_ref, bp_ref,
                     w1_ref, b1_ref,
                     w2_ref, b2_ref,
                     w3_ref, b3_ref,
                     fcfeat_ref, y_ref):
    # x_ref: [TB, C, HW] f32 — spatial on lanes (lane-dense), channels on sublanes.
    # Spatial pooling stays in f32; the 1/HW scale is folded into wp in the wrapper.
    pooled = jnp.sum(x_ref[...], axis=-1)                              # [TB, C] f32

    # ---- stand-in conv_features: projection of pooled channels to 2048 ----
    f = jnp.dot(pooled.astype(jnp.bfloat16), wp_ref[...],
                preferred_element_type=jnp.float32) + bp_ref[...]      # [TB, 2048]

    # ---- fc_features: Linear(2048,512) -> ReLU -> Dropout(id) -> Linear(512,latent) -> ReLU
    h1 = jnp.dot(f.astype(jnp.bfloat16), w1_ref[...],
                 preferred_element_type=jnp.float32) + b1_ref[...]     # [TB, 512]
    h1 = jnp.maximum(h1, 0.0)
    fc_feat = jnp.dot(h1.astype(jnp.bfloat16), w2_ref[...],
                      preferred_element_type=jnp.float32) + b2_ref[...]  # [TB, latent_pad]
    fc_feat = jnp.maximum(fc_feat, 0.0)

    # ---- classifier: Dropout(id) -> Linear(latent, num_classes) ----
    y = jnp.dot(fc_feat.astype(jnp.bfloat16), w3_ref[...],
                preferred_element_type=jnp.float32) + b3_ref[...]      # [TB, classes_pad]

    fcfeat_ref[...] = fc_feat
    y_ref[...] = y


def _round_up(v, m):
    return ((v + m - 1) // m) * m


def _usable_vmem_bytes():
    try:
        cap = int(pltpu.get_tpu_info().vmem_capacity_bytes)
    except Exception:
        cap = 64 << 20   # conservative v7x-sized fallback
    return max((cap * 3) // 4, 32 << 20)


def finetune_forward(x_nchw, params):
    """x_nchw: [B, C, H, W] float32. Returns (fc_feat [B, latent], y [B, num_classes])."""
    B, C, H, W = x_nchw.shape
    HW = H * W

    wp, bp, w1, b1, w2, b2, w3, b3 = params
    latent_dim = w2.shape[1]
    num_classes = w3.shape[1]

    latent_pad = _round_up(latent_dim, 128)
    classes_pad = _round_up(num_classes, 128)

    # Tiling-padded per-element footprints (sublanes -> 8, lanes -> 128).
    c_sub = _round_up(C, 8)
    hw_lane = _round_up(HW, 128)

    def x_tile_bytes(tb):
        return tb * c_sub * hw_lane * 4        # f32 x tile as laid out in VMEM

    # Batch tile: up to 256 rows (fills the 256-deep MXU M on v6e/v7x), at least
    # 8 sublane rows; shrink while a single x tile would exceed ~8 MiB so two
    # pipeline buffers stay well inside even v7x's 64 MiB VMEM.
    TB = min(256, _round_up(B, 8))
    while TB > 8 and x_tile_bytes(TB) > (8 << 20):
        TB = max(8, _round_up(TB // 2, 8))

    # v7x megacore: prefer >= 2 grid steps on the "parallel" batch axis so both
    # TensorCores get work (harmless on single-TC v5e/v6e).
    while True:
        B_pad = _round_up(B, TB)
        n_tiles = B_pad // TB
        if n_tiles >= 2 or TB <= 8:
            break
        TB = max(8, _round_up(TB // 2, 8))

    # x stays f32 and in (a reshape of) its native NCHW layout: [B, C, H*W].
    x = x_nchw
    if x.dtype != jnp.float32:
        x = x.astype(jnp.float32)
    x = x.reshape(B, C, HW)
    if B_pad != B:
        x = jnp.pad(x, ((0, B_pad - B), (0, 0), (0, 0)))

    # bf16 weights for the MXU; fold the GAP 1/HW scale into Wp; zero-pad the
    # narrow head widths to 128 lanes for full-width MXU N / unmasked stores.
    wpb = (wp * (1.0 / HW)).astype(jnp.bfloat16)
    w1b = w1.astype(jnp.bfloat16)
    w2p = jnp.pad(w2, ((0, 0), (0, latent_pad - latent_dim))).astype(jnp.bfloat16)
    w3p = jnp.pad(w3, ((0, latent_pad - latent_dim),
                       (0, classes_pad - num_classes))).astype(jnp.bfloat16)
    bp2 = bp.reshape(1, -1)
    b12 = b1.reshape(1, -1)
    b2p = jnp.pad(b2, (0, latent_pad - latent_dim)).reshape(1, latent_pad)
    b3p = jnp.pad(b3, (0, classes_pad - num_classes)).reshape(1, classes_pad)

    # VMEM accounting with tiling padding: resident bf16 weights (x2 in case the
    # pipeliner still double-buffers the constant-index blocks), f32 biases
    # ([1,N] pads to 8 sublanes), double-buffered x and output tiles, in-kernel
    # f32+bf16 intermediates, plus headroom; clamped to ~3/4 of physical VMEM.
    w_bytes = 2 * 2 * (c_sub * 2048 + 2048 * 512
                       + 512 * latent_pad + latent_pad * classes_pad)
    bias_bytes = 2 * 4 * 8 * (2048 + 512 + latent_pad + classes_pad)
    out_tile_bytes = TB * (latent_pad + classes_pad) * 4
    interm_bytes = TB * (c_sub + 2048 + 512 + latent_pad + classes_pad) * (4 + 2)
    vmem_need = (w_bytes + bias_bytes + 2 * x_tile_bytes(TB)
                 + 2 * out_tile_bytes + interm_bytes + (4 << 20))
    vmem_limit = int(min(max(vmem_need, 32 << 20), _usable_vmem_bytes()))

    flops = int(2 * B_pad * (C * 2048 + 2048 * 512 + 512 * latent_pad
                             + latent_pad * classes_pad) + B_pad * C * HW)
    bytes_accessed = int(B_pad * C * HW * 4 + w_bytes // 2 + bias_bytes // 2
                         + B_pad * (latent_pad + classes_pad) * 4)

    const2 = lambda i: (0, 0)

    fc_feat_p, y_p = pl.pallas_call(
        _finetune_kernel,
        out_shape=(
            jax.ShapeDtypeStruct((B_pad, latent_pad), jnp.float32),
            jax.ShapeDtypeStruct((B_pad, classes_pad), jnp.float32),
        ),
        grid_spec=pltpu.PrefetchScalarGridSpec(
            num_scalar_prefetch=0,
            grid=(n_tiles,),
            in_specs=[
                pl.BlockSpec((TB, C, HW), lambda i: (i, 0, 0)),   # x tile, lane-dense (HW on lanes)
                pl.BlockSpec(wpb.shape, const2),                  # resident weights
                pl.BlockSpec(bp2.shape, const2),
                pl.BlockSpec(w1b.shape, const2),
                pl.BlockSpec(b12.shape, const2),
                pl.BlockSpec(w2p.shape, const2),
                pl.BlockSpec(b2p.shape, const2),
                pl.BlockSpec(w3p.shape, const2),
                pl.BlockSpec(b3p.shape, const2),
            ],
            out_specs=(
                pl.BlockSpec((TB, latent_pad), lambda i: (i, 0)),
                pl.BlockSpec((TB, classes_pad), lambda i: (i, 0)),
            ),
        ),
        compiler_params=pltpu.CompilerParams(
            dimension_semantics=("parallel",),        # batch axis shards across v7x's 2 TCs
            vmem_limit_bytes=vmem_limit,
        ),
        cost_estimate=pl.CostEstimate(
            flops=flops, transcendentals=0, bytes_accessed=bytes_accessed),
    )(x, wpb, bp2, w1b, b12, w2p, b2p, w3p, b3p)

    # Slice away batch / lane padding.
    return fc_feat_p[:B, :latent_dim], y_p[:B, :num_classes]


def init_params(key, in_channels, latent_dim, num_classes):
    """Deterministic PyTorch-style uniform(+-1/sqrt(fan_in)) init (f32 master copies)."""
    def linear(k, fan_in, fan_out):
        kw, kb = jax.random.split(k)
        bound = 1.0 / jnp.sqrt(fan_in)
        w = jax.random.uniform(kw, (fan_in, fan_out), jnp.float32, -bound, bound)
        b = jax.random.uniform(kb, (fan_out,), jnp.float32, -bound, bound)
        return w, b

    k0, k1, k2, k3 = jax.random.split(key, 4)
    wp, bp = linear(k0, in_channels, 2048)        # stand-in backbone projection
    w1, b1 = linear(k1, 2048, 512)                # fc_features Linear(2048, 512)
    w2, b2 = linear(k2, 512, latent_dim)          # fc_features Linear(512, latent_dim)
    w3, b3 = linear(k3, latent_dim, num_classes)  # classifier Linear(latent, num_classes)
    return (wp, bp, w1, b1, w2, b2, w3, b3)


if __name__ == "__main__":
    B, C, H, W = 2, 4, 16, 16
    latent_dim, num_classes = 32, 8

    key = jax.random.PRNGKey(0)
    kx, kp = jax.random.split(key)
    x = jax.random.normal(kx, (B, C, H, W), jnp.float32)
    params = init_params(kp, C, latent_dim, num_classes)

    fc_feat, y = finetune_forward(x, params)
    jax.block_until_ready((fc_feat, y))

    assert fc_feat.shape == (B, latent_dim)
    assert y.shape == (B, num_classes)
    assert bool(jnp.all(jnp.isfinite(fc_feat))) and bool(jnp.all(jnp.isfinite(y)))
    print("KERNEL_OK")
</pallas_src>

<mosaic_0001>
module attributes {stable_mosaic.version = 11 : i64} {
  func.func @_finetune_kernel(%arg0: i32, %arg1: memref<8x4x256xf32, #tpu.memory_space<vmem>>, %arg2: memref<4x2048xbf16, #tpu.memory_space<vmem>>, %arg3: memref<1x2048xf32, #tpu.memory_space<vmem>>, %arg4: memref<2048x512xbf16, #tpu.memory_space<vmem>>, %arg5: memref<1x512xf32, #tpu.memory_space<vmem>>, %arg6: memref<512x128xbf16, #tpu.memory_space<vmem>>, %arg7: memref<1x128xf32, #tpu.memory_space<vmem>>, %arg8: memref<128x128xbf16, #tpu.memory_space<vmem>>, %arg9: memref<1x128xf32, #tpu.memory_space<vmem>>, %arg10: memref<8x128xf32, #tpu.memory_space<vmem>>, %arg11: memref<8x128xf32, #tpu.memory_space<vmem>>) attributes {dimension_semantics = [#tpu.dimension_semantics<parallel>], iteration_bounds = array<i64: 1>, scalar_prefetch = 0 : i64, scratch_operands = 0 : i64, tpu.core_type = #tpu.core_type<tc>, window_params = [{transform_indices = @transform_0, window_bounds = array<i64: 8, 4, 256>}, {pipeline_mode = #tpu.pipeline_mode<synchronous>, transform_indices = @transform_1, window_bounds = array<i64: 4, 2048>}, {pipeline_mode = #tpu.pipeline_mode<synchronous>, transform_indices = @transform_2, window_bounds = array<i64: 1, 2048>}, {pipeline_mode = #tpu.pipeline_mode<synchronous>, transform_indices = @transform_3, window_bounds = array<i64: 2048, 512>}, {pipeline_mode = #tpu.pipeline_mode<synchronous>, transform_indices = @transform_4, window_bounds = array<i64: 1, 512>}, {pipeline_mode = #tpu.pipeline_mode<synchronous>, transform_indices = @transform_5, window_bounds = array<i64: 512, 128>}, {pipeline_mode = #tpu.pipeline_mode<synchronous>, transform_indices = @transform_6, window_bounds = array<i64: 1, 128>}, {pipeline_mode = #tpu.pipeline_mode<synchronous>, transform_indices = @transform_7, window_bounds = array<i64: 128, 128>}, {pipeline_mode = #tpu.pipeline_mode<synchronous>, transform_indices = @transform_8, window_bounds = array<i64: 1, 128>}, {transform_indices = @transform_9, window_bounds = array<i64: 8, 128>}, {transform_indices = @transform_10, window_bounds = array<i64: 8, 128>}]} {
    %c0 = arith.constant 0 : index
    %c0_0 = arith.constant 0 : index
    %c0_1 = arith.constant 0 : index
    %0 = vector.load %arg1[%c0, %c0_0, %c0_1] : memref<8x4x256xf32, #tpu.memory_space<vmem>>, vector<8x4x256xf32>
    %cst = arith.constant dense<0.000000e+00> : vector<8x4xf32>
    %1 = vector.multi_reduction <add>, %0, %cst [2] : vector<8x4x256xf32> to vector<8x4xf32>
    %2 = arith.truncf %1 : vector<8x4xf32> to vector<8x4xbf16>
    %c0_2 = arith.constant 0 : index
    %c0_3 = arith.constant 0 : index
    %3 = vector.load %arg2[%c0_2, %c0_3] : memref<4x2048xbf16, #tpu.memory_space<vmem>>, vector<4x2048xbf16>
    %cst_4 = arith.constant dense<0.000000e+00> : vector<8x2048xf32>
    %4 = tpu.matmul %2, %3, %cst_4 {dimension_numbers = #tpu.dot_dimension_numbers<[1], [0], [0], [1], [0, 0, 1, 1], [], []>} : vector<8x4xbf16>, vector<4x2048xbf16>, vector<8x2048xf32> -> vector<8x2048xf32>
    %c0_5 = arith.constant 0 : index
    %c0_6 = arith.constant 0 : index
    %5 = vector.load %arg3[%c0_5, %c0_6] : memref<1x2048xf32, #tpu.memory_space<vmem>>, vector<1x2048xf32>
    %6 = vector.broadcast %5 : vector<1x2048xf32> to vector<8x2048xf32>
    %7 = arith.addf %4, %6 : vector<8x2048xf32>
    %8 = arith.truncf %7 : vector<8x2048xf32> to vector<8x2048xbf16>
    %c0_7 = arith.constant 0 : index
    %c0_8 = arith.constant 0 : index
    %9 = vector.load %arg4[%c0_7, %c0_8] : memref<2048x512xbf16, #tpu.memory_space<vmem>>, vector<2048x512xbf16>
    %cst_9 = arith.constant dense<0.000000e+00> : vector<8x512xf32>
    %10 = tpu.matmul %8, %9, %cst_9 {dimension_numbers = #tpu.dot_dimension_numbers<[1], [0], [0], [1], [0, 0, 1, 1], [], []>} : vector<8x2048xbf16>, vector<2048x512xbf16>, vector<8x512xf32> -> vector<8x512xf32>
    %c0_10 = arith.constant 0 : index
    %c0_11 = arith.constant 0 : index
    %11 = vector.load %arg5[%c0_10, %c0_11] : memref<1x512xf32, #tpu.memory_space<vmem>>, vector<1x512xf32>
    %12 = vector.broadcast %11 : vector<1x512xf32> to vector<8x512xf32>
    %13 = arith.addf %10, %12 : vector<8x512xf32>
    %cst_12 = arith.constant 0.000000e+00 : f32
    %14 = vector.broadcast %cst_12 : f32 to vector<8x512xf32>
    %15 = arith.maximumf %13, %14 : vector<8x512xf32>
    %16 = arith.truncf %15 : vector<8x512xf32> to vector<8x512xbf16>
    %c0_13 = arith.constant 0 : index
    %c0_14 = arith.constant 0 : index
    %17 = vector.load %arg6[%c0_13, %c0_14] : memref<512x128xbf16, #tpu.memory_space<vmem>>, vector<512x128xbf16>
    %cst_15 = arith.constant dense<0.000000e+00> : vector<8x128xf32>
    %18 = tpu.matmul %16, %17, %cst_15 {dimension_numbers = #tpu.dot_dimension_numbers<[1], [0], [0], [1], [0, 0, 1, 1], [], []>} : vector<8x512xbf16>, vector<512x128xbf16>, vector<8x128xf32> -> vector<8x128xf32>
    %c0_16 = arith.constant 0 : index
    %c0_17 = arith.constant 0 : index
    %19 = vector.load %arg7[%c0_16, %c0_17] : memref<1x128xf32, #tpu.memory_space<vmem>>, vector<1x128xf32>
    %20 = vector.broadcast %19 : vector<1x128xf32> to vector<8x128xf32>
    %21 = arith.addf %18, %20 : vector<8x128xf32>
    %cst_18 = arith.constant 0.000000e+00 : f32
    %22 = vector.broadcast %cst_18 : f32 to vector<8x128xf32>
    %23 = arith.maximumf %21, %22 : vector<8x128xf32>
    %24 = arith.truncf %23 : vector<8x128xf32> to vector<8x128xbf16>
    %c0_19 = arith.constant 0 : index
    %c0_20 = arith.constant 0 : index
    %25 = vector.load %arg8[%c0_19, %c0_20] : memref<128x128xbf16, #tpu.memory_space<vmem>>, vector<128x128xbf16>
    %cst_21 = arith.constant dense<0.000000e+00> : vector<8x128xf32>
    %26 = tpu.matmul %24, %25, %cst_21 {dimension_numbers = #tpu.dot_dimension_numbers<[1], [0], [0], [1], [0, 0, 1, 1], [], []>} : vector<8x128xbf16>, vector<128x128xbf16>, vector<8x128xf32> -> vector<8x128xf32>
    %c0_22 = arith.constant 0 : index
    %c0_23 = arith.constant 0 : index
    %27 = vector.load %arg9[%c0_22, %c0_23] : memref<1x128xf32, #tpu.memory_space<vmem>>, vector<1x128xf32>
    %28 = vector.broadcast %27 : vector<1x128xf32> to vector<8x128xf32>
    %29 = arith.addf %26, %28 : vector<8x128xf32>
    %c0_24 = arith.constant 0 : index
    %c0_25 = arith.constant 0 : index
    %30 = vector.load %arg10[%c0_24, %c0_25] : memref<8x128xf32, #tpu.memory_space<vmem>>, vector<8x128xf32>
    tpu.vector_store %arg10[%c0_24, %c0_25], %23 {strides = array<i32>} : memref<8x128xf32, #tpu.memory_space<vmem>>, vector<8x128xf32>,
    %c0_26 = arith.constant 0 : index
    %c0_27 = arith.constant 0 : index
    %31 = vector.load %arg11[%c0_26, %c0_27] : memref<8x128xf32, #tpu.memory_space<vmem>>, vector<8x128xf32>
    tpu.vector_store %arg11[%c0_26, %c0_27], %29 {strides = array<i32>} : memref<8x128xf32, #tpu.memory_space<vmem>>, vector<8x128xf32>,
    return
  }
  func.func @transform_0(%arg0: i32) -> (i32, i32, i32) {
    %c0_i32 = arith.constant 0 : i32
    %c0_i32_0 = arith.constant 0 : i32
    %c0_i32_1 = arith.constant 0 : i32
    return %arg0, %c0_i32, %c0_i32_0 : i32, i32, i32
  }
  func.func @transform_1(%arg0: i32) -> (i32, i32) {
    %c0_i32 = arith.constant 0 : i32
    %c0_i32_0 = arith.constant 0 : i32
    %c0_i32_1 = arith.constant 0 : i32
    return %c0_i32, %c0_i32_0 : i32, i32
  }
  func.func @transform_2(%arg0: i32) -> (i32, i32) {
    %c0_i32 = arith.constant 0 : i32
    %c0_i32_0 = arith.constant 0 : i32
    %c0_i32_1 = arith.constant 0 : i32
    return %c0_i32, %c0_i32_0 : i32, i32
  }
  func.func @transform_3(%arg0: i32) -> (i32, i32) {
    %c0_i32 = arith.constant 0 : i32
    %c0_i32_0 = arith.constant 0 : i32
    %c0_i32_1 = arith.constant 0 : i32
    return %c0_i32, %c0_i32_0 : i32, i32
  }
  func.func @transform_4(%arg0: i32) -> (i32, i32) {
    %c0_i32 = arith.constant 0 : i32
    %c0_i32_0 = arith.constant 0 : i32
    %c0_i32_1 = arith.constant 0 : i32
    return %c0_i32, %c0_i32_0 : i32, i32
  }
  func.func @transform_5(%arg0: i32) -> (i32, i32) {
    %c0_i32 = arith.constant 0 : i32
    %c0_i32_0 = arith.constant 0 : i32
    %c0_i32_1 = arith.constant 0 : i32
    return %c0_i32, %c0_i32_0 : i32, i32
  }
  func.func @transform_6(%arg0: i32) -> (i32, i32) {
    %c0_i32 = arith.constant 0 : i32
    %c0_i32_0 = arith.constant 0 : i32
    %c0_i32_1 = arith.constant 0 : i32
    return %c0_i32, %c0_i32_0 : i32, i32
  }
  func.func @transform_7(%arg0: i32) -> (i32, i32) {
    %c0_i32 = arith.constant 0 : i32
    %c0_i32_0 = arith.constant 0 : i32
    %c0_i32_1 = arith.constant 0 : i32
    return %c0_i32, %c0_i32_0 : i32, i32
  }
  func.func @transform_8(%arg0: i32) -> (i32, i32) {
    %c0_i32 = arith.constant 0 : i32
    %c0_i32_0 = arith.constant 0 : i32
    %c0_i32_1 = arith.constant 0 : i32
    return %c0_i32, %c0_i32_0 : i32, i32
  }
  func.func @transform_9(%arg0: i32) -> (i32, i32) {
    %c0_i32 = arith.constant 0 : i32
    %c0_i32_0 = arith.constant 0 : i32
    return %arg0, %c0_i32 : i32, i32
  }
  func.func @transform_10(%arg0: i32) -> (i32, i32) {
    %c0_i32 = arith.constant 0 : i32
    %c0_i32_0 = arith.constant 0 : i32
    return %arg0, %c0_i32 : i32, i32
  }
}

</mosaic_0001>

<llo_original>
// kernel: tpu_custom_call.1
$region0: #{tpu_custom_call.1}
  #allocation0 [shape = 'u32[]', space=smem, size = 0x4, offset = 0x4, fixed_abs, tag = 'smem constant byte address 0x4 - core index']
  #allocation1 [shape = 'u32[144,128]{1,0:T(1,128)}', space=vmem, size = 0x12000, scoped, tag = 'internal scratch']
  %s0 = inlined_call_operand.hbm [shape: f32[8,4,256], index: 0, kind: input, shape index: {}]
  %s1 = inlined_call_operand.hbm [shape: bf16[4,2048], index: 1, kind: input, shape index: {}]
  %s2 = inlined_call_operand.hbm [shape: f32[1,2048], index: 2, kind: input, shape index: {}]
  %s3 = inlined_call_operand.hbm [shape: bf16[2048,512], index: 3, kind: input, shape index: {}]
  %s4 = inlined_call_operand.hbm [shape: f32[1,512], index: 4, kind: input, shape index: {}]
  %s5 = inlined_call_operand.hbm [shape: bf16[512,128], index: 5, kind: input, shape index: {}]
  %s6 = inlined_call_operand.hbm [shape: f32[1,128], index: 6, kind: input, shape index: {}]
  %s7 = inlined_call_operand.hbm [shape: bf16[128,128], index: 7, kind: input, shape index: {}]
  %s8 = inlined_call_operand.hbm [shape: f32[1,128], index: 8, kind: input, shape index: {}]
  %s9 = inlined_call_operand.hbm [shape: f32[8,128], index: 9, kind: output, shape index: {0}]
  %s10 = inlined_call_operand.hbm [shape: f32[8,128], index: 10, kind: output, shape index: {1}]
  %11 = xla_tuple %s9, %s10
  %s12 = sld [smem:[#allocation0]]
  $region90: #{tpu_custom_call.1} parent=0
    _
  %s14 = ssub.s32 1, %s12
  %s15 = scalar_select 0, %s14, %s12
  $region1: #{tpu_custom_call.1} parent=0
    #allocation2 [shape = 'u8[32768]{0}', space=vmem, size = 0x8000, scoped, tag = 'input window, operand 0, single buffered']
    #allocation3 [shape = 's32[1]{0}', space=sflag, size = 0x4, scoped, tag = 'scoped memory for tpu_custom_call.1']
    #allocation4 [shape = 's32[1]{0}', space=sflag, size = 0x4, scoped, tag = 'scoped memory for tpu_custom_call.1']
    #allocation5 [shape = 'u8[16384]{0}', space=vmem, size = 0x4000, scoped, tag = 'input window, operand 1, single buffered']
    #allocation6 [shape = 's32[1]{0}', space=sflag, size = 0x4, scoped, tag = 'scoped memory for tpu_custom_call.1']
    #allocation7 [shape = 'u8[8192]{0}', space=vmem, size = 0x2000, scoped, tag = 'input window, operand 2, single buffered']
    #allocation8 [shape = 'u8[2097152]{0}', space=vmem, size = 0x200000, scoped, tag = 'input window, operand 3, single buffered']
    #allocation9 [shape = 's32[1]{0}', space=sflag, size = 0x4, scoped, tag = 'scoped memory for tpu_custom_call.1']
    #allocation10 [shape = 'u8[2048]{0}', space=vmem, size = 0x800, scoped, tag = 'input window, operand 4, single buffered']
    #allocation11 [shape = 'u8[131072]{0}', space=vmem, size = 0x20000, scoped, tag = 'input window, operand 5, single buffered']
    #allocation12 [shape = 's32[1]{0}', space=sflag, size = 0x4, scoped, tag = 'scoped memory for tpu_custom_call.1']
    #allocation13 [shape = 'u8[512]{0}', space=vmem, size = 0x400, scoped, tag = 'input window, operand 6, single buffered']
    #allocation14 [shape = 'u8[32768]{0}', space=vmem, size = 0x8000, scoped, tag = 'input window, operand 7, single buffered']
    #allocation15 [shape = 's32[1]{0}', space=sflag, size = 0x4, scoped, tag = 'scoped memory for tpu_custom_call.1']
    #allocation16 [shape = 'u8[512]{0}', space=vmem, size = 0x400, scoped, tag = 'input window, operand 8, single buffered']
    #allocation17 [shape = 'u8[4096]{0}', space=vmem, size = 0x1000, scoped, tag = 'output window, operand 0, single buffered']
    #allocation18 [shape = 'u8[4096]{0}', space=vmem, size = 0x1000, scoped, tag = 'output window, operand 1, single buffered']
    #allocation19 [shape = 's32[1]{0}', space=sflag, size = 0x4, scoped, tag = 'scoped memory for tpu_custom_call.1']
    %16 = vsyncpa [#allocation3], 0
    %17 = vsyncpa [#allocation6], 0
    %18 = vsyncpa [#allocation9], 0
    %19 = vsyncpa [#allocation12], 0
    %20 = vsyncpa [#allocation15], 0
    %21 = vsyncpa [#allocation4], 0
    %22 = vsyncpa [#allocation19], 0
    // Predicated region
    $region2: #{tpu_custom_call.1} parent=1 // pred_check
      _
    $region3: #{tpu_custom_call.1} parent=1 // pred_check_branch
      %24 = sbr.rel (0) target = $region5
    $region4: #{tpu_custom_call.1} parent=1 // pred_region
      %s26 = ssub.s32 1024, 1024
      %27 = vsyncadd [#allocation3], %s26
      %s28 = sshll.u32 [#allocation2], 4
      %s29 = int_to_ptr.vmem [resolvable:$true] %s28
      %34 = dma.hbm_to_vmem [thread:$0]  %s0, 1024, %s29, [#allocation3], 128, 128, 8
    $region5: #{tpu_custom_call.1} parent=1 // pred_fallthru
      _
    // Predicated region
    $region6: #{tpu_custom_call.1} parent=1 // pred_check
      _
    $region7: #{tpu_custom_call.1} parent=1 // pred_check_branch
      %36 = sbr.rel (0) target = $region9
    $region8: #{tpu_custom_call.1} parent=1 // pred_region
      %s38 = ssub.s32 512, 512
      %39 = vsyncadd [#allocation6], %s38
      %s41 = sshll.u32 [#allocation5], 4
      %s42 = int_to_ptr.vmem [resolvable:$true] %s41
      %44 = dma.hbm_to_vmem [thread:$0]  %s1, 512, %s42, [#allocation6]
    $region9: #{tpu_custom_call.1} parent=1 // pred_fallthru
      _
    // Predicated region
    $region10: #{tpu_custom_call.1} parent=1 // pred_check
      _
    $region11: #{tpu_custom_call.1} parent=1 // pred_check_branch
      %46 = sbr.rel (0) target = $region13
    $region12: #{tpu_custom_call.1} parent=1 // pred_region
      %s48 = ssub.s32 256, 256
      %49 = vsyncadd [#allocation6], %s48
      %s51 = sshll.u32 [#allocation7], 4
      %s52 = int_to_ptr.vmem [resolvable:$true] %s51
      %54 = dma.hbm_to_vmem [thread:$0]  %s2, 256, %s52, [#allocation6]
    $region13: #{tpu_custom_call.1} parent=1 // pred_fallthru
      _
    // Predicated region
    $region14: #{tpu_custom_call.1} parent=1 // pred_check
      _
    $region15: #{tpu_custom_call.1} parent=1 // pred_check_branch
      %56 = sbr.rel (0) target = $region17
    $region16: #{tpu_custom_call.1} parent=1 // pred_region
      %s58 = ssub.s32 65536, 65536
      %59 = vsyncadd [#allocation9], %s58
      %s60 = sshll.u32 [#allocation8], 4
      %s61 = int_to_ptr.vmem [resolvable:$true] %s60
      %66 = dma.hbm_to_vmem [thread:$0]  %s3, 65536, %s61, [#allocation9], 256, 256, 16
    $region17: #{tpu_custom_call.1} parent=1 // pred_fallthru
      _
    // Predicated region
    $region18: #{tpu_custom_call.1} parent=1 // pred_check
      _
    $region19: #{tpu_custom_call.1} parent=1 // pred_check_branch
      %68 = sbr.rel (0) target = $region21
    $region20: #{tpu_custom_call.1} parent=1 // pred_region
      %s70 = ssub.s32 64, 64
      %71 = vsyncadd [#allocation9], %s70
      %s73 = sshll.u32 [#allocation10], 4
      %s74 = int_to_ptr.vmem [resolvable:$true] %s73
      %76 = dma.hbm_to_vmem [thread:$0]  %s4, 64, %s74, [#allocation9]
    $region21: #{tpu_custom_call.1} parent=1 // pred_fallthru
      _
    // Predicated region
    $region22: #{tpu_custom_call.1} parent=1 // pred_check
      _
    $region23: #{tpu_custom_call.1} parent=1 // pred_check_branch
      %78 = sbr.rel (0) target = $region25
    $region24: #{tpu_custom_call.1} parent=1 // pred_region
      %s80 = ssub.s32 4096, 4096
      %81 = vsyncadd [#allocation12], %s80
      %s82 = sshll.u32 [#allocation11], 4
      %s83 = int_to_ptr.vmem [resolvable:$true] %s82
      %88 = dma.hbm_to_vmem [thread:$0]  %s5, 4096, %s83, [#allocation12], 64, 64, 4
    $region25: #{tpu_custom_call.1} parent=1 // pred_fallthru
      _
    // Predicated region
    $region26: #{tpu_custom_call.1} parent=1 // pred_check
      _
    $region27: #{tpu_custom_call.1} parent=1 // pred_check_branch
      %90 = sbr.rel (0) target = $region29
    $region28: #{tpu_custom_call.1} parent=1 // pred_region
      %s92 = ssub.s32 16, 16
      %93 = vsyncadd [#allocation12], %s92
      %s95 = sshll.u32 [#allocation13], 4
      %s96 = int_to_ptr.vmem [resolvable:$true] %s95
      %98 = dma.hbm_to_vmem [thread:$0]  %s6, 16, %s96, [#allocation12]
    $region29: #{tpu_custom_call.1} parent=1 // pred_fallthru
      _
    // Predicated region
    $region30: #{tpu_custom_call.1} parent=1 // pred_check
      _
    $region31: #{tpu_custom_call.1} parent=1 // pred_check_branch
      %100 = sbr.rel (0) target = $region33
    $region32: #{tpu_custom_call.1} parent=1 // pred_region
      %s102 = ssub.s32 1024, 1024
      %103 = vsyncadd [#allocation15], %s102
      %s104 = sshll.u32 [#allocation14], 4
      %s105 = int_to_ptr.vmem [resolvable:$true] %s104
      %110 = dma.hbm_to_vmem [thread:$0]  %s7, 1024, %s105, [#allocation15], 64, 64, 4
    $region33: #{tpu_custom_call.1} parent=1 // pred_fallthru
      _
    // Predicated region
    $region34: #{tpu_custom_call.1} parent=1 // pred_check
      _
    $region35: #{tpu_custom_call.1} parent=1 // pred_check_branch
      %112 = sbr.rel (0) target = $region37
    $region36: #{tpu_custom_call.1} parent=1 // pred_region
      %s114 = ssub.s32 16, 16
      %115 = vsyncadd [#allocation15], %s114
      %s117 = sshll.u32 [#allocation16], 4
      %s118 = int_to_ptr.vmem [resolvable:$true] %s117
      %120 = dma.hbm_to_vmem [thread:$0]  %s8, 16, %s118, [#allocation15]
    $region37: #{tpu_custom_call.1} parent=1 // pred_fallthru
      _
    // Predicated region
    $region38: #{tpu_custom_call.1} parent=1 // pred_check
      _
    $region39: #{tpu_custom_call.1} parent=1 // pred_check_branch
      %122 = sbr.rel (0) target = $region41
    $region40: #{tpu_custom_call.1} parent=1 // pred_region
      %123 = dma.done [#allocation3], 1024
    $region41: #{tpu_custom_call.1} parent=1 // pred_fallthru
      _
    // Predicated region
    $region42: #{tpu_custom_call.1} parent=1 // pred_check
      _
    $region43: #{tpu_custom_call.1} parent=1 // pred_check_branch
      %125 = sbr.rel (0) target = $region45
    $region44: #{tpu_custom_call.1} parent=1 // pred_region
      %126 = dma.done [#allocation6], 512
    $region45: #{tpu_custom_call.1} parent=1 // pred_fallthru
      _
    // Predicated region
    $region46: #{tpu_custom_call.1} parent=1 // pred_check
      _
    $region47: #{tpu_custom_call.1} parent=1 // pred_check_branch
      %128 = sbr.rel (0) target = $region49
    $region48: #{tpu_custom_call.1} parent=1 // pred_region
      %129 = dma.done [#allocation6], 256
    $region49: #{tpu_custom_call.1} parent=1 // pred_fallthru
      _
    // Predicated region
    $region50: #{tpu_custom_call.1} parent=1 // pred_check
      _
    $region51: #{tpu_custom_call.1} parent=1 // pred_check_branch
      %131 = sbr.rel (0) target = $region53
    $region52: #{tpu_custom_call.1} parent=1 // pred_region
      %132 = dma.done [#allocation9], 65536
    $region53: #{tpu_custom_call.1} parent=1 // pred_fallthru
      _
    // Predicated region
    $region54: #{tpu_custom_call.1} parent=1 // pred_check
      _
    $region55: #{tpu_custom_call.1} parent=1 // pred_check_branch
      %134 = sbr.rel (0) target = $region57
    $region56: #{tpu_custom_call.1} parent=1 // pred_region
      %135 = dma.done [#allocation9], 64
    $region57: #{tpu_custom_call.1} parent=1 // pred_fallthru
      _
    // Predicated region
    $region58: #{tpu_custom_call.1} parent=1 // pred_check
      _
    $region59: #{tpu_custom_call.1} parent=1 // pred_check_branch
      %137 = sbr.rel (0) target = $region61
    $region60: #{tpu_custom_call.1} parent=1 // pred_region
      %138 = dma.done [#allocation12], 4096
    $region61: #{tpu_custom_call.1} parent=1 // pred_fallthru
      _
    // Predicated region
    $region62: #{tpu_custom_call.1} parent=1 // pred_check
      _
    $region63: #{tpu_custom_call.1} parent=1 // pred_check_branch
      %140 = sbr.rel (0) target = $region65
    $region64: #{tpu_custom_call.1} parent=1 // pred_region
      %141 = dma.done [#allocation12], 16
    $region65: #{tpu_custom_call.1} parent=1 // pred_fallthru
      _
    // Predicated region
    $region66: #{tpu_custom_call.1} parent=1 // pred_check
      _
    $region67: #{tpu_custom_call.1} parent=1 // pred_check_branch
      %143 = sbr.rel (0) target = $region69
    $region68: #{tpu_custom_call.1} parent=1 // pred_region
      %144 = dma.done [#allocation15], 1024
    $region69: #{tpu_custom_call.1} parent=1 // pred_fallthru
      _
    // Predicated region
    $region70: #{tpu_custom_call.1} parent=1 // pred_check
      _
    $region71: #{tpu_custom_call.1} parent=1 // pred_check_branch
      %146 = sbr.rel (0) target = $region73
    $region72: #{tpu_custom_call.1} parent=1 // pred_region
      %147 = dma.done [#allocation15], 16
    $region73: #{tpu_custom_call.1} parent=1 // pred_fallthru
      _
    %v149 = vld [vmem:[#allocation2] sm:$0xff]
    %v150 = vld [vmem:[#allocation2 + $0x8] sm:$0xff]
    %v151 = vld [vmem:[#allocation2 + $0x10] sm:$0xff]
    %v152 = vld [vmem:[#allocation2 + $0x18] sm:$0xff]
    %v153 = vld [vmem:[#allocation2 + $0x20] sm:$0xff]
    %v154 = vld [vmem:[#allocation2 + $0x28] sm:$0xff]
    %v155 = vld [vmem:[#allocation2 + $0x30] sm:$0xff]
    %v156 = vld [vmem:[#allocation2 + $0x38] sm:$0xff]
    %v165 = vcombine.high %v149, %v149
    %v166 = vcombine.high %v150, %v150
    %v167 = vcombine.high %v151, %v151
    %v168 = vcombine.high %v152, %v152
    %v169 = vcombine.high %v153, %v153
    %v170 = vcombine.high %v154, %v154
    %v171 = vcombine.high %v155, %v155
    %v172 = vcombine.high %v156, %v156
    %vm181 = vcmask 1043456
    %v182 = vsel %vm181, %v149, 0.0
    %v183 = vsel %vm181, %v165, 0.0
    %v184 = vadd.f32 %v182, %v183
    %185 = vadd.xlane.f32.xlu0 %v184
    %v186 = vpop.xlane.xlu0 %185
    %v187 = vsel %vm181, %v150, 0.0
    %v188 = vsel %vm181, %v166, 0.0
    %v189 = vadd.f32 %v187, %v188
    %190 = vadd.xlane.f32.xlu0 %v189
    %v191 = vpop.xlane.xlu0 %190
    %v192 = vsel %vm181, %v151, 0.0
    %v193 = vsel %vm181, %v167, 0.0
    %v194 = vadd.f32 %v192, %v193
    %195 = vadd.xlane.f32.xlu0 %v194
    %v196 = vpop.xlane.xlu0 %195
    %v197 = vsel %vm181, %v152, 0.0
    %v198 = vsel %vm181, %v168, 0.0
    %v199 = vadd.f32 %v197, %v198
    %200 = vadd.xlane.f32.xlu0 %v199
    %v201 = vpop.xlane.xlu0 %200
    %v202 = vsel %vm181, %v153, 0.0
    %v203 = vsel %vm181, %v169, 0.0
    %v204 = vadd.f32 %v202, %v203
    %205 = vadd.xlane.f32.xlu0 %v204
    %v206 = vpop.xlane.xlu0 %205
    %v207 = vsel %vm181, %v154, 0.0
    %v208 = vsel %vm181, %v170, 0.0
    %v209 = vadd.f32 %v207, %v208
    %210 = vadd.xlane.f32.xlu0 %v209
    %v211 = vpop.xlane.xlu0 %210
    %v212 = vsel %vm181, %v155, 0.0
    %v213 = vsel %vm181, %v171, 0.0
    %v214 = vadd.f32 %v212, %v213
    %215 = vadd.xlane.f32.xlu0 %v214
    %v216 = vpop.xlane.xlu0 %215
    %v217 = vsel %vm181, %v156, 0.0
    %v218 = vsel %vm181, %v172, 0.0
    %v219 = vadd.f32 %v217, %v218
    %220 = vadd.xlane.f32.xlu0 %v219
    %v221 = vpop.xlane.xlu0 %220
    %v222 = vpack.c.bf16 %v186, %v186
    %v223 = vpack.c.bf16 %v191, %v191
    %v224 = vpack.c.bf16 %v196, %v196
    %v225 = vpack.c.bf16 %v201, %v201
    %v226 = vpack.c.bf16 %v206, %v206
    %v227 = vpack.c.bf16 %v211, %v211
    %v228 = vpack.c.bf16 %v216, %v216
    %v229 = vpack.c.bf16 %v221, %v221
    %v230 = vld [vmem:[#allocation5] sm:$0xff]
    %v231 = vld [vmem:[#allocation5 + $0x8] sm:$0xff]
    %v232 = vld [vmem:[#allocation5 + $0x10] sm:$0xff]
    %v233 = vld [vmem:[#allocation5 + $0x18] sm:$0xff]
    %v234 = vld [vmem:[#allocation7] sm:$0xff]
    %v235 = vld [vmem:[#allocation7 + $0x8] sm:$0xff]
    %v238 = vlaneseq
    %v239 = vshrl.u32 %v238, 7
    %v240 = vsub.s32 0, %v239
    %v241 = vrot.slane %v234, %v240
    %v242 = vlaneseq
    %v243 = vshrl.u32 %v242, 7
    %v244 = vsub.s32 1, %v243
    %v245 = vrot.slane %v234, %v244
    %v246 = vlaneseq
    %v247 = vshrl.u32 %v246, 7
    %v248 = vsub.s32 2, %v247
    %v249 = vrot.slane %v234, %v248
    %v250 = vlaneseq
    %v251 = vshrl.u32 %v250, 7
    %v252 = vsub.s32 3, %v251
    %v253 = vrot.slane %v234, %v252
    %v254 = vlaneseq
    %v255 = vshrl.u32 %v254, 7
    %v256 = vsub.s32 4, %v255
    %v257 = vrot.slane %v234, %v256
    %v258 = vlaneseq
    %v259 = vshrl.u32 %v258, 7
    %v260 = vsub.s32 5, %v259
    %v261 = vrot.slane %v234, %v260
    %v262 = vlaneseq
    %v263 = vshrl.u32 %v262, 7
    %v264 = vsub.s32 6, %v263
    %v265 = vrot.slane %v234, %v264
    %v266 = vlaneseq
    %v267 = vshrl.u32 %v266, 7
    %v268 = vsub.s32 7, %v267
    %v269 = vrot.slane %v234, %v268
    %v270 = vlaneseq
    %v271 = vshrl.u32 %v270, 7
    %v272 = vsub.s32 0, %v271
    %v273 = vrot.slane %v235, %v272
    %v274 = vlaneseq
    %v275 = vshrl.u32 %v274, 7
    %v276 = vsub.s32 1, %v275
    %v277 = vrot.slane %v235, %v276
    %v278 = vlaneseq
    %v279 = vshrl.u32 %v278, 7
    %v280 = vsub.s32 2, %v279
    %v281 = vrot.slane %v235, %v280
    %v282 = vlaneseq
    %v283 = vshrl.u32 %v282, 7
    %v284 = vsub.s32 3, %v283
    %v285 = vrot.slane %v235, %v284
    %v286 = vlaneseq
    %v287 = vshrl.u32 %v286, 7
    %v288 = vsub.s32 4, %v287
    %v289 = vrot.slane %v235, %v288
    %v290 = vlaneseq
    %v291 = vshrl.u32 %v290, 7
    %v292 = vsub.s32 5, %v291
    %v293 = vrot.slane %v235, %v292
    %v294 = vlaneseq
    %v295 = vshrl.u32 %v294, 7
    %v296 = vsub.s32 6, %v295
    %v297 = vrot.slane %v235, %v296
    %v298 = vlaneseq
    %v299 = vshrl.u32 %v298, 7
    %v300 = vsub.s32 7, %v299
    %v301 = vrot.slane %v235, %v300
    %v326 = vunpack.c.l.b16 %v222
    %v327 = vunpack.c.l.b16 %v223
    %v328 = vunpack.c.l.b16 %v224
    %v329 = vunpack.c.l.b16 %v225
    %v330 = vunpack.c.l.b16 %v226
    %v331 = vunpack.c.l.b16 %v227
    %v332 = vunpack.c.l.b16 %v228
    %v333 = vunpack.c.l.b16 %v229
    %v334 = vlaneseq
    %v335 = vand.u32 %v334, 127
    %v336 = vlaneseq
    %v337 = vshrl.u32 %v336, 7
    %v338 = vsub.s32 %v335, %v337
    %v339 = vrot.slane %v326, %v338
    %v340 = vlaneseq
    %v341 = vshrl.u32 %v340, 7
    %v342 = vsub.s32 %v335, %v341
    %v343 = vrot.slane %v327, %v342
    %v344 = vlaneseq
    %v345 = vshrl.u32 %v344, 7
    %v346 = vsub.s32 %v335, %v345
    %v347 = vrot.slane %v328, %v346
    %v348 = vlaneseq
    %v349 = vshrl.u32 %v348, 7
    %v350 = vsub.s32 %v335, %v349
    %v351 = vrot.slane %v329, %v350
    %v352 = vlaneseq
    %v353 = vshrl.u32 %v352, 7
    %v354 = vsub.s32 %v335, %v353
    %v355 = vrot.slane %v330, %v354
    %v356 = vlaneseq
    %v357 = vshrl.u32 %v356, 7
    %v358 = vsub.s32 %v335, %v357
    %v359 = vrot.slane %v331, %v358
    %v360 = vlaneseq
    %v361 = vshrl.u32 %v360, 7
    %v362 = vsub.s32 %v335, %v361
    %v363 = vrot.slane %v332, %v362
    %v364 = vlaneseq
    %v365 = vshrl.u32 %v364, 7
    %v366 = vsub.s32 %v335, %v365
    %v367 = vrot.slane %v333, %v366
    %vm368 = vcmask 1041409
    %v369 = vsel %vm368, %v343, %v339
    %vm370 = vcmask 1042434
    %v371 = vsel %vm370, %v347, %v369
    %vm372 = vcmask 1043459
    %v373 = vsel %vm372, %v351, %v371
    %vm374 = vcmask 1044484
    %v375 = vsel %vm374, %v355, %v373
    %vm376 = vcmask 1045509
    %v377 = vsel %vm376, %v359, %v375
    %vm378 = vcmask 1046534
    %v379 = vsel %vm378, %v363, %v377
    %vm380 = vcmask 1047559
    %v381 = vsel %vm380, %v367, %v379
    %v382 = vpack.c.b16 %v381, %v381
    %v387 = vcombine.high %v230, %v230
    %v389 = vunpack.c.l.s4 1983009808
    %v390 = vunpack.c.0.s8 %v389
    %v391 = vlaneseq
    %v392 = vshrl.u32 %v391, 7
    %v393 = vsub.s32 %v390, %v392
    %v394 = vrot.slane %v230, %v393
    %v396 = vunpack.c.l.s4 1983009808
    %v397 = vunpack.c.0.s8 %v396
    %v398 = vlaneseq
    %v399 = vshrl.u32 %v398, 7
    %v400 = vsub.s32 %v397, %v399
    %v401 = vrot.slane %v387, %v400
    %v402 = vcombine.high %v394, %v394
    %v403 = vcombine.high %v401, %v401
    %v404 = vcombine.high %v231, %v231
    %v406 = vunpack.c.l.s4 1983009808
    %v407 = vunpack.c.0.s8 %v406
    %v408 = vlaneseq
    %v409 = vshrl.u32 %v408, 7
    %v410 = vsub.s32 %v407, %v409
    %v411 = vrot.slane %v231, %v410
    %v413 = vunpack.c.l.s4 1983009808
    %v414 = vunpack.c.0.s8 %v413
    %v415 = vlaneseq
    %v416 = vshrl.u32 %v415, 7
    %v417 = vsub.s32 %v414, %v416
    %v418 = vrot.slane %v404, %v417
    %v419 = vcombine.high %v411, %v411
    %v420 = vcombine.high %v418, %v418
    %v421 = vcombine.high %v232, %v232
    %v423 = vunpack.c.l.s4 1983009808
    %v424 = vunpack.c.0.s8 %v423
    %v425 = vlaneseq
    %v426 = vshrl.u32 %v425, 7
    %v427 = vsub.s32 %v424, %v426
    %v428 = vrot.slane %v232, %v427
    %v430 = vunpack.c.l.s4 1983009808
    %v431 = vunpack.c.0.s8 %v430
    %v432 = vlaneseq
    %v433 = vshrl.u32 %v432, 7
    %v434 = vsub.s32 %v431, %v433
    %v435 = vrot.slane %v421, %v434
    %v436 = vcombine.high %v428, %v428
    %v437 = vcombine.high %v435, %v435
    %v438 = vcombine.high %v233, %v233
    %v440 = vunpack.c.l.s4 1983009808
    %v441 = vunpack.c.0.s8 %v440
    %v442 = vlaneseq
    %v443 = vshrl.u32 %v442, 7
    %v444 = vsub.s32 %v441, %v443
    %v445 = vrot.slane %v233, %v444
    %v447 = vunpack.c.l.s4 1983009808
    %v448 = vunpack.c.0.s8 %v447
    %v449 = vlaneseq
    %v450 = vshrl.u32 %v449, 7
    %v451 = vsub.s32 %v448, %v450
    %v452 = vrot.slane %v438, %v451
    %v453 = vcombine.high %v445, %v445
    %v454 = vcombine.high %v452, %v452
    %vm455 = vcmask 31744
    %v457 = vsel %vm455, %v382, 0
    %vm459 = vcmask 1041408
    %v461 = vsel %vm459, %v394, 0
    %v464 = vsel %vm459, %v402, 0
    %v467 = vsel %vm459, %v401, 0
    %v470 = vsel %vm459, %v403, 0
    %v473 = vsel %vm459, %v411, 0
    %v476 = vsel %vm459, %v419, 0
    %v479 = vsel %vm459, %v418, 0
    %v482 = vsel %vm459, %v420, 0
    %v485 = vsel %vm459, %v428, 0
    %v488 = vsel %vm459, %v436, 0
    %v491 = vsel %vm459, %v435, 0
    %v494 = vsel %vm459, %v437, 0
    %v497 = vsel %vm459, %v445, 0
    %v500 = vsel %vm459, %v453, 0
    %v503 = vsel %vm459, %v452, 0
    %v506 = vsel %vm459, %v454, 0
    %508 = vmatprep.subr.bf16.mxu0 %v464
    %509 = vmatpush1.bf16.msra.mxu0 %v461
    %510 = vmatprep.subr.bf16.mxu0 0
    %511 = vmatpush1.bf16.msra.mxu0 0
    %512 = vmatprep.subr.bf16.mxu0 0
    %513 = vmatpush1.bf16.msra.mxu0 0
    %514 = vmatprep.subr.bf16.mxu0 0
    %515 = vmatpush1.bf16.msra.mxu0 0
    %516 = vmatprep.subr.bf16.mxu0 0
    %517 = vmatpush1.bf16.msra.mxu0 0
    %518 = vmatprep.subr.bf16.mxu0 0
    %519 = vmatpush1.bf16.msra.mxu0 0
    %520 = vmatprep.subr.bf16.mxu0 0
    %521 = vmatpush1.bf16.msra.mxu0 0
    %522 = vmatprep.subr.bf16.mxu0 0
    %523 = vmatpush1.bf16.msra.mxu0 0
    %524 = vmatprep.subr.bf16.mxu0 0
    %525 = vmatpush1.bf16.msra.mxu0 0
    %526 = vmatprep.subr.bf16.mxu0 0
    %527 = vmatpush1.bf16.msra.mxu0 0
    %528 = vmatprep.subr.bf16.mxu0 0
    %529 = vmatpush1.bf16.msra.mxu0 0
    %530 = vmatprep.subr.bf16.mxu0 0
    %531 = vmatpush1.bf16.msra.mxu0 0
    %532 = vmatprep.subr.bf16.mxu0 0
    %533 = vmatpush1.bf16.msra.mxu0 0
    %534 = vmatprep.subr.bf16.mxu0 0
    %535 = vmatpush1.bf16.msra.mxu0 0
    %536 = vmatprep.subr.bf16.mxu0 0
    %537 = vmatpush1.bf16.msra.mxu0 0
    %538 = vmatprep.subr.bf16.mxu0 0
    %539 = vmatpush1.bf16.msra.mxu0 0
    %540 = vmatprep.mubr.bf16.mxu0 0
    %541 = vmatmul.mubr.bf16.gmra.mrb[0].mxu0 %v457
    %v542 = vpop.f32.mrb[0].mxu0
    %v543 = vadd.f32 %v241, %v542
    %v544 = vpop.f32.mrb[0].mxu0
    %v545 = vadd.f32 %v245, %v544
    %v546 = vpop.f32.mrb[0].mxu0
    %v547 = vpop.f32.mrb[0].mxu0
    %548 = vdwg.mxu0
    %549 = vmatprep.subr.bf16.mxu0 %v470
    %550 = vmatpush1.bf16.msra.mxu0 %v467
    %551 = vmatprep.subr.bf16.mxu0 0
    %552 = vmatpush1.bf16.msra.mxu0 0
    %553 = vmatprep.subr.bf16.mxu0 0
    %554 = vmatpush1.bf16.msra.mxu0 0
    %555 = vmatprep.subr.bf16.mxu0 0
    %556 = vmatpush1.bf16.msra.mxu0 0
    %557 = vmatprep.subr.bf16.mxu0 0
    %558 = vmatpush1.bf16.msra.mxu0 0
    %559 = vmatprep.subr.bf16.mxu0 0
    %560 = vmatpush1.bf16.msra.mxu0 0
    %561 = vmatprep.subr.bf16.mxu0 0
    %562 = vmatpush1.bf16.msra.mxu0 0
    %563 = vmatprep.subr.bf16.mxu0 0
    %564 = vmatpush1.bf16.msra.mxu0 0
    %565 = vmatprep.subr.bf16.mxu0 0
    %566 = vmatpush1.bf16.msra.mxu0 0
    %567 = vmatprep.subr.bf16.mxu0 0
    %568 = vmatpush1.bf16.msra.mxu0 0
    %569 = vmatprep.subr.bf16.mxu0 0
    %570 = vmatpush1.bf16.msra.mxu0 0
    %571 = vmatprep.subr.bf16.mxu0 0
    %572 = vmatpush1.bf16.msra.mxu0 0
    %573 = vmatprep.subr.bf16.mxu0 0
    %574 = vmatpush1.bf16.msra.mxu0 0
    %575 = vmatprep.subr.bf16.mxu0 0
    %576 = vmatpush1.bf16.msra.mxu0 0
    %577 = vmatprep.subr.bf16.mxu0 0
    %578 = vmatpush1.bf16.msra.mxu0 0
    %579 = vmatprep.subr.bf16.mxu0 0
    %580 = vmatpush1.bf16.msra.mxu0 0
    %581 = vmatprep.mubr.bf16.mxu0 0
    %582 = vmatmul.mubr.bf16.gmra.mrb[0].mxu0 %v457
    %v583 = vpop.f32.mrb[0].mxu0
    %v584 = vadd.f32 %v249, %v583
    %v585 = vpop.f32.mrb[0].mxu0
    %v586 = vadd.f32 %v253, %v585
    %v587 = vpop.f32.mrb[0].mxu0
    %v588 = vpop.f32.mrb[0].mxu0
    %589 = vdwg.mxu0
    %590 = vmatprep.subr.bf16.mxu0 %v476
    %591 = vmatpush1.bf16.msra.mxu0 %v473
    %592 = vmatprep.subr.bf16.mxu0 0
    %593 = vmatpush1.bf16.msra.mxu0 0
    %594 = vmatprep.subr.bf16.mxu0 0
    %595 = vmatpush1.bf16.msra.mxu0 0
    %596 = vmatprep.subr.bf16.mxu0 0
    %597 = vmatpush1.bf16.msra.mxu0 0
    %598 = vmatprep.subr.bf16.mxu0 0
    %599 = vmatpush1.bf16.msra.mxu0 0
    %600 = vmatprep.subr.bf16.mxu0 0
    %601 = vmatpush1.bf16.msra.mxu0 0
    %602 = vmatprep.subr.bf16.mxu0 0
    %603 = vmatpush1.bf16.msra.mxu0 0
    %604 = vmatprep.subr.bf16.mxu0 0
    %605 = vmatpush1.bf16.msra.mxu0 0
    %606 = vmatprep.subr.bf16.mxu0 0
    %607 = vmatpush1.bf16.msra.mxu0 0
    %608 = vmatprep.subr.bf16.mxu0 0
    %609 = vmatpush1.bf16.msra.mxu0 0
    %610 = vmatprep.subr.bf16.mxu0 0
    %611 = vmatpush1.bf16.msra.mxu0 0
    %612 = vmatprep.subr.bf16.mxu0 0
    %613 = vmatpush1.bf16.msra.mxu0 0
    %614 = vmatprep.subr.bf16.mxu0 0
    %615 = vmatpush1.bf16.msra.mxu0 0
    %616 = vmatprep.subr.bf16.mxu0 0
    %617 = vmatpush1.bf16.msra.mxu0 0
    %618 = vmatprep.subr.bf16.mxu0 0
    %619 = vmatpush1.bf16.msra.mxu0 0
    %620 = vmatprep.subr.bf16.mxu0 0
    %621 = vmatpush1.bf16.msra.mxu0 0
    %622 = vmatprep.mubr.bf16.mxu0 0
    %623 = vmatmul.mubr.bf16.gmra.mrb[0].mxu0 %v457
    %v624 = vpop.f32.mrb[0].mxu0
    %v625 = vadd.f32 %v257, %v624
    %v626 = vpop.f32.mrb[0].mxu0
    %v627 = vadd.f32 %v261, %v626
    %v628 = vpop.f32.mrb[0].mxu0
    %v629 = vpop.f32.mrb[0].mxu0
    %630 = vdwg.mxu0
    %631 = vmatprep.subr.bf16.mxu0 %v482
    %632 = vmatpush1.bf16.msra.mxu0 %v479
    %633 = vmatprep.subr.bf16.mxu0 0
    %634 = vmatpush1.bf16.msra.mxu0 0
    %635 = vmatprep.subr.bf16.mxu0 0
    %636 = vmatpush1.bf16.msra.mxu0 0
    %637 = vmatprep.subr.bf16.mxu0 0
    %638 = vmatpush1.bf16.msra.mxu0 0
    %639 = vmatprep.subr.bf16.mxu0 0
    %640 = vmatpush1.bf16.msra.mxu0 0
    %641 = vmatprep.subr.bf16.mxu0 0
    %642 = vmatpush1.bf16.msra.mxu0 0
    %643 = vmatprep.subr.bf16.mxu0 0
    %644 = vmatpush1.bf16.msra.mxu0 0
    %645 = vmatprep.subr.bf16.mxu0 0
    %646 = vmatpush1.bf16.msra.mxu0 0
    %647 = vmatprep.subr.bf16.mxu0 0
    %648 = vmatpush1.bf16.msra.mxu0 0
    %649 = vmatprep.subr.bf16.mxu0 0
    %650 = vmatpush1.bf16.msra.mxu0 0
    %651 = vmatprep.subr.bf16.mxu0 0
    %652 = vmatpush1.bf16.msra.mxu0 0
    %653 = vmatprep.subr.bf16.mxu0 0
    %654 = vmatpush1.bf16.msra.mxu0 0
    %655 = vmatprep.subr.bf16.mxu0 0
    %656 = vmatpush1.bf16.msra.mxu0 0
    %657 = vmatprep.subr.bf16.mxu0 0
    %658 = vmatpush1.bf16.msra.mxu0 0
    %659 = vmatprep.subr.bf16.mxu0 0
    %660 = vmatpush1.bf16.msra.mxu0 0
    %661 = vmatprep.subr.bf16.mxu0 0
    %662 = vmatpush1.bf16.msra.mxu0 0
    %663 = vmatprep.mubr.bf16.mxu0 0
    %664 = vmatmul.mubr.bf16.gmra.mrb[0].mxu0 %v457
    %v665 = vpop.f32.mrb[0].mxu0
    %v666 = vadd.f32 %v265, %v665
    %v667 = vpop.f32.mrb[0].mxu0
    %v668 = vadd.f32 %v269, %v667
    %v669 = vpop.f32.mrb[0].mxu0
    %v670 = vpop.f32.mrb[0].mxu0
    %671 = vdwg.mxu0
    %672 = vmatprep.subr.bf16.mxu0 %v488
    %673 = vmatpush1.bf16.msra.mxu0 %v485
    %674 = vmatprep.subr.bf16.mxu0 0
    %675 = vmatpush1.bf16.msra.mxu0 0
    %676 = vmatprep.subr.bf16.mxu0 0
    %677 = vmatpush1.bf16.msra.mxu0 0
    %678 = vmatprep.subr.bf16.mxu0 0
    %679 = vmatpush1.bf16.msra.mxu0 0
    %680 = vmatprep.subr.bf16.mxu0 0
    %681 = vmatpush1.bf16.msra.mxu0 0
    %682 = vmatprep.subr.bf16.mxu0 0
    %683 = vmatpush1.bf16.msra.mxu0 0
    %684 = vmatprep.subr.bf16.mxu0 0
    %685 = vmatpush1.bf16.msra.mxu0 0
    %686 = vmatprep.subr.bf16.mxu0 0
    %687 = vmatpush1.bf16.msra.mxu0 0
    %688 = vmatprep.subr.bf16.mxu0 0
    %689 = vmatpush1.bf16.msra.mxu0 0
    %690 = vmatprep.subr.bf16.mxu0 0
    %691 = vmatpush1.bf16.msra.mxu0 0
    %692 = vmatprep.subr.bf16.mxu0 0
    %693 = vmatpush1.bf16.msra.mxu0 0
    %694 = vmatprep.subr.bf16.mxu0 0
    %695 = vmatpush1.bf16.msra.mxu0 0
    %696 = vmatprep.subr.bf16.mxu0 0
    %697 = vmatpush1.bf16.msra.mxu0 0
    %698 = vmatprep.subr.bf16.mxu0 0
    %699 = vmatpush1.bf16.msra.mxu0 0
    %700 = vmatprep.subr.bf16.mxu0 0
    %701 = vmatpush1.bf16.msra.mxu0 0
    %702 = vmatprep.subr.bf16.mxu0 0
    %703 = vmatpush1.bf16.msra.mxu0 0
    %704 = vmatprep.mubr.bf16.mxu0 0
    %705 = vmatmul.mubr.bf16.gmra.mrb[0].mxu0 %v457
    %v706 = vpop.f32.mrb[0].mxu0
    %v707 = vadd.f32 %v273, %v706
    %v708 = vpop.f32.mrb[0].mxu0
    %v709 = vadd.f32 %v277, %v708
    %v710 = vpop.f32.mrb[0].mxu0
    %v711 = vpop.f32.mrb[0].mxu0
    %712 = vdwg.mxu0
    %713 = vmatprep.subr.bf16.mxu0 %v494
    %714 = vmatpush1.bf16.msra.mxu0 %v491
    %715 = vmatprep.subr.bf16.mxu0 0
    %716 = vmatpush1.bf16.msra.mxu0 0
    %717 = vmatprep.subr.bf16.mxu0 0
    %718 = vmatpush1.bf16.msra.mxu0 0
    %719 = vmatprep.subr.bf16.mxu0 0
    %720 = vmatpush1.bf16.msra.mxu0 0
    %721 = vmatprep.subr.bf16.mxu0 0
    %722 = vmatpush1.bf16.msra.mxu0 0
    %723 = vmatprep.subr.bf16.mxu0 0
    %724 = vmatpush1.bf16.msra.mxu0 0
    %725 = vmatprep.subr.bf16.mxu0 0
    %726 = vmatpush1.bf16.msra.mxu0 0
    %727 = vmatprep.subr.bf16.mxu0 0
    %728 = vmatpush1.bf16.msra.mxu0 0
    %729 = vmatprep.subr.bf16.mxu0 0
    %730 = vmatpush1.bf16.msra.mxu0 0
    %731 = vmatprep.subr.bf16.mxu0 0
    %732 = vmatpush1.bf16.msra.mxu0 0
    %733 = vmatprep.subr.bf16.mxu0 0
    %734 = vmatpush1.bf16.msra.mxu0 0
    %735 = vmatprep.subr.bf16.mxu0 0
    %736 = vmatpush1.bf16.msra.mxu0 0
    %737 = vmatprep.subr.bf16.mxu0 0
    %738 = vmatpush1.bf16.msra.mxu0 0
    %739 = vmatprep.subr.bf16.mxu0 0
    %740 = vmatpush1.bf16.msra.mxu0 0
    %741 = vmatprep.subr.bf16.mxu0 0
    %742 = vmatpush1.bf16.msra.mxu0 0
    %743 = vmatprep.subr.bf16.mxu0 0
    %744 = vmatpush1.bf16.msra.mxu0 0
    %745 = vmatprep.mubr.bf16.mxu0 0
    %746 = vmatmul.mubr.bf16.gmra.mrb[0].mxu0 %v457
    %v747 = vpop.f32.mrb[0].mxu0
    %v748 = vadd.f32 %v281, %v747
    %v749 = vpop.f32.mrb[0].mxu0
    %v750 = vadd.f32 %v285, %v749
    %v751 = vpop.f32.mrb[0].mxu0
    %v752 = vpop.f32.mrb[0].mxu0
    %753 = vdwg.mxu0
    %754 = vmatprep.subr.bf16.mxu0 %v500
    %755 = vmatpush1.bf16.msra.mxu0 %v497
    %756 = vmatprep.subr.bf16.mxu0 0
    %757 = vmatpush1.bf16.msra.mxu0 0
    %758 = vmatprep.subr.bf16.mxu0 0
    %759 = vmatpush1.bf16.msra.mxu0 0
    %760 = vmatprep.subr.bf16.mxu0 0
    %761 = vmatpush1.bf16.msra.mxu0 0
    %762 = vmatprep.subr.bf16.mxu0 0
    %763 = vmatpush1.bf16.msra.mxu0 0
    %764 = vmatprep.subr.bf16.mxu0 0
    %765 = vmatpush1.bf16.msra.mxu0 0
    %766 = vmatprep.subr.bf16.mxu0 0
    %767 = vmatpush1.bf16.msra.mxu0 0
    %768 = vmatprep.subr.bf16.mxu0 0
    %769 = vmatpush1.bf16.msra.mxu0 0
    %770 = vmatprep.subr.bf16.mxu0 0
    %771 = vmatpush1.bf16.msra.mxu0 0
    %772 = vmatprep.subr.bf16.mxu0 0
    %773 = vmatpush1.bf16.msra.mxu0 0
    %774 = vmatprep.subr.bf16.mxu0 0
    %775 = vmatpush1.bf16.msra.mxu0 0
    %776 = vmatprep.subr.bf16.mxu0 0
    %777 = vmatpush1.bf16.msra.mxu0 0
    %778 = vmatprep.subr.bf16.mxu0 0
    %779 = vmatpush1.bf16.msra.mxu0 0
    %780 = vmatprep.subr.bf16.mxu0 0
    %781 = vmatpush1.bf16.msra.mxu0 0
    %782 = vmatprep.subr.bf16.mxu0 0
    %783 = vmatpush1.bf16.msra.mxu0 0
    %784 = vmatprep.subr.bf16.mxu0 0
    %785 = vmatpush1.bf16.msra.mxu0 0
    %786 = vmatprep.mubr.bf16.mxu0 0
    %787 = vmatmul.mubr.bf16.gmra.mrb[0].mxu0 %v457
    %v788 = vpop.f32.mrb[0].mxu0
    %v789 = vadd.f32 %v289, %v788
    %v790 = vpop.f32.mrb[0].mxu0
    %v791 = vadd.f32 %v293, %v790
    %v792 = vpop.f32.mrb[0].mxu0
    %v793 = vpop.f32.mrb[0].mxu0
    %794 = vdwg.mxu0
    %795 = vmatprep.subr.bf16.mxu0 %v506
    %796 = vmatpush1.bf16.msra.mxu0 %v503
    %797 = vmatprep.subr.bf16.mxu0 0
    %798 = vmatpush1.bf16.msra.mxu0 0
    %799 = vmatprep.subr.bf16.mxu0 0
    %800 = vmatpush1.bf16.msra.mxu0 0
    %801 = vmatprep.subr.bf16.mxu0 0
    %802 = vmatpush1.bf16.msra.mxu0 0
    %803 = vmatprep.subr.bf16.mxu0 0
    %804 = vmatpush1.bf16.msra.mxu0 0
    %805 = vmatprep.subr.bf16.mxu0 0
    %806 = vmatpush1.bf16.msra.mxu0 0
    %807 = vmatprep.subr.bf16.mxu0 0
    %808 = vmatpush1.bf16.msra.mxu0 0
    %809 = vmatprep.subr.bf16.mxu0 0
    %810 = vmatpush1.bf16.msra.mxu0 0
    %811 = vmatprep.subr.bf16.mxu0 0
    %812 = vmatpush1.bf16.msra.mxu0 0
    %813 = vmatprep.subr.bf16.mxu0 0
    %814 = vmatpush1.bf16.msra.mxu0 0
    %815 = vmatprep.subr.bf16.mxu0 0
    %816 = vmatpush1.bf16.msra.mxu0 0
    %817 = vmatprep.subr.bf16.mxu0 0
    %818 = vmatpush1.bf16.msra.mxu0 0
    %819 = vmatprep.subr.bf16.mxu0 0
    %820 = vmatpush1.bf16.msra.mxu0 0
    %821 = vmatprep.subr.bf16.mxu0 0
    %822 = vmatpush1.bf16.msra.mxu0 0
    %823 = vmatprep.subr.bf16.mxu0 0
    %824 = vmatpush1.bf16.msra.mxu0 0
    %825 = vmatprep.subr.bf16.mxu0 0
    %826 = vmatpush1.bf16.msra.mxu0 0
    %827 = vmatprep.mubr.bf16.mxu0 0
    %828 = vmatmul.mubr.bf16.gmra.mrb[0].mxu0 %v457
    %v829 = vpop.f32.mrb[0].mxu0
    %v830 = vadd.f32 %v297, %v829
    %v831 = vpop.f32.mrb[0].mxu0
    %v832 = vadd.f32 %v301, %v831
    %v833 = vpop.f32.mrb[0].mxu0
    %v834 = vpop.f32.mrb[0].mxu0
    %835 = vdwg.mxu0
    %v836 = vpack.c.bf16 %v543, %v543
    %v837 = vpack.c.bf16 %v545, %v545
    %v838 = vpack.c.bf16 %v584, %v584
    %v839 = vpack.c.bf16 %v586, %v586
    %v840 = vpack.c.bf16 %v625, %v625
    %v841 = vpack.c.bf16 %v627, %v627
    %v842 = vpack.c.bf16 %v666, %v666
    %v843 = vpack.c.bf16 %v668, %v668
    %v844 = vpack.c.bf16 %v707, %v707
    %v845 = vpack.c.bf16 %v709, %v709
    %v846 = vpack.c.bf16 %v748, %v748
    %v847 = vpack.c.bf16 %v750, %v750
    %v848 = vpack.c.bf16 %v789, %v789
    %v849 = vpack.c.bf16 %v791, %v791
    %v850 = vpack.c.bf16 %v830, %v830
    %v851 = vpack.c.bf16 %v832, %v832
    %v852 = vld [vmem:[#allocation8] sm:$0xff]
    %v853 = vld [vmem:[#allocation8 + $0x8] sm:$0xff]
    %v854 = vld [vmem:[#allocation8 + $0x10] sm:$0xff]
    %v855 = vld [vmem:[#allocation8 + $0x18] sm:$0xff]
    %v856 = vld [vmem:[#allocation8 + $0x20] sm:$0xff]
    %v857 = vld [vmem:[#allocation8 + $0x28] sm:$0xff]
    %v858 = vld [vmem:[#allocation8 + $0x30] sm:$0xff]
    %v859 = vld [vmem:[#allocation8 + $0x38] sm:$0xff]
    %v860 = vld [vmem:[#allocation8 + $0x40] sm:$0xff]
    %v861 = vld [vmem:[#allocation8 + $0x48] sm:$0xff]
    %v862 = vld [vmem:[#allocation8 + $0x50] sm:$0xff]
    %v863 = vld [vmem:[#allocation8 + $0x58] sm:$0xff]
    %v864 = vld [vmem:[#allocation8 + $0x60] sm:$0xff]
    %v865 = vld [vmem:[#allocation8 + $0x68] sm:$0xff]
    %v866 = vld [vmem:[#allocation8 + $0x70] sm:$0xff]
    %v867 = vld [vmem:[#allocation8 + $0x78] sm:$0xff]
    %v868 = vld [vmem:[#allocation8 + $0x80] sm:$0xff]
    %v869 = vld [vmem:[#allocation8 + $0x88] sm:$0xff]
    %v870 = vld [vmem:[#allocation8 + $0x90] sm:$0xff]
    %v871 = vld [vmem:[#allocation8 + $0x98] sm:$0xff]
    %v872 = vld [vmem:[#allocation8 + $0xa0] sm:$0xff]
    %v873 = vld [vmem:[#allocation8 + $0xa8] sm:$0xff]
    %v874 = vld [vmem:[#allocation8 + $0xb0] sm:$0xff]
    %v875 = vld [vmem:[#allocation8 + $0xb8] sm:$0xff]
    %v876 = vld [vmem:[#allocation8 + $0xc0] sm:$0xff]
    %v877 = vld [vmem:[#allocation8 + $0xc8] sm:$0xff]
    %v878 = vld [vmem:[#allocation8 + $0xd0] sm:$0xff]
    %v879 = vld [vmem:[#allocation8 + $0xd8] sm:$0xff]
    %v880 = vld [vmem:[#allocation8 + $0xe0] sm:$0xff]
    %v881 = vld [vmem:[#allocation8 + $0xe8] sm:$0xff]
    %v882 = vld [vmem:[#allocation8 + $0xf0] sm:$0xff]
    %v883 = vld [vmem:[#allocation8 + $0xf8] sm:$0xff]
    %v884 = vld [vmem:[#allocation8 + $0x100] sm:$0xff]
    %v885 = vld [vmem:[#allocation8 + $0x108] sm:$0xff]
    %v886 = vld [vmem:[#allocation8 + $0x110] sm:$0xff]
    %v887 = vld [vmem:[#allocation8 + $0x118] sm:$0xff]
    %v888 = vld [vmem:[#allocation8 + $0x120] sm:$0xff]
    %v889 = vld [vmem:[#allocation8 + $0x128] sm:$0xff]
    %v890 = vld [vmem:[#allocation8 + $0x130] sm:$0xff]
    %v891 = vld [vmem:[#allocation8 + $0x138] sm:$0xff]
    %v892 = vld [vmem:[#allocation8 + $0x140] sm:$0xff]
    %v893 = vld [vmem:[#allocation8 + $0x148] sm:$0xff]
    %v894 = vld [vmem:[#allocation8 + $0x150] sm:$0xff]
    %v895 = vld [vmem:[#allocation8 + $0x158] sm:$0xff]
    %v896 = vld [vmem:[#allocation8 + $0x160] sm:$0xff]
    %v897 = vld [vmem:[#allocation8 + $0x168] sm:$0xff]
    %v898 = vld [vmem:[#allocation8 + $0x170] sm:$0xff]
    %v899 = vld [vmem:[#allocation8 + $0x178] sm:$0xff]
    %v900 = vld [vmem:[#allocation8 + $0x180] sm:$0xff]
    %v901 = vld [vmem:[#allocation8 + $0x188] sm:$0xff]
    %v902 = vld [vmem:[#allocation8 + $0x190] sm:$0xff]
    %v903 = vld [vmem:[#allocation8 + $0x198] sm:$0xff]
    %v904 = vld [vmem:[#allocation8 + $0x1a0] sm:$0xff]
    %v905 = vld [vmem:[#allocation8 + $0x1a8] sm:$0xff]
    %v906 = vld [vmem:[#allocation8 + $0x1b0] sm:$0xff]
    %v907 = vld [vmem:[#allocation8 + $0x1b8] sm:$0xff]
    %v908 = vld [vmem:[#allocation8 + $0x1c0] sm:$0xff]
    %v909 = vld [vmem:[#allocation8 + $0x1c8] sm:$0xff]
    %v910 = vld [vmem:[#allocation8 + $0x1d0] sm:$0xff]
    %v911 = vld [vmem:[#allocation8 + $0x1d8] sm:$0xff]
    %v912 = vld [vmem:[#allocation8 + $0x1e0] sm:$0xff]
    %v913 = vld [vmem:[#allocation8 + $0x1e8] sm:$0xff]
    %v914 = vld [vmem:[#allocation8 + $0x1f0] sm:$0xff]
    %v915 = vld [vmem:[#allocation8 + $0x1f8] sm:$0xff]
    %v916 = vld [vmem:[#allocation8 + $0x200] sm:$0xff]
    %v917 = vld [vmem:[#allocation8 + $0x208] sm:$0xff]
    %v918 = vld [vmem:[#allocation8 + $0x210] sm:$0xff]
    %v919 = vld [vmem:[#allocation8 + $0x218] sm:$0xff]
    %v920 = vld [vmem:[#allocation8 + $0x220] sm:$0xff]
    %v921 = vld [vmem:[#allocation8 + $0x228] sm:$0xff]
    %v922 = vld [vmem:[#allocation8 + $0x230] sm:$0xff]
    %v923 = vld [vmem:[#allocation8 + $0x238] sm:$0xff]
    %v924 = vld [vmem:[#allocation8 + $0x240] sm:$0xff]
    %v925 = vld [vmem:[#allocation8 + $0x248] sm:$0xff]
    %v926 = vld [vmem:[#allocation8 + $0x250] sm:$0xff]
    %v927 = vld [vmem:[#allocation8 + $0x258] sm:$0xff]
    %v928 = vld [vmem:[#allocation8 + $0x260] sm:$0xff]
    %v929 = vld [vmem:[#allocation8 + $0x268] sm:$0xff]
    %v930 = vld [vmem:[#allocation8 + $0x270] sm:$0xff]
    %v931 = vld [vmem:[#allocation8 + $0x278] sm:$0xff]
    %v932 = vld [vmem:[#allocation8 + $0x280] sm:$0xff]
    %v933 = vld [vmem:[#allocation8 + $0x288] sm:$0xff]
    %v934 = vld [vmem:[#allocation8 + $0x290] sm:$0xff]
    %v935 = vld [vmem:[#allocation8 + $0x298] sm:$0xff]
    %v936 = vld [vmem:[#allocation8 + $0x2a0] sm:$0xff]
    %v937 = vld [vmem:[#allocation8 + $0x2a8] sm:$0xff]
    %v938 = vld [vmem:[#allocation8 + $0x2b0] sm:$0xff]
    %v939 = vld [vmem:[#allocation8 + $0x2b8] sm:$0xff]
    %v940 = vld [vmem:[#allocation8 + $0x2c0] sm:$0xff]
    %v941 = vld [vmem:[#allocation8 + $0x2c8] sm:$0xff]
    %v942 = vld [vmem:[#allocation8 + $0x2d0] sm:$0xff]
    %v943 = vld [vmem:[#allocation8 + $0x2d8] sm:$0xff]
    %v944 = vld [vmem:[#allocation8 + $0x2e0] sm:$0xff]
    %v945 = vld [vmem:[#allocation8 + $0x2e8] sm:$0xff]
    %v946 = vld [vmem:[#allocation8 + $0x2f0] sm:$0xff]
    %v947 = vld [vmem:[#allocation8 + $0x2f8] sm:$0xff]
    %v948 = vld [vmem:[#allocation8 + $0x300] sm:$0xff]
    %v949 = vld [vmem:[#allocation8 + $0x308] sm:$0xff]
    %v950 = vld [vmem:[#allocation8 + $0x310] sm:$0xff]
    %v951 = vld [vmem:[#allocation8 + $0x318] sm:$0xff]
    %v952 = vld [vmem:[#allocation8 + $0x320] sm:$0xff]
    %v953 = vld [vmem:[#allocation8 + $0x328] sm:$0xff]
    %v954 = vld [vmem:[#allocation8 + $0x330] sm:$0xff]
    %v955 = vld [vmem:[#allocation8 + $0x338] sm:$0xff]
    %v956 = vld [vmem:[#allocation8 + $0x340] sm:$0xff]
    %v957 = vld [vmem:[#allocation8 + $0x348] sm:$0xff]
    %v958 = vld [vmem:[#allocation8 + $0x350] sm:$0xff]
    %v959 = vld [vmem:[#allocation8 + $0x358] sm:$0xff]
    %v960 = vld [vmem:[#allocation8 + $0x360] sm:$0xff]
    %v961 = vld [vmem:[#allocation8 + $0x368] sm:$0xff]
    %v962 = vld [vmem:[#allocation8 + $0x370] sm:$0xff]
    %v963 = vld [vmem:[#allocation8 + $0x378] sm:$0xff]
    %v964 = vld [vmem:[#allocation8 + $0x380] sm:$0xff]
    %v965 = vld [vmem:[#allocation8 + $0x388] sm:$0xff]
    %v966 = vld [vmem:[#allocation8 + $0x390] sm:$0xff]
    %v967 = vld [vmem:[#allocation8 + $0x398] sm:$0xff]
    %v968 = vld [vmem:[#allocation8 + $0x3a0] sm:$0xff]
    %v969 = vld [vmem:[#allocation8 + $0x3a8] sm:$0xff]
    %v970 = vld [vmem:[#allocation8 + $0x3b0] sm:$0xff]
    %v971 = vld [vmem:[#allocation8 + $0x3b8] sm:$0xff]
    %v972 = vld [vmem:[#allocation8 + $0x3c0] sm:$0xff]
    %v973 = vld [vmem:[#allocation8 + $0x3c8] sm:$0xff]
    %v974 = vld [vmem:[#allocation8 + $0x3d0] sm:$0xff]
    %v975 = vld [vmem:[#allocation8 + $0x3d8] sm:$0xff]
    %v976 = vld [vmem:[#allocation8 + $0x3e0] sm:$0xff]
    %v977 = vld [vmem:[#allocation8 + $0x3e8] sm:$0xff]
    %v978 = vld [vmem:[#allocation8 + $0x3f0] sm:$0xff]
    %v979 = vld [vmem:[#allocation8 + $0x3f8] sm:$0xff]
    %v980 = vld [vmem:[#allocation8 + $0x400] sm:$0xff]
    %v981 = vld [vmem:[#allocation8 + $0x408] sm:$0xff]
    %v982 = vld [vmem:[#allocation8 + $0x410] sm:$0xff]
    %v983 = vld [vmem:[#allocation8 + $0x418] sm:$0xff]
    %v984 = vld [vmem:[#allocation8 + $0x420] sm:$0xff]
    %v985 = vld [vmem:[#allocation8 + $0x428] sm:$0xff]
    %v986 = vld [vmem:[#allocation8 + $0x430] sm:$0xff]
    %v987 = vld [vmem:[#allocation8 + $0x438] sm:$0xff]
    %v988 = vld [vmem:[#allocation8 + $0x440] sm:$0xff]
    %v989 = vld [vmem:[#allocation8 + $0x448] sm:$0xff]
    %v990 = vld [vmem:[#allocation8 + $0x450] sm:$0xff]
    %v991 = vld [vmem:[#allocation8 + $0x458] sm:$0xff]
    %v992 = vld [vmem:[#allocation8 + $0x460] sm:$0xff]
    %v993 = vld [vmem:[#allocation8 + $0x468] sm:$0xff]
    %v994 = vld [vmem:[#allocation8 + $0x470] sm:$0xff]
    %v995 = vld [vmem:[#allocation8 + $0x478] sm:$0xff]
    %v996 = vld [vmem:[#allocation8 + $0x480] sm:$0xff]
    %v997 = vld [vmem:[#allocation8 + $0x488] sm:$0xff]
    %v998 = vld [vmem:[#allocation8 + $0x490] sm:$0xff]
    %v999 = vld [vmem:[#allocation8 + $0x498] sm:$0xff]
    %v1000 = vld [vmem:[#allocation8 + $0x4a0] sm:$0xff]
    %v1001 = vld [vmem:[#allocation8 + $0x4a8] sm:$0xff]
    %v1002 = vld [vmem:[#allocation8 + $0x4b0] sm:$0xff]
    %v1003 = vld [vmem:[#allocation8 + $0x4b8] sm:$0xff]
    %v1004 = vld [vmem:[#allocation8 + $0x4c0] sm:$0xff]
    %v1005 = vld [vmem:[#allocation8 + $0x4c8] sm:$0xff]
    %v1006 = vld [vmem:[#allocation8 + $0x4d0] sm:$0xff]
    %v1007 = vld [vmem:[#allocation8 + $0x4d8] sm:$0xff]
    %v1008 = vld [vmem:[#allocation8 + $0x4e0] sm:$0xff]
    %v1009 = vld [vmem:[#allocation8 + $0x4e8] sm:$0xff]
    %v1010 = vld [vmem:[#allocation8 + $0x4f0] sm:$0xff]
    %v1011 = vld [vmem:[#allocation8 + $0x4f8] sm:$0xff]
    %v1012 = vld [vmem:[#allocation8 + $0x500] sm:$0xff]
    %v1013 = vld [vmem:[#allocation8 + $0x508] sm:$0xff]
    %v1014 = vld [vmem:[#allocation8 + $0x510] sm:$0xff]
    %v1015 = vld [vmem:[#allocation8 + $0x518] sm:$0xff]
    %v1016 = vld [vmem:[#allocation8 + $0x520] sm:$0xff]
    %v1017 = vld [vmem:[#allocation8 + $0x528] sm:$0xff]
    %v1018 = vld [vmem:[#allocation8 + $0x530] sm:$0xff]
    %v1019 = vld [vmem:[#allocation8 + $0x538] sm:$0xff]
    %v1020 = vld [vmem:[#allocation8 + $0x540] sm:$0xff]
    %v1021 = vld [vmem:[#allocation8 + $0x548] sm:$0xff]
    %v1022 = vld [vmem:[#allocation8 + $0x550] sm:$0xff]
    %v1023 = vld [vmem:[#allocation8 + $0x558] sm:$0xff]
    %v1024 = vld [vmem:[#allocation8 + $0x560] sm:$0xff]
    %v1025 = vld [vmem:[#allocation8 + $0x568] sm:$0xff]
    %v1026 = vld [vmem:[#allocation8 + $0x570] sm:$0xff]
    %v1027 = vld [vmem:[#allocation8 + $0x578] sm:$0xff]
    %v1028 = vld [vmem:[#allocation8 + $0x580] sm:$0xff]
    %v1029 = vld [vmem:[#allocation8 + $0x588] sm:$0xff]
    %v1030 = vld [vmem:[#allocation8 + $0x590] sm:$0xff]
    %v1031 = vld [vmem:[#allocation8 + $0x598] sm:$0xff]
    %v1032 = vld [vmem:[#allocation8 + $0x5a0] sm:$0xff]
    %v1033 = vld [vmem:[#allocation8 + $0x5a8] sm:$0xff]
    %v1034 = vld [vmem:[#allocation8 + $0x5b0] sm:$0xff]
    %v1035 = vld [vmem:[#allocation8 + $0x5b8] sm:$0xff]
    %v1036 = vld [vmem:[#allocation8 + $0x5c0] sm:$0xff]
    %v1037 = vld [vmem:[#allocation8 + $0x5c8] sm:$0xff]
    %v1038 = vld [vmem:[#allocation8 + $0x5d0] sm:$0xff]
    %v1039 = vld [vmem:[#allocation8 + $0x5d8] sm:$0xff]
    %v1040 = vld [vmem:[#allocation8 + $0x5e0] sm:$0xff]
    %v1041 = vld [vmem:[#allocation8 + $0x5e8] sm:$0xff]
    %v1042 = vld [vmem:[#allocation8 + $0x5f0] sm:$0xff]
    %v1043 = vld [vmem:[#allocation8 + $0x5f8] sm:$0xff]
    %v1044 = vld [vmem:[#allocation8 + $0x600] sm:$0xff]
    %v1045 = vld [vmem:[#allocation8 + $0x608] sm:$0xff]
    %v1046 = vld [vmem:[#allocation8 + $0x610] sm:$0xff]
    %v1047 = vld [vmem:[#allocation8 + $0x618] sm:$0xff]
    %v1048 = vld [vmem:[#allocation8 + $0x620] sm:$0xff]
    %v1049 = vld [vmem:[#allocation8 + $0x628] sm:$0xff]
    %v1050 = vld [vmem:[#allocation8 + $0x630] sm:$0xff]
    %v1051 = vld [vmem:[#allocation8 + $0x638] sm:$0xff]
    %v1052 = vld [vmem:[#allocation8 + $0x640] sm:$0xff]
    %v1053 = vld [vmem:[#allocation8 + $0x648] sm:$0xff]
    %v1054 = vld [vmem:[#allocation8 + $0x650] sm:$0xff]
    %v1055 = vld [vmem:[#allocation8 + $0x658] sm:$0xff]
    %v1056 = vld [vmem:[#allocation8 + $0x660] sm:$0xff]
    %v1057 = vld [vmem:[#allocation8 + $0x668] sm:$0xff]
    %v1058 = vld [vmem:[#allocation8 + $0x670] sm:$0xff]
    %v1059 = vld [vmem:[#allocation8 + $0x678] sm:$0xff]
    %v1060 = vld [vmem:[#allocation8 + $0x680] sm:$0xff]
    %v1061 = vld [vmem:[#allocation8 + $0x688] sm:$0xff]
    %v1062 = vld [vmem:[#allocation8 + $0x690] sm:$0xff]
    %v1063 = vld [vmem:[#allocation8 + $0x698] sm:$0xff]
    %v1064 = vld [vmem:[#allocation8 + $0x6a0] sm:$0xff]
    %v1065 = vld [vmem:[#allocation8 + $0x6a8] sm:$0xff]
    %v1066 = vld [vmem:[#allocation8 + $0x6b0] sm:$0xff]
    %v1067 = vld [vmem:[#allocation8 + $0x6b8] sm:$0xff]
    %v1068 = vld [vmem:[#allocation8 + $0x6c0] sm:$0xff]
    %v1069 = vld [vmem:[#allocation8 + $0x6c8] sm:$0xff]
    %v1070 = vld [vmem:[#allocation8 + $0x6d0] sm:$0xff]
    %v1071 = vld [vmem:[#allocation8 + $0x6d8] sm:$0xff]
    %v1072 = vld [vmem:[#allocation8 + $0x6e0] sm:$0xff]
    %v1073 = vld [vmem:[#allocation8 + $0x6e8] sm:$0xff]
    %v1074 = vld [vmem:[#allocation8 + $0x6f0] sm:$0xff]
    %v1075 = vld [vmem:[#allocation8 + $0x6f8] sm:$0xff]
    %v1076 = vld [vmem:[#allocation8 + $0x700] sm:$0xff]
    %v1077 = vld [vmem:[#allocation8 + $0x708] sm:$0xff]
    %v1078 = vld [vmem:[#allocation8 + $0x710] sm:$0xff]
    %v1079 = vld [vmem:[#allocation8 + $0x718] sm:$0xff]
    %v1080 = vld [vmem:[#allocation8 + $0x720] sm:$0xff]
    %v1081 = vld [vmem:[#allocation8 + $0x728] sm:$0xff]
    %v1082 = vld [vmem:[#allocation8 + $0x730] sm:$0xff]
    %v1083 = vld [vmem:[#allocation8 + $0x738] sm:$0xff]
    %v1084 = vld [vmem:[#allocation8 + $0x740] sm:$0xff]
    %v1085 = vld [vmem:[#allocation8 + $0x748] sm:$0xff]
    %v1086 = vld [vmem:[#allocation8 + $0x750] sm:$0xff]
    %v1087 = vld [vmem:[#allocation8 + $0x758] sm:$0xff]
    %v1088 = vld [vmem:[#allocation8 + $0x760] sm:$0xff]
    %v1089 = vld [vmem:[#allocation8 + $0x768] sm:$0xff]
    %v1090 = vld [vmem:[#allocation8 + $0x770] sm:$0xff]
    %v1091 = vld [vmem:[#allocation8 + $0x778] sm:$0xff]
    %v1092 = vld [vmem:[#allocation8 + $0x780] sm:$0xff]
    %v1093 = vld [vmem:[#allocation8 + $0x788] sm:$0xff]
    %v1094 = vld [vmem:[#allocation8 + $0x790] sm:$0xff]
    %v1095 = vld [vmem:[#allocation8 + $0x798] sm:$0xff]
    %v1096 = vld [vmem:[#allocation8 + $0x7a0] sm:$0xff]
    %v1097 = vld [vmem:[#allocation8 + $0x7a8] sm:$0xff]
    %v1098 = vld [vmem:[#allocation8 + $0x7b0] sm:$0xff]
    %v1099 = vld [vmem:[#allocation8 + $0x7b8] sm:$0xff]
    %v1100 = vld [vmem:[#allocation8 + $0x7c0] sm:$0xff]
    %v1101 = vld [vmem:[#allocation8 + $0x7c8] sm:$0xff]
    %v1102 = vld [vmem:[#allocation8 + $0x7d0] sm:$0xff]
    %v1103 = vld [vmem:[#allocation8 + $0x7d8] sm:$0xff]
    %v1104 = vld [vmem:[#allocation8 + $0x7e0] sm:$0xff]
    %v1105 = vld [vmem:[#allocation8 + $0x7e8] sm:$0xff]
    %v1106 = vld [vmem:[#allocation8 + $0x7f0] sm:$0xff]
    %v1107 = vld [vmem:[#allocation8 + $0x7f8] sm:$0xff]
    %v1108 = vld [vmem:[#allocation8 + $0x800] sm:$0xff]
    %v1109 = vld [vmem:[#allocation8 + $0x808] sm:$0xff]
    %v1110 = vld [vmem:[#allocation8 + $0x810] sm:$0xff]
    %v1111 = vld [vmem:[#allocation8 + $0x818] sm:$0xff]
    %v1112 = vld [vmem:[#allocation8 + $0x820] sm:$0xff]
    %v1113 = vld [vmem:[#allocation8 + $0x828] sm:$0xff]
    %v1114 = vld [vmem:[#allocation8 + $0x830] sm:$0xff]
    %v1115 = vld [vmem:[#allocation8 + $0x838] sm:$0xff]
    %v1116 = vld [vmem:[#allocation8 + $0x840] sm:$0xff]
    %v1117 = vld [vmem:[#allocation8 + $0x848] sm:$0xff]
    %v1118 = vld [vmem:[#allocation8 + $0x850] sm:$0xff]
    %v1119 = vld [vmem:[#allocation8 + $0x858] sm:$0xff]
    %v1120 = vld [vmem:[#allocation8 + $0x860] sm:$0xff]
    %v1121 = vld [vmem:[#allocation8 + $0x868] sm:$0xff]
    %v1122 = vld [vmem:[#allocation8 + $0x870] sm:$0xff]
    %v1123 = vld [vmem:[#allocation8 + $0x878] sm:$0xff]
    %v1124 = vld [vmem:[#allocation8 + $0x880] sm:$0xff]
    %v1125 = vld [vmem:[#allocation8 + $0x888] sm:$0xff]
    %v1126 = vld [vmem:[#allocation8 + $0x890] sm:$0xff]
    %v1127 = vld [vmem:[#allocation8 + $0x898] sm:$0xff]
    %v1128 = vld [vmem:[#allocation8 + $0x8a0] sm:$0xff]
    %v1129 = vld [vmem:[#allocation8 + $0x8a8] sm:$0xff]
    %v1130 = vld [vmem:[#allocation8 + $0x8b0] sm:$0xff]
    %v1131 = vld [vmem:[#allocation8 + $0x8b8] sm:$0xff]
    %v1132 = vld [vmem:[#allocation8 + $0x8c0] sm:$0xff]
    %v1133 = vld [vmem:[#allocation8 + $0x8c8] sm:$0xff]
    %v1134 = vld [vmem:[#allocation8 + $0x8d0] sm:$0xff]
    %v1135 = vld [vmem:[#allocation8 + $0x8d8] sm:$0xff]
    %v1136 = vld [vmem:[#allocation8 + $0x8e0] sm:$0xff]
    %v1137 = vld [vmem:[#allocation8 + $0x8e8] sm:$0xff]
    %v1138 = vld [vmem:[#allocation8 + $0x8f0] sm:$0xff]
    %v1139 = vld [vmem:[#allocation8 + $0x8f8] sm:$0xff]
    %v1140 = vld [vmem:[#allocation8 + $0x900] sm:$0xff]
    %v1141 = vld [vmem:[#allocation8 + $0x908] sm:$0xff]
    %v1142 = vld [vmem:[#allocation8 + $0x910] sm:$0xff]
    %v1143 = vld [vmem:[#allocation8 + $0x918] sm:$0xff]
    %v1144 = vld [vmem:[#allocation8 + $0x920] sm:$0xff]
    %v1145 = vld [vmem:[#allocation8 + $0x928] sm:$0xff]
    %v1146 = vld [vmem:[#allocation8 + $0x930] sm:$0xff]
    %v1147 = vld [vmem:[#allocation8 + $0x938] sm:$0xff]
    %v1148 = vld [vmem:[#allocation8 + $0x940] sm:$0xff]
    %v1149 = vld [vmem:[#allocation8 + $0x948] sm:$0xff]
    %v1150 = vld [vmem:[#allocation8 + $0x950] sm:$0xff]
    %v1151 = vld [vmem:[#allocation8 + $0x958] sm:$0xff]
    %v1152 = vld [vmem:[#allocation8 + $0x960] sm:$0xff]
    %v1153 = vld [vmem:[#allocation8 + $0x968] sm:$0xff]
    %v1154 = vld [vmem:[#allocation8 + $0x970] sm:$0xff]
    %v1155 = vld [vmem:[#allocation8 + $0x978] sm:$0xff]
    %v1156 = vld [vmem:[#allocation8 + $0x980] sm:$0xff]
    %v1157 = vld [vmem:[#allocation8 + $0x988] sm:$0xff]
    %v1158 = vld [vmem:[#allocation8 + $0x990] sm:$0xff]
    %v1159 = vld [vmem:[#allocation8 + $0x998] sm:$0xff]
    %v1160 = vld [vmem:[#allocation8 + $0x9a0] sm:$0xff]
    %v1161 = vld [vmem:[#allocation8 + $0x9a8] sm:$0xff]
    %v1162 = vld [vmem:[#allocation8 + $0x9b0] sm:$0xff]
    %v1163 = vld [vmem:[#allocation8 + $0x9b8] sm:$0xff]
    %v1164 = vld [vmem:[#allocation8 + $0x9c0] sm:$0xff]
    %v1165 = vld [vmem:[#allocation8 + $0x9c8] sm:$0xff]
    %v1166 = vld [vmem:[#allocation8 + $0x9d0] sm:$0xff]
    %v1167 = vld [vmem:[#allocation8 + $0x9d8] sm:$0xff]
    %v1168 = vld [vmem:[#allocation8 + $0x9e0] sm:$0xff]
    %v1169 = vld [vmem:[#allocation8 + $0x9e8] sm:$0xff]
    %v1170 = vld [vmem:[#allocation8 + $0x9f0] sm:$0xff]
    %v1171 = vld [vmem:[#allocation8 + $0x9f8] sm:$0xff]
    %v1172 = vld [vmem:[#allocation8 + $0xa00] sm:$0xff]
    %v1173 = vld [vmem:[#allocation8 + $0xa08] sm:$0xff]
    %v1174 = vld [vmem:[#allocation8 + $0xa10] sm:$0xff]
    %v1175 = vld [vmem:[#allocation8 + $0xa18] sm:$0xff]
    %v1176 = vld [vmem:[#allocation8 + $0xa20] sm:$0xff]
    %v1177 = vld [vmem:[#allocation8 + $0xa28] sm:$0xff]
    %v1178 = vld [vmem:[#allocation8 + $0xa30] sm:$0xff]
    %v1179 = vld [vmem:[#allocation8 + $0xa38] sm:$0xff]
    %v1180 = vld [vmem:[#allocation8 + $0xa40] sm:$0xff]
    %v1181 = vld [vmem:[#allocation8 + $0xa48] sm:$0xff]
    %v1182 = vld [vmem:[#allocation8 + $0xa50] sm:$0xff]
    %v1183 = vld [vmem:[#allocation8 + $0xa58] sm:$0xff]
    %v1184 = vld [vmem:[#allocation8 + $0xa60] sm:$0xff]
    %v1185 = vld [vmem:[#allocation8 + $0xa68] sm:$0xff]
    %v1186 = vld [vmem:[#allocation8 + $0xa70] sm:$0xff]
    %v1187 = vld [vmem:[#allocation8 + $0xa78] sm:$0xff]
    %v1188 = vld [vmem:[#allocation8 + $0xa80] sm:$0xff]
    %v1189 = vld [vmem:[#allocation8 + $0xa88] sm:$0xff]
    %v1190 = vld [vmem:[#allocation8 + $0xa90] sm:$0xff]
    %v1191 = vld [vmem:[#allocation8 + $0xa98] sm:$0xff]
    %v1192 = vld [vmem:[#allocation8 + $0xaa0] sm:$0xff]
    %v1193 = vld [vmem:[#allocation8 + $0xaa8] sm:$0xff]
    %v1194 = vld [vmem:[#allocation8 + $0xab0] sm:$0xff]
    %v1195 = vld [vmem:[#allocation8 + $0xab8] sm:$0xff]
    %v1196 = vld [vmem:[#allocation8 + $0xac0] sm:$0xff]
    %v1197 = vld [vmem:[#allocation8 + $0xac8] sm:$0xff]
    %v1198 = vld [vmem:[#allocation8 + $0xad0] sm:$0xff]
    %v1199 = vld [vmem:[#allocation8 + $0xad8] sm:$0xff]
    %v1200 = vld [vmem:[#allocation8 + $0xae0] sm:$0xff]
    %v1201 = vld [vmem:[#allocation8 + $0xae8] sm:$0xff]
    %v1202 = vld [vmem:[#allocation8 + $0xaf0] sm:$0xff]
    %v1203 = vld [vmem:[#allocation8 + $0xaf8] sm:$0xff]
    %v1204 = vld [vmem:[#allocation8 + $0xb00] sm:$0xff]
    %v1205 = vld [vmem:[#allocation8 + $0xb08] sm:$0xff]
    %v1206 = vld [vmem:[#allocation8 + $0xb10] sm:$0xff]
    %v1207 = vld [vmem:[#allocation8 + $0xb18] sm:$0xff]
    %v1208 = vld [vmem:[#allocation8 + $0xb20] sm:$0xff]
    %v1209 = vld [vmem:[#allocation8 + $0xb28] sm:$0xff]
    %v1210 = vld [vmem:[#allocation8 + $0xb30] sm:$0xff]
    %v1211 = vld [vmem:[#allocation8 + $0xb38] sm:$0xff]
    %v1212 = vld [vmem:[#allocation8 + $0xb40] sm:$0xff]
    %v1213 = vld [vmem:[#allocation8 + $0xb48] sm:$0xff]
    %v1214 = vld [vmem:[#allocation8 + $0xb50] sm:$0xff]
    %v1215 = vld [vmem:[#allocation8 + $0xb58] sm:$0xff]
    %v1216 = vld [vmem:[#allocation8 + $0xb60] sm:$0xff]
    %v1217 = vld [vmem:[#allocation8 + $0xb68] sm:$0xff]
    %v1218 = vld [vmem:[#allocation8 + $0xb70] sm:$0xff]
    %v1219 = vld [vmem:[#allocation8 + $0xb78] sm:$0xff]
    %v1220 = vld [vmem:[#allocation8 + $0xb80] sm:$0xff]
    %v1221 = vld [vmem:[#allocation8 + $0xb88] sm:$0xff]
    %v1222 = vld [vmem:[#allocation8 + $0xb90] sm:$0xff]
    %v1223 = vld [vmem:[#allocation8 + $0xb98] sm:$0xff]
    %v1224 = vld [vmem:[#allocation8 + $0xba0] sm:$0xff]
    %v1225 = vld [vmem:[#allocation8 + $0xba8] sm:$0xff]
    %v1226 = vld [vmem:[#allocation8 + $0xbb0] sm:$0xff]
    %v1227 = vld [vmem:[#allocation8 + $0xbb8] sm:$0xff]
    %v1228 = vld [vmem:[#allocation8 + $0xbc0] sm:$0xff]
    %v1229 = vld [vmem:[#allocation8 + $0xbc8] sm:$0xff]
    %v1230 = vld [vmem:[#allocation8 + $0xbd0] sm:$0xff]
    %v1231 = vld [vmem:[#allocation8 + $0xbd8] sm:$0xff]
    %v1232 = vld [vmem:[#allocation8 + $0xbe0] sm:$0xff]
    %v1233 = vld [vmem:[#allocation8 + $0xbe8] sm:$0xff]
    %v1234 = vld [vmem:[#allocation8 + $0xbf0] sm:$0xff]
    %v1235 = vld [vmem:[#allocation8 + $0xbf8] sm:$0xff]
    %v1236 = vld [vmem:[#allocation8 + $0xc00] sm:$0xff]
    %v1237 = vld [vmem:[#allocation8 + $0xc08] sm:$0xff]
    %v1238 = vld [vmem:[#allocation8 + $0xc10] sm:$0xff]
    %v1239 = vld [vmem:[#allocation8 + $0xc18] sm:$0xff]
    %v1240 = vld [vmem:[#allocation8 + $0xc20] sm:$0xff]
    %v1241 = vld [vmem:[#allocation8 + $0xc28] sm:$0xff]
    %v1242 = vld [vmem:[#allocation8 + $0xc30] sm:$0xff]
    %v1243 = vld [vmem:[#allocation8 + $0xc38] sm:$0xff]
    %v1244 = vld [vmem:[#allocation8 + $0xc40] sm:$0xff]
    %v1245 = vld [vmem:[#allocation8 + $0xc48] sm:$0xff]
    %v1246 = vld [vmem:[#allocation8 + $0xc50] sm:$0xff]
    %v1247 = vld [vmem:[#allocation8 + $0xc58] sm:$0xff]
    %v1248 = vld [vmem:[#allocation8 + $0xc60] sm:$0xff]
    %v1249 = vld [vmem:[#allocation8 + $0xc68] sm:$0xff]
    %v1250 = vld [vmem:[#allocation8 + $0xc70] sm:$0xff]
    %v1251 = vld [vmem:[#allocation8 + $0xc78] sm:$0xff]
    %v1252 = vld [vmem:[#allocation8 + $0xc80] sm:$0xff]
    %v1253 = vld [vmem:[#allocation8 + $0xc88] sm:$0xff]
    %v1254 = vld [vmem:[#allocation8 + $0xc90] sm:$0xff]
    %v1255 = vld [vmem:[#allocation8 + $0xc98] sm:$0xff]
    %v1256 = vld [vmem:[#allocation8 + $0xca0] sm:$0xff]
    %v1257 = vld [vmem:[#allocation8 + $0xca8] sm:$0xff]
    %v1258 = vld [vmem:[#allocation8 + $0xcb0] sm:$0xff]
    %v1259 = vld [vmem:[#allocation8 + $0xcb8] sm:$0xff]
    %v1260 = vld [vmem:[#allocation8 + $0xcc0] sm:$0xff]
    %v1261 = vld [vmem:[#allocation8 + $0xcc8] sm:$0xff]
    %v1262 = vld [vmem:[#allocation8 + $0xcd0] sm:$0xff]
    %v1263 = vld [vmem:[#allocation8 + $0xcd8] sm:$0xff]
    %v1264 = vld [vmem:[#allocation8 + $0xce0] sm:$0xff]
    %v1265 = vld [vmem:[#allocation8 + $0xce8] sm:$0xff]
    %v1266 = vld [vmem:[#allocation8 + $0xcf0] sm:$0xff]
    %v1267 = vld [vmem:[#allocation8 + $0xcf8] sm:$0xff]
    %v1268 = vld [vmem:[#allocation8 + $0xd00] sm:$0xff]
    %v1269 = vld [vmem:[#allocation8 + $0xd08] sm:$0xff]
    %v1270 = vld [vmem:[#allocation8 + $0xd10] sm:$0xff]
    %v1271 = vld [vmem:[#allocation8 + $0xd18] sm:$0xff]
    %v1272 = vld [vmem:[#allocation8 + $0xd20] sm:$0xff]
    %v1273 = vld [vmem:[#allocation8 + $0xd28] sm:$0xff]
    %v1274 = vld [vmem:[#allocation8 + $0xd30] sm:$0xff]
    %v1275 = vld [vmem:[#allocation8 + $0xd38] sm:$0xff]
    %v1276 = vld [vmem:[#allocation8 + $0xd40] sm:$0xff]
    %v1277 = vld [vmem:[#allocation8 + $0xd48] sm:$0xff]
    %v1278 = vld [vmem:[#allocation8 + $0xd50] sm:$0xff]
    %v1279 = vld [vmem:[#allocation8 + $0xd58] sm:$0xff]
    %v1280 = vld [vmem:[#allocation8 + $0xd60] sm:$0xff]
    %v1281 = vld [vmem:[#allocation8 + $0xd68] sm:$0xff]
    %v1282 = vld [vmem:[#allocation8 + $0xd70] sm:$0xff]
    %v1283 = vld [vmem:[#allocation8 + $0xd78] sm:$0xff]
    %v1284 = vld [vmem:[#allocation8 + $0xd80] sm:$0xff]
    %v1285 = vld [vmem:[#allocation8 + $0xd88] sm:$0xff]
    %v1286 = vld [vmem:[#allocation8 + $0xd90] sm:$0xff]
    %v1287 = vld [vmem:[#allocation8 + $0xd98] sm:$0xff]
    %v1288 = vld [vmem:[#allocation8 + $0xda0] sm:$0xff]
    %v1289 = vld [vmem:[#allocation8 + $0xda8] sm:$0xff]
    %v1290 = vld [vmem:[#allocation8 + $0xdb0] sm:$0xff]
    %v1291 = vld [vmem:[#allocation8 + $0xdb8] sm:$0xff]
    %v1292 = vld [vmem:[#allocation8 + $0xdc0] sm:$0xff]
    %v1293 = vld [vmem:[#allocation8 + $0xdc8] sm:$0xff]
    %v1294 = vld [vmem:[#allocation8 + $0xdd0] sm:$0xff]
    %v1295 = vld [vmem:[#allocation8 + $0xdd8] sm:$0xff]
    %v1296 = vld [vmem:[#allocation8 + $0xde0] sm:$0xff]
    %v1297 = vld [vmem:[#allocation8 + $0xde8] sm:$0xff]
    %v1298 = vld [vmem:[#allocation8 + $0xdf0] sm:$0xff]
    %v1299 = vld [vmem:[#allocation8 + $0xdf8] sm:$0xff]
    %v1300 = vld [vmem:[#allocation8 + $0xe00] sm:$0xff]
    %v1301 = vld [vmem:[#allocation8 + $0xe08] sm:$0xff]
    %v1302 = vld [vmem:[#allocation8 + $0xe10] sm:$0xff]
    %v1303 = vld [vmem:[#allocation8 + $0xe18] sm:$0xff]
    %v1304 = vld [vmem:[#allocation8 + $0xe20] sm:$0xff]
    %v1305 = vld [vmem:[#allocation8 + $0xe28] sm:$0xff]
    %v1306 = vld [vmem:[#allocation8 + $0xe30] sm:$0xff]
    %v1307 = vld [vmem:[#allocation8 + $0xe38] sm:$0xff]
    %v1308 = vld [vmem:[#allocation8 + $0xe40] sm:$0xff]
    %v1309 = vld [vmem:[#allocation8 + $0xe48] sm:$0xff]
    %v1310 = vld [vmem:[#allocation8 + $0xe50] sm:$0xff]
    %v1311 = vld [vmem:[#allocation8 + $0xe58] sm:$0xff]
    %v1312 = vld [vmem:[#allocation8 + $0xe60] sm:$0xff]
    %v1313 = vld [vmem:[#allocation8 + $0xe68] sm:$0xff]
    %v1314 = vld [vmem:[#allocation8 + $0xe70] sm:$0xff]
    %v1315 = vld [vmem:[#allocation8 + $0xe78] sm:$0xff]
    %v1316 = vld [vmem:[#allocation8 + $0xe80] sm:$0xff]
    %v1317 = vld [vmem:[#allocation8 + $0xe88] sm:$0xff]
    %v1318 = vld [vmem:[#allocation8 + $0xe90] sm:$0xff]
    %v1319 = vld [vmem:[#allocation8 + $0xe98] sm:$0xff]
    %v1320 = vld [vmem:[#allocation8 + $0xea0] sm:$0xff]
    %v1321 = vld [vmem:[#allocation8 + $0xea8] sm:$0xff]
    %v1322 = vld [vmem:[#allocation8 + $0xeb0] sm:$0xff]
    %v1323 = vld [vmem:[#allocation8 + $0xeb8] sm:$0xff]
    %v1324 = vld [vmem:[#allocation8 + $0xec0] sm:$0xff]
    %v1325 = vld [vmem:[#allocation8 + $0xec8] sm:$0xff]
    %v1326 = vld [vmem:[#allocation8 + $0xed0] sm:$0xff]
    %v1327 = vld [vmem:[#allocation8 + $0xed8] sm:$0xff]
    %v1328 = vld [vmem:[#allocation8 + $0xee0] sm:$0xff]
    %v1329 = vld [vmem:[#allocation8 + $0xee8] sm:$0xff]
    %v1330 = vld [vmem:[#allocation8 + $0xef0] sm:$0xff]
    %v1331 = vld [vmem:[#allocation8 + $0xef8] sm:$0xff]
    %v1332 = vld [vmem:[#allocation8 + $0xf00] sm:$0xff]
    %v1333 = vld [vmem:[#allocation8 + $0xf08] sm:$0xff]
    %v1334 = vld [vmem:[#allocation8 + $0xf10] sm:$0xff]
    %v1335 = vld [vmem:[#allocation8 + $0xf18] sm:$0xff]
    %v1336 = vld [vmem:[#allocation8 + $0xf20] sm:$0xff]
    %v1337 = vld [vmem:[#allocation8 + $0xf28] sm:$0xff]
    %v1338 = vld [vmem:[#allocation8 + $0xf30] sm:$0xff]
    %v1339 = vld [vmem:[#allocation8 + $0xf38] sm:$0xff]
    %v1340 = vld [vmem:[#allocation8 + $0xf40] sm:$0xff]
    %v1341 = vld [vmem:[#allocation8 + $0xf48] sm:$0xff]
    %v1342 = vld [vmem:[#allocation8 + $0xf50] sm:$0xff]
    %v1343 = vld [vmem:[#allocation8 + $0xf58] sm:$0xff]
    %v1344 = vld [vmem:[#allocation8 + $0xf60] sm:$0xff]
    %v1345 = vld [vmem:[#allocation8 + $0xf68] sm:$0xff]
    %v1346 = vld [vmem:[#allocation8 + $0xf70] sm:$0xff]
    %v1347 = vld [vmem:[#allocation8 + $0xf78] sm:$0xff]
    %v1348 = vld [vmem:[#allocation8 + $0xf80] sm:$0xff]
    %v1349 = vld [vmem:[#allocation8 + $0xf88] sm:$0xff]
    %v1350 = vld [vmem:[#allocation8 + $0xf90] sm:$0xff]
    %v1351 = vld [vmem:[#allocation8 + $0xf98] sm:$0xff]
    %v1352 = vld [vmem:[#allocation8 + $0xfa0] sm:$0xff]
    %v1353 = vld [vmem:[#allocation8 + $0xfa8] sm:$0xff]
    %v1354 = vld [vmem:[#allocation8 + $0xfb0] sm:$0xff]
    %v1355 = vld [vmem:[#allocation8 + $0xfb8] sm:$0xff]
    %v1356 = vld [vmem:[#allocation8 + $0xfc0] sm:$0xff]
    %v1357 = vld [vmem:[#allocation8 + $0xfc8] sm:$0xff]
    %v1358 = vld [vmem:[#allocation8 + $0xfd0] sm:$0xff]
    %v1359 = vld [vmem:[#allocation8 + $0xfd8] sm:$0xff]
    %v1360 = vld [vmem:[#allocation8 + $0xfe0] sm:$0xff]
    %v1361 = vld [vmem:[#allocation8 + $0xfe8] sm:$0xff]
    %v1362 = vld [vmem:[#allocation8 + $0xff0] sm:$0xff]
    %v1363 = vld [vmem:[#allocation8 + $0xff8] sm:$0xff]
    %v1364 = vld [vmem:[#allocation10] sm:$0xf]
    %v1366 = vlaneseq
    %v1367 = vshrl.u32 %v1366, 7
    %v1368 = vsub.s32 0, %v1367
    %v1369 = vrot.slane %v1364, %v1368
    %v1370 = vlaneseq
    %v1371 = vshrl.u32 %v1370, 7
    %v1372 = vsub.s32 1, %v1371
    %v1373 = vrot.slane %v1364, %v1372
    %v1374 = vlaneseq
    %v1375 = vshrl.u32 %v1374, 7
    %v1376 = vsub.s32 2, %v1375
    %v1377 = vrot.slane %v1364, %v1376
    %v1378 = vlaneseq
    %v1379 = vshrl.u32 %v1378, 7
    %v1380 = vsub.s32 3, %v1379
    %v1381 = vrot.slane %v1364, %v1380
    %v1898 = vunpack.c.l.b16 %v852
    %v1899 = vunpack.c.h.b16 %v852
    %v1900 = vunpack.c.l.b16 %v853
    %v1901 = vunpack.c.h.b16 %v853
    %v1902 = vunpack.c.l.b16 %v854
    %v1903 = vunpack.c.h.b16 %v854
    %v1904 = vunpack.c.l.b16 %v855
    %v1905 = vunpack.c.h.b16 %v855
    %v1906 = vunpack.c.l.b16 %v856
    %v1907 = vunpack.c.h.b16 %v856
    %v1908 = vunpack.c.l.b16 %v857
    %v1909 = vunpack.c.h.b16 %v857
    %v1910 = vunpack.c.l.b16 %v858
    %v1911 = vunpack.c.h.b16 %v858
    %v1912 = vunpack.c.l.b16 %v859
    %v1913 = vunpack.c.h.b16 %v859
    %v1914 = vunpack.c.l.b16 %v860
    %v1915 = vunpack.c.h.b16 %v860
    %v1916 = vunpack.c.l.b16 %v861
    %v1917 = vunpack.c.h.b16 %v861
    %v1918 = vunpack.c.l.b16 %v862
    %v1919 = vunpack.c.h.b16 %v862
    %v1920 = vunpack.c.l.b16 %v863
    %v1921 = vunpack.c.h.b16 %v863
    %v1922 = vunpack.c.l.b16 %v864
    %v1923 = vunpack.c.h.b16 %v864
    %v1924 = vunpack.c.l.b16 %v865
    %v1925 = vunpack.c.h.b16 %v865
    %v1926 = vunpack.c.l.b16 %v866
    %v1927 = vunpack.c.h.b16 %v866
    %v1928 = vunpack.c.l.b16 %v867
    %v1929 = vunpack.c.h.b16 %v867
    %v1930 = vunpack.c.l.b16 %v868
    %v1931 = vunpack.c.h.b16 %v868
    %v1932 = vunpack.c.l.b16 %v869
    %v1933 = vunpack.c.h.b16 %v869
    %v1934 = vunpack.c.l.b16 %v870
    %v1935 = vunpack.c.h.b16 %v870
    %v1936 = vunpack.c.l.b16 %v871
    %v1937 = vunpack.c.h.b16 %v871
    %v1938 = vunpack.c.l.b16 %v872
    %v1939 = vunpack.c.h.b16 %v872
    %v1940 = vunpack.c.l.b16 %v873
    %v1941 = vunpack.c.h.b16 %v873
    %v1942 = vunpack.c.l.b16 %v874
    %v1943 = vunpack.c.h.b16 %v874
    %v1944 = vunpack.c.l.b16 %v875
    %v1945 = vunpack.c.h.b16 %v875
    %v1946 = vunpack.c.l.b16 %v876
    %v1947 = vunpack.c.h.b16 %v876
    %v1948 = vunpack.c.l.b16 %v877
    %v1949 = vunpack.c.h.b16 %v877
    %v1950 = vunpack.c.l.b16 %v878
    %v1951 = vunpack.c.h.b16 %v878
    %v1952 = vunpack.c.l.b16 %v879
    %v1953 = vunpack.c.h.b16 %v879
    %v1954 = vunpack.c.l.b16 %v880
    %v1955 = vunpack.c.h.b16 %v880
    %v1956 = vunpack.c.l.b16 %v881
    %v1957 = vunpack.c.h.b16 %v881
    %v1958 = vunpack.c.l.b16 %v882
    %v1959 = vunpack.c.h.b16 %v882
    %v1960 = vunpack.c.l.b16 %v883
    %v1961 = vunpack.c.h.b16 %v883
    %v1962 = vunpack.c.l.b16 %v884
    %v1963 = vunpack.c.h.b16 %v884
    %v1964 = vunpack.c.l.b16 %v885
    %v1965 = vunpack.c.h.b16 %v885
    %v1966 = vunpack.c.l.b16 %v886
    %v1967 = vunpack.c.h.b16 %v886
    %v1968 = vunpack.c.l.b16 %v887
    %v1969 = vunpack.c.h.b16 %v887
    %v1970 = vunpack.c.l.b16 %v888
    %v1971 = vunpack.c.h.b16 %v888
    %v1972 = vunpack.c.l.b16 %v889
    %v1973 = vunpack.c.h.b16 %v889
    %v1974 = vunpack.c.l.b16 %v890
    %v1975 = vunpack.c.h.b16 %v890
    %v1976 = vunpack.c.l.b16 %v891
    %v1977 = vunpack.c.h.b16 %v891
    %v1978 = vunpack.c.l.b16 %v892
    %v1979 = vunpack.c.h.b16 %v892
    %v1980 = vunpack.c.l.b16 %v893
    %v1981 = vunpack.c.h.b16 %v893
    %v1982 = vunpack.c.l.b16 %v894
    %v1983 = vunpack.c.h.b16 %v894
    %v1984 = vunpack.c.l.b16 %v895
    %v1985 = vunpack.c.h.b16 %v895
    %v1986 = vunpack.c.l.b16 %v896
    %v1987 = vunpack.c.h.b16 %v896
    %v1988 = vunpack.c.l.b16 %v897
    %v1989 = vunpack.c.h.b16 %v897
    %v1990 = vunpack.c.l.b16 %v898
    %v1991 = vunpack.c.h.b16 %v898
    %v1992 = vunpack.c.l.b16 %v899
    %v1993 = vunpack.c.h.b16 %v899
    %v1994 = vunpack.c.l.b16 %v900
    %v1995 = vunpack.c.h.b16 %v900
    %v1996 = vunpack.c.l.b16 %v901
    %v1997 = vunpack.c.h.b16 %v901
    %v1998 = vunpack.c.l.b16 %v902
    %v1999 = vunpack.c.h.b16 %v902
    %v2000 = vunpack.c.l.b16 %v903
    %v2001 = vunpack.c.h.b16 %v903
    %v2002 = vunpack.c.l.b16 %v904
    %v2003 = vunpack.c.h.b16 %v904
    %v2004 = vunpack.c.l.b16 %v905
    %v2005 = vunpack.c.h.b16 %v905
    %v2006 = vunpack.c.l.b16 %v906
    %v2007 = vunpack.c.h.b16 %v906
    %v2008 = vunpack.c.l.b16 %v907
    %v2009 = vunpack.c.h.b16 %v907
    %v2010 = vunpack.c.l.b16 %v908
    %v2011 = vunpack.c.h.b16 %v908
    %v2012 = vunpack.c.l.b16 %v909
    %v2013 = vunpack.c.h.b16 %v909
    %v2014 = vunpack.c.l.b16 %v910
    %v2015 = vunpack.c.h.b16 %v910
    %v2016 = vunpack.c.l.b16 %v911
    %v2017 = vunpack.c.h.b16 %v911
    %v2018 = vunpack.c.l.b16 %v912
    %v2019 = vunpack.c.h.b16 %v912
    %v2020 = vunpack.c.l.b16 %v913
    %v2021 = vunpack.c.h.b16 %v913
    %v2022 = vunpack.c.l.b16 %v914
    %v2023 = vunpack.c.h.b16 %v914
    %v2024 = vunpack.c.l.b16 %v915
    %v2025 = vunpack.c.h.b16 %v915
    %v2026 = vunpack.c.l.b16 %v916
    %v2027 = vunpack.c.h.b16 %v916
    %v2028 = vunpack.c.l.b16 %v917
    %v2029 = vunpack.c.h.b16 %v917
    %v2030 = vunpack.c.l.b16 %v918
    %v2031 = vunpack.c.h.b16 %v918
    %v2032 = vunpack.c.l.b16 %v919
    %v2033 = vunpack.c.h.b16 %v919
    %v2034 = vunpack.c.l.b16 %v920
    %v2035 = vunpack.c.h.b16 %v920
    %v2036 = vunpack.c.l.b16 %v921
    %v2037 = vunpack.c.h.b16 %v921
    %v2038 = vunpack.c.l.b16 %v922
    %v2039 = vunpack.c.h.b16 %v922
    %v2040 = vunpack.c.l.b16 %v923
    %v2041 = vunpack.c.h.b16 %v923
    %v2042 = vunpack.c.l.b16 %v924
    %v2043 = vunpack.c.h.b16 %v924
    %v2044 = vunpack.c.l.b16 %v925
    %v2045 = vunpack.c.h.b16 %v925
    %v2046 = vunpack.c.l.b16 %v926
    %v2047 = vunpack.c.h.b16 %v926
    %v2048 = vunpack.c.l.b16 %v927
    %v2049 = vunpack.c.h.b16 %v927
    %v2050 = vunpack.c.l.b16 %v928
    %v2051 = vunpack.c.h.b16 %v928
    %v2052 = vunpack.c.l.b16 %v929
    %v2053 = vunpack.c.h.b16 %v929
    %v2054 = vunpack.c.l.b16 %v930
    %v2055 = vunpack.c.h.b16 %v930
    %v2056 = vunpack.c.l.b16 %v931
    %v2057 = vunpack.c.h.b16 %v931
    %v2058 = vunpack.c.l.b16 %v932
    %v2059 = vunpack.c.h.b16 %v932
    %v2060 = vunpack.c.l.b16 %v933
    %v2061 = vunpack.c.h.b16 %v933
    %v2062 = vunpack.c.l.b16 %v934
    %v2063 = vunpack.c.h.b16 %v934
    %v2064 = vunpack.c.l.b16 %v935
    %v2065 = vunpack.c.h.b16 %v935
    %v2066 = vunpack.c.l.b16 %v936
    %v2067 = vunpack.c.h.b16 %v936
    %v2068 = vunpack.c.l.b16 %v937
    %v2069 = vunpack.c.h.b16 %v937
    %v2070 = vunpack.c.l.b16 %v938
    %v2071 = vunpack.c.h.b16 %v938
    %v2072 = vunpack.c.l.b16 %v939
    %v2073 = vunpack.c.h.b16 %v939
    %v2074 = vunpack.c.l.b16 %v940
    %v2075 = vunpack.c.h.b16 %v940
    %v2076 = vunpack.c.l.b16 %v941
    %v2077 = vunpack.c.h.b16 %v941
    %v2078 = vunpack.c.l.b16 %v942
    %v2079 = vunpack.c.h.b16 %v942
    %v2080 = vunpack.c.l.b16 %v943
    %v2081 = vunpack.c.h.b16 %v943
    %v2082 = vunpack.c.l.b16 %v944
    %v2083 = vunpack.c.h.b16 %v944
    %v2084 = vunpack.c.l.b16 %v945
    %v2085 = vunpack.c.h.b16 %v945
    %v2086 = vunpack.c.l.b16 %v946
    %v2087 = vunpack.c.h.b16 %v946
    %v2088 = vunpack.c.l.b16 %v947
    %v2089 = vunpack.c.h.b16 %v947
    %v2090 = vunpack.c.l.b16 %v948
    %v2091 = vunpack.c.h.b16 %v948
    %v2092 = vunpack.c.l.b16 %v949
    %v2093 = vunpack.c.h.b16 %v949
    %v2094 = vunpack.c.l.b16 %v950
    %v2095 = vunpack.c.h.b16 %v950
    %v2096 = vunpack.c.l.b16 %v951
    %v2097 = vunpack.c.h.b16 %v951
    %v2098 = vunpack.c.l.b16 %v952
    %v2099 = vunpack.c.h.b16 %v952
    %v2100 = vunpack.c.l.b16 %v953
    %v2101 = vunpack.c.h.b16 %v953
    %v2102 = vunpack.c.l.b16 %v954
    %v2103 = vunpack.c.h.b16 %v954
    %v2104 = vunpack.c.l.b16 %v955
    %v2105 = vunpack.c.h.b16 %v955
    %v2106 = vunpack.c.l.b16 %v956
    %v2107 = vunpack.c.h.b16 %v956
    %v2108 = vunpack.c.l.b16 %v957
    %v2109 = vunpack.c.h.b16 %v957
    %v2110 = vunpack.c.l.b16 %v958
    %v2111 = vunpack.c.h.b16 %v958
    %v2112 = vunpack.c.l.b16 %v959
    %v2113 = vunpack.c.h.b16 %v959
    %v2114 = vunpack.c.l.b16 %v960
    %v2115 = vunpack.c.h.b16 %v960
    %v2116 = vunpack.c.l.b16 %v961
    %v2117 = vunpack.c.h.b16 %v961
    %v2118 = vunpack.c.l.b16 %v962
    %v2119 = vunpack.c.h.b16 %v962
    %v2120 = vunpack.c.l.b16 %v963
    %v2121 = vunpack.c.h.b16 %v963
    %v2122 = vunpack.c.l.b16 %v964
    %v2123 = vunpack.c.h.b16 %v964
    %v2124 = vunpack.c.l.b16 %v965
    %v2125 = vunpack.c.h.b16 %v965
    %v2126 = vunpack.c.l.b16 %v966
    %v2127 = vunpack.c.h.b16 %v966
    %v2128 = vunpack.c.l.b16 %v967
    %v2129 = vunpack.c.h.b16 %v967
    %v2130 = vunpack.c.l.b16 %v968
    %v2131 = vunpack.c.h.b16 %v968
    %v2132 = vunpack.c.l.b16 %v969
    %v2133 = vunpack.c.h.b16 %v969
    %v2134 = vunpack.c.l.b16 %v970
    %v2135 = vunpack.c.h.b16 %v970
    %v2136 = vunpack.c.l.b16 %v971
    %v2137 = vunpack.c.h.b16 %v971
    %v2138 = vunpack.c.l.b16 %v972
    %v2139 = vunpack.c.h.b16 %v972
    %v2140 = vunpack.c.l.b16 %v973
    %v2141 = vunpack.c.h.b16 %v973
    %v2142 = vunpack.c.l.b16 %v974
    %v2143 = vunpack.c.h.b16 %v974
    %v2144 = vunpack.c.l.b16 %v975
    %v2145 = vunpack.c.h.b16 %v975
    %v2146 = vunpack.c.l.b16 %v976
    %v2147 = vunpack.c.h.b16 %v976
    %v2148 = vunpack.c.l.b16 %v977
    %v2149 = vunpack.c.h.b16 %v977
    %v2150 = vunpack.c.l.b16 %v978
    %v2151 = vunpack.c.h.b16 %v978
    %v2152 = vunpack.c.l.b16 %v979
    %v2153 = vunpack.c.h.b16 %v979
    %v2154 = vunpack.c.l.b16 %v980
    %v2155 = vunpack.c.h.b16 %v980
    %v2156 = vunpack.c.l.b16 %v981
    %v2157 = vunpack.c.h.b16 %v981
    %v2158 = vunpack.c.l.b16 %v982
    %v2159 = vunpack.c.h.b16 %v982
    %v2160 = vunpack.c.l.b16 %v983
    %v2161 = vunpack.c.h.b16 %v983
    %v2162 = vunpack.c.l.b16 %v984
    %v2163 = vunpack.c.h.b16 %v984
    %v2164 = vunpack.c.l.b16 %v985
    %v2165 = vunpack.c.h.b16 %v985
    %v2166 = vunpack.c.l.b16 %v986
    %v2167 = vunpack.c.h.b16 %v986
    %v2168 = vunpack.c.l.b16 %v987
    %v2169 = vunpack.c.h.b16 %v987
    %v2170 = vunpack.c.l.b16 %v988
    %v2171 = vunpack.c.h.b16 %v988
    %v2172 = vunpack.c.l.b16 %v989
    %v2173 = vunpack.c.h.b16 %v989
    %v2174 = vunpack.c.l.b16 %v990
    %v2175 = vunpack.c.h.b16 %v990
    %v2176 = vunpack.c.l.b16 %v991
    %v2177 = vunpack.c.h.b16 %v991
    %v2178 = vunpack.c.l.b16 %v992
    %v2179 = vunpack.c.h.b16 %v992
    %v2180 = vunpack.c.l.b16 %v993
    %v2181 = vunpack.c.h.b16 %v993
    %v2182 = vunpack.c.l.b16 %v994
    %v2183 = vunpack.c.h.b16 %v994
    %v2184 = vunpack.c.l.b16 %v995
    %v2185 = vunpack.c.h.b16 %v995
    %v2186 = vunpack.c.l.b16 %v996
    %v2187 = vunpack.c.h.b16 %v996
    %v2188 = vunpack.c.l.b16 %v997
    %v2189 = vunpack.c.h.b16 %v997
    %v2190 = vunpack.c.l.b16 %v998
    %v2191 = vunpack.c.h.b16 %v998
    %v2192 = vunpack.c.l.b16 %v999
    %v2193 = vunpack.c.h.b16 %v999
    %v2194 = vunpack.c.l.b16 %v1000
    %v2195 = vunpack.c.h.b16 %v1000
    %v2196 = vunpack.c.l.b16 %v1001
    %v2197 = vunpack.c.h.b16 %v1001
    %v2198 = vunpack.c.l.b16 %v1002
    %v2199 = vunpack.c.h.b16 %v1002
    %v2200 = vunpack.c.l.b16 %v1003
    %v2201 = vunpack.c.h.b16 %v1003
    %v2202 = vunpack.c.l.b16 %v1004
    %v2203 = vunpack.c.h.b16 %v1004
    %v2204 = vunpack.c.l.b16 %v1005
    %v2205 = vunpack.c.h.b16 %v1005
    %v2206 = vunpack.c.l.b16 %v1006
    %v2207 = vunpack.c.h.b16 %v1006
    %v2208 = vunpack.c.l.b16 %v1007
    %v2209 = vunpack.c.h.b16 %v1007
    %v2210 = vunpack.c.l.b16 %v1008
    %v2211 = vunpack.c.h.b16 %v1008
    %v2212 = vunpack.c.l.b16 %v1009
    %v2213 = vunpack.c.h.b16 %v1009
    %v2214 = vunpack.c.l.b16 %v1010
    %v2215 = vunpack.c.h.b16 %v1010
    %v2216 = vunpack.c.l.b16 %v1011
    %v2217 = vunpack.c.h.b16 %v1011
    %v2218 = vunpack.c.l.b16 %v1012
    %v2219 = vunpack.c.h.b16 %v1012
    %v2220 = vunpack.c.l.b16 %v1013
    %v2221 = vunpack.c.h.b16 %v1013
    %v2222 = vunpack.c.l.b16 %v1014
    %v2223 = vunpack.c.h.b16 %v1014
    %v2224 = vunpack.c.l.b16 %v1015
    %v2225 = vunpack.c.h.b16 %v1015
    %v2226 = vunpack.c.l.b16 %v1016
    %v2227 = vunpack.c.h.b16 %v1016
    %v2228 = vunpack.c.l.b16 %v1017
    %v2229 = vunpack.c.h.b16 %v1017
    %v2230 = vunpack.c.l.b16 %v1018
    %v2231 = vunpack.c.h.b16 %v1018
    %v2232 = vunpack.c.l.b16 %v1019
    %v2233 = vunpack.c.h.b16 %v1019
    %v2234 = vunpack.c.l.b16 %v1020
    %v2235 = vunpack.c.h.b16 %v1020
    %v2236 = vunpack.c.l.b16 %v1021
    %v2237 = vunpack.c.h.b16 %v1021
    %v2238 = vunpack.c.l.b16 %v1022
    %v2239 = vunpack.c.h.b16 %v1022
    %v2240 = vunpack.c.l.b16 %v1023
    %v2241 = vunpack.c.h.b16 %v1023
    %v2242 = vunpack.c.l.b16 %v1024
    %v2243 = vunpack.c.h.b16 %v1024
    %v2244 = vunpack.c.l.b16 %v1025
    %v2245 = vunpack.c.h.b16 %v1025
    %v2246 = vunpack.c.l.b16 %v1026
    %v2247 = vunpack.c.h.b16 %v1026
    %v2248 = vunpack.c.l.b16 %v1027
    %v2249 = vunpack.c.h.b16 %v1027
    %v2250 = vunpack.c.l.b16 %v1028
    %v2251 = vunpack.c.h.b16 %v1028
    %v2252 = vunpack.c.l.b16 %v1029
    %v2253 = vunpack.c.h.b16 %v1029
    %v2254 = vunpack.c.l.b16 %v1030
    %v2255 = vunpack.c.h.b16 %v1030
    %v2256 = vunpack.c.l.b16 %v1031
    %v2257 = vunpack.c.h.b16 %v1031
    %v2258 = vunpack.c.l.b16 %v1032
    %v2259 = vunpack.c.h.b16 %v1032
    %v2260 = vunpack.c.l.b16 %v1033
    %v2261 = vunpack.c.h.b16 %v1033
    %v2262 = vunpack.c.l.b16 %v1034
    %v2263 = vunpack.c.h.b16 %v1034
    %v2264 = vunpack.c.l.b16 %v1035
    %v2265 = vunpack.c.h.b16 %v1035
    %v2266 = vunpack.c.l.b16 %v1036
    %v2267 = vunpack.c.h.b16 %v1036
    %v2268 = vunpack.c.l.b16 %v1037
    %v2269 = vunpack.c.h.b16 %v1037
    %v2270 = vunpack.c.l.b16 %v1038
    %v2271 = vunpack.c.h.b16 %v1038
    %v2272 = vunpack.c.l.b16 %v1039
    %v2273 = vunpack.c.h.b16 %v1039
    %v2274 = vunpack.c.l.b16 %v1040
    %v2275 = vunpack.c.h.b16 %v1040
    %v2276 = vunpack.c.l.b16 %v1041
    %v2277 = vunpack.c.h.b16 %v1041
    %v2278 = vunpack.c.l.b16 %v1042
    %v2279 = vunpack.c.h.b16 %v1042
    %v2280 = vunpack.c.l.b16 %v1043
    %v2281 = vunpack.c.h.b16 %v1043
    %v2282 = vunpack.c.l.b16 %v1044
    %v2283 = vunpack.c.h.b16 %v1044
    %v2284 = vunpack.c.l.b16 %v1045
    %v2285 = vunpack.c.h.b16 %v1045
    %v2286 = vunpack.c.l.b16 %v1046
    %v2287 = vunpack.c.h.b16 %v1046
    %v2288 = vunpack.c.l.b16 %v1047
    %v2289 = vunpack.c.h.b16 %v1047
    %v2290 = vunpack.c.l.b16 %v1048
    %v2291 = vunpack.c.h.b16 %v1048
    %v2292 = vunpack.c.l.b16 %v1049
    %v2293 = vunpack.c.h.b16 %v1049
    %v2294 = vunpack.c.l.b16 %v1050
    %v2295 = vunpack.c.h.b16 %v1050
    %v2296 = vunpack.c.l.b16 %v1051
    %v2297 = vunpack.c.h.b16 %v1051
    %v2298 = vunpack.c.l.b16 %v1052
    %v2299 = vunpack.c.h.b16 %v1052
    %v2300 = vunpack.c.l.b16 %v1053
    %v2301 = vunpack.c.h.b16 %v1053
    %v2302 = vunpack.c.l.b16 %v1054
    %v2303 = vunpack.c.h.b16 %v1054
    %v2304 = vunpack.c.l.b16 %v1055
    %v2305 = vunpack.c.h.b16 %v1055
    %v2306 = vunpack.c.l.b16 %v1056
    %v2307 = vunpack.c.h.b16 %v1056
    %v2308 = vunpack.c.l.b16 %v1057
    %v2309 = vunpack.c.h.b16 %v1057
    %v2310 = vunpack.c.l.b16 %v1058
    %v2311 = vunpack.c.h.b16 %v1058
    %v2312 = vunpack.c.l.b16 %v1059
    %v2313 = vunpack.c.h.b16 %v1059
    %v2314 = vunpack.c.l.b16 %v1060
    %v2315 = vunpack.c.h.b16 %v1060
    %v2316 = vunpack.c.l.b16 %v1061
    %v2317 = vunpack.c.h.b16 %v1061
    %v2318 = vunpack.c.l.b16 %v1062
    %v2319 = vunpack.c.h.b16 %v1062
    %v2320 = vunpack.c.l.b16 %v1063
    %v2321 = vunpack.c.h.b16 %v1063
    %v2322 = vunpack.c.l.b16 %v1064
    %v2323 = vunpack.c.h.b16 %v1064
    %v2324 = vunpack.c.l.b16 %v1065
    %v2325 = vunpack.c.h.b16 %v1065
    %v2326 = vunpack.c.l.b16 %v1066
    %v2327 = vunpack.c.h.b16 %v1066
    %v2328 = vunpack.c.l.b16 %v1067
    %v2329 = vunpack.c.h.b16 %v1067
    %v2330 = vunpack.c.l.b16 %v1068
    %v2331 = vunpack.c.h.b16 %v1068
    %v2332 = vunpack.c.l.b16 %v1069
    %v2333 = vunpack.c.h.b16 %v1069
    %v2334 = vunpack.c.l.b16 %v1070
    %v2335 = vunpack.c.h.b16 %v1070
    %v2336 = vunpack.c.l.b16 %v1071
    %v2337 = vunpack.c.h.b16 %v1071
    %v2338 = vunpack.c.l.b16 %v1072
    %v2339 = vunpack.c.h.b16 %v1072
    %v2340 = vunpack.c.l.b16 %v1073
    %v2341 = vunpack.c.h.b16 %v1073
    %v2342 = vunpack.c.l.b16 %v1074
    %v2343 = vunpack.c.h.b16 %v1074
    %v2344 = vunpack.c.l.b16 %v1075
    %v2345 = vunpack.c.h.b16 %v1075
    %v2346 = vunpack.c.l.b16 %v1076
    %v2347 = vunpack.c.h.b16 %v1076
    %v2348 = vunpack.c.l.b16 %v1077
    %v2349 = vunpack.c.h.b16 %v1077
    %v2350 = vunpack.c.l.b16 %v1078
    %v2351 = vunpack.c.h.b16 %v1078
    %v2352 = vunpack.c.l.b16 %v1079
    %v2353 = vunpack.c.h.b16 %v1079
    %v2354 = vunpack.c.l.b16 %v1080
    %v2355 = vunpack.c.h.b16 %v1080
    %v2356 = vunpack.c.l.b16 %v1081
    %v2357 = vunpack.c.h.b16 %v1081
    %v2358 = vunpack.c.l.b16 %v1082
    %v2359 = vunpack.c.h.b16 %v1082
    %v2360 = vunpack.c.l.b16 %v1083
    %v2361 = vunpack.c.h.b16 %v1083
    %v2362 = vunpack.c.l.b16 %v1084
    %v2363 = vunpack.c.h.b16 %v1084
    %v2364 = vunpack.c.l.b16 %v1085
    %v2365 = vunpack.c.h.b16 %v1085
    %v2366 = vunpack.c.l.b16 %v1086
    %v2367 = vunpack.c.h.b16 %v1086
    %v2368 = vunpack.c.l.b16 %v1087
    %v2369 = vunpack.c.h.b16 %v1087
    %v2370 = vunpack.c.l.b16 %v1088
    %v2371 = vunpack.c.h.b16 %v1088
    %v2372 = vunpack.c.l.b16 %v1089
    %v2373 = vunpack.c.h.b16 %v1089
    %v2374 = vunpack.c.l.b16 %v1090
    %v2375 = vunpack.c.h.b16 %v1090
    %v2376 = vunpack.c.l.b16 %v1091
    %v2377 = vunpack.c.h.b16 %v1091
    %v2378 = vunpack.c.l.b16 %v1092
    %v2379 = vunpack.c.h.b16 %v1092
    %v2380 = vunpack.c.l.b16 %v1093
    %v2381 = vunpack.c.h.b16 %v1093
    %v2382 = vunpack.c.l.b16 %v1094
    %v2383 = vunpack.c.h.b16 %v1094
    %v2384 = vunpack.c.l.b16 %v1095
    %v2385 = vunpack.c.h.b16 %v1095
    %v2386 = vunpack.c.l.b16 %v1096
    %v2387 = vunpack.c.h.b16 %v1096
    %v2388 = vunpack.c.l.b16 %v1097
    %v2389 = vunpack.c.h.b16 %v1097
    %v2390 = vunpack.c.l.b16 %v1098
    %v2391 = vunpack.c.h.b16 %v1098
    %v2392 = vunpack.c.l.b16 %v1099
    %v2393 = vunpack.c.h.b16 %v1099
    %v2394 = vunpack.c.l.b16 %v1100
    %v2395 = vunpack.c.h.b16 %v1100
    %v2396 = vunpack.c.l.b16 %v1101
    %v2397 = vunpack.c.h.b16 %v1101
    %v2398 = vunpack.c.l.b16 %v1102
    %v2399 = vunpack.c.h.b16 %v1102
    %v2400 = vunpack.c.l.b16 %v1103
    %v2401 = vunpack.c.h.b16 %v1103
    %v2402 = vunpack.c.l.b16 %v1104
    %v2403 = vunpack.c.h.b16 %v1104
    %v2404 = vunpack.c.l.b16 %v1105
    %v2405 = vunpack.c.h.b16 %v1105
    %v2406 = vunpack.c.l.b16 %v1106
    %v2407 = vunpack.c.h.b16 %v1106
    %v2408 = vunpack.c.l.b16 %v1107
    %v2409 = vunpack.c.h.b16 %v1107
    %v2410 = vunpack.c.l.b16 %v1108
    %v2411 = vunpack.c.h.b16 %v1108
    %v2412 = vunpack.c.l.b16 %v1109
    %v2413 = vunpack.c.h.b16 %v1109
    %v2414 = vunpack.c.l.b16 %v1110
    %v2415 = vunpack.c.h.b16 %v1110
    %v2416 = vunpack.c.l.b16 %v1111
    %v2417 = vunpack.c.h.b16 %v1111
    %v2418 = vunpack.c.l.b16 %v1112
    %v2419 = vunpack.c.h.b16 %v1112
    %v2420 = vunpack.c.l.b16 %v1113
    %v2421 = vunpack.c.h.b16 %v1113
    %v2422 = vunpack.c.l.b16 %v1114
    %v2423 = vunpack.c.h.b16 %v1114
    %v2424 = vunpack.c.l.b16 %v1115
    %v2425 = vunpack.c.h.b16 %v1115
    %v2426 = vunpack.c.l.b16 %v1116
    %v2427 = vunpack.c.h.b16 %v1116
    %v2428 = vunpack.c.l.b16 %v1117
    %v2429 = vunpack.c.h.b16 %v1117
    %v2430 = vunpack.c.l.b16 %v1118
    %v2431 = vunpack.c.h.b16 %v1118
    %v2432 = vunpack.c.l.b16 %v1119
    %v2433 = vunpack.c.h.b16 %v1119
    %v2434 = vunpack.c.l.b16 %v1120
    %v2435 = vunpack.c.h.b16 %v1120
    %v2436 = vunpack.c.l.b16 %v1121
    %v2437 = vunpack.c.h.b16 %v1121
    %v2438 = vunpack.c.l.b16 %v1122
    %v2439 = vunpack.c.h.b16 %v1122
    %v2440 = vunpack.c.l.b16 %v1123
    %v2441 = vunpack.c.h.b16 %v1123
    %v2442 = vunpack.c.l.b16 %v1124
    %v2443 = vunpack.c.h.b16 %v1124
    %v2444 = vunpack.c.l.b16 %v1125
    %v2445 = vunpack.c.h.b16 %v1125
    %v2446 = vunpack.c.l.b16 %v1126
    %v2447 = vunpack.c.h.b16 %v1126
    %v2448 = vunpack.c.l.b16 %v1127
    %v2449 = vunpack.c.h.b16 %v1127
    %v2450 = vunpack.c.l.b16 %v1128
    %v2451 = vunpack.c.h.b16 %v1128
    %v2452 = vunpack.c.l.b16 %v1129
    %v2453 = vunpack.c.h.b16 %v1129
    %v2454 = vunpack.c.l.b16 %v1130
    %v2455 = vunpack.c.h.b16 %v1130
    %v2456 = vunpack.c.l.b16 %v1131
    %v2457 = vunpack.c.h.b16 %v1131
    %v2458 = vunpack.c.l.b16 %v1132
    %v2459 = vunpack.c.h.b16 %v1132
    %v2460 = vunpack.c.l.b16 %v1133
    %v2461 = vunpack.c.h.b16 %v1133
    %v2462 = vunpack.c.l.b16 %v1134
    %v2463 = vunpack.c.h.b16 %v1134
    %v2464 = vunpack.c.l.b16 %v1135
    %v2465 = vunpack.c.h.b16 %v1135
    %v2466 = vunpack.c.l.b16 %v1136
    %v2467 = vunpack.c.h.b16 %v1136
    %v2468 = vunpack.c.l.b16 %v1137
    %v2469 = vunpack.c.h.b16 %v1137
    %v2470 = vunpack.c.l.b16 %v1138
    %v2471 = vunpack.c.h.b16 %v1138
    %v2472 = vunpack.c.l.b16 %v1139
    %v2473 = vunpack.c.h.b16 %v1139
    %v2474 = vunpack.c.l.b16 %v1140
    %v2475 = vunpack.c.h.b16 %v1140
    %v2476 = vunpack.c.l.b16 %v1141
    %v2477 = vunpack.c.h.b16 %v1141
    %v2478 = vunpack.c.l.b16 %v1142
    %v2479 = vunpack.c.h.b16 %v1142
    %v2480 = vunpack.c.l.b16 %v1143
    %v2481 = vunpack.c.h.b16 %v1143
    %v2482 = vunpack.c.l.b16 %v1144
    %v2483 = vunpack.c.h.b16 %v1144
    %v2484 = vunpack.c.l.b16 %v1145
    %v2485 = vunpack.c.h.b16 %v1145
    %v2486 = vunpack.c.l.b16 %v1146
    %v2487 = vunpack.c.h.b16 %v1146
    %v2488 = vunpack.c.l.b16 %v1147
    %v2489 = vunpack.c.h.b16 %v1147
    %v2490 = vunpack.c.l.b16 %v1148
    %v2491 = vunpack.c.h.b16 %v1148
    %v2492 = vunpack.c.l.b16 %v1149
    %v2493 = vunpack.c.h.b16 %v1149
    %v2494 = vunpack.c.l.b16 %v1150
    %v2495 = vunpack.c.h.b16 %v1150
    %v2496 = vunpack.c.l.b16 %v1151
    %v2497 = vunpack.c.h.b16 %v1151
    %v2498 = vunpack.c.l.b16 %v1152
    %v2499 = vunpack.c.h.b16 %v1152
    %v2500 = vunpack.c.l.b16 %v1153
    %v2501 = vunpack.c.h.b16 %v1153
    %v2502 = vunpack.c.l.b16 %v1154
    %v2503 = vunpack.c.h.b16 %v1154
    %v2504 = vunpack.c.l.b16 %v1155
    %v2505 = vunpack.c.h.b16 %v1155
    %v2506 = vunpack.c.l.b16 %v1156
    %v2507 = vunpack.c.h.b16 %v1156
    %v2508 = vunpack.c.l.b16 %v1157
    %v2509 = vunpack.c.h.b16 %v1157
    %v2510 = vunpack.c.l.b16 %v1158
    %v2511 = vunpack.c.h.b16 %v1158
    %v2512 = vunpack.c.l.b16 %v1159
    %v2513 = vunpack.c.h.b16 %v1159
    %v2514 = vunpack.c.l.b16 %v1160
    %v2515 = vunpack.c.h.b16 %v1160
    %v2516 = vunpack.c.l.b16 %v1161
    %v2517 = vunpack.c.h.b16 %v1161
    %v2518 = vunpack.c.l.b16 %v1162
    %v2519 = vunpack.c.h.b16 %v1162
    %v2520 = vunpack.c.l.b16 %v1163
    %v2521 = vunpack.c.h.b16 %v1163
    %v2522 = vunpack.c.l.b16 %v1164
    %v2523 = vunpack.c.h.b16 %v1164
    %v2524 = vunpack.c.l.b16 %v1165
    %v2525 = vunpack.c.h.b16 %v1165
    %v2526 = vunpack.c.l.b16 %v1166
    %v2527 = vunpack.c.h.b16 %v1166
    %v2528 = vunpack.c.l.b16 %v1167
    %v2529 = vunpack.c.h.b16 %v1167
    %v2530 = vunpack.c.l.b16 %v1168
    %v2531 = vunpack.c.h.b16 %v1168
    %v2532 = vunpack.c.l.b16 %v1169
    %v2533 = vunpack.c.h.b16 %v1169
    %v2534 = vunpack.c.l.b16 %v1170
    %v2535 = vunpack.c.h.b16 %v1170
    %v2536 = vunpack.c.l.b16 %v1171
    %v2537 = vunpack.c.h.b16 %v1171
    %v2538 = vunpack.c.l.b16 %v1172
    %v2539 = vunpack.c.h.b16 %v1172
    %v2540 = vunpack.c.l.b16 %v1173
    %v2541 = vunpack.c.h.b16 %v1173
    %v2542 = vunpack.c.l.b16 %v1174
    %v2543 = vunpack.c.h.b16 %v1174
    %v2544 = vunpack.c.l.b16 %v1175
    %v2545 = vunpack.c.h.b16 %v1175
    %v2546 = vunpack.c.l.b16 %v1176
    %v2547 = vunpack.c.h.b16 %v1176
    %v2548 = vunpack.c.l.b16 %v1177
    %v2549 = vunpack.c.h.b16 %v1177
    %v2550 = vunpack.c.l.b16 %v1178
    %v2551 = vunpack.c.h.b16 %v1178
    %v2552 = vunpack.c.l.b16 %v1179
    %v2553 = vunpack.c.h.b16 %v1179
    %v2554 = vunpack.c.l.b16 %v1180
    %v2555 = vunpack.c.h.b16 %v1180
    %v2556 = vunpack.c.l.b16 %v1181
    %v2557 = vunpack.c.h.b16 %v1181
    %v2558 = vunpack.c.l.b16 %v1182
    %v2559 = vunpack.c.h.b16 %v1182
    %v2560 = vunpack.c.l.b16 %v1183
    %v2561 = vunpack.c.h.b16 %v1183
    %v2562 = vunpack.c.l.b16 %v1184
    %v2563 = vunpack.c.h.b16 %v1184
    %v2564 = vunpack.c.l.b16 %v1185
    %v2565 = vunpack.c.h.b16 %v1185
    %v2566 = vunpack.c.l.b16 %v1186
    %v2567 = vunpack.c.h.b16 %v1186
    %v2568 = vunpack.c.l.b16 %v1187
    %v2569 = vunpack.c.h.b16 %v1187
    %v2570 = vunpack.c.l.b16 %v1188
    %v2571 = vunpack.c.h.b16 %v1188
    %v2572 = vunpack.c.l.b16 %v1189
    %v2573 = vunpack.c.h.b16 %v1189
    %v2574 = vunpack.c.l.b16 %v1190
    %v2575 = vunpack.c.h.b16 %v1190
    %v2576 = vunpack.c.l.b16 %v1191
    %v2577 = vunpack.c.h.b16 %v1191
    %v2578 = vunpack.c.l.b16 %v1192
    %v2579 = vunpack.c.h.b16 %v1192
    %v2580 = vunpack.c.l.b16 %v1193
    %v2581 = vunpack.c.h.b16 %v1193
    %v2582 = vunpack.c.l.b16 %v1194
    %v2583 = vunpack.c.h.b16 %v1194
    %v2584 = vunpack.c.l.b16 %v1195
    %v2585 = vunpack.c.h.b16 %v1195
    %v2586 = vunpack.c.l.b16 %v1196
    %v2587 = vunpack.c.h.b16 %v1196
    %v2588 = vunpack.c.l.b16 %v1197
    %v2589 = vunpack.c.h.b16 %v1197
    %v2590 = vunpack.c.l.b16 %v1198
    %v2591 = vunpack.c.h.b16 %v1198
    %v2592 = vunpack.c.l.b16 %v1199
    %v2593 = vunpack.c.h.b16 %v1199
    %v2594 = vunpack.c.l.b16 %v1200
    %v2595 = vunpack.c.h.b16 %v1200
    %v2596 = vunpack.c.l.b16 %v1201
    %v2597 = vunpack.c.h.b16 %v1201
    %v2598 = vunpack.c.l.b16 %v1202
    %v2599 = vunpack.c.h.b16 %v1202
    %v2600 = vunpack.c.l.b16 %v1203
    %v2601 = vunpack.c.h.b16 %v1203
    %v2602 = vunpack.c.l.b16 %v1204
    %v2603 = vunpack.c.h.b16 %v1204
    %v2604 = vunpack.c.l.b16 %v1205
    %v2605 = vunpack.c.h.b16 %v1205
    %v2606 = vunpack.c.l.b16 %v1206
    %v2607 = vunpack.c.h.b16 %v1206
    %v2608 = vunpack.c.l.b16 %v1207
    %v2609 = vunpack.c.h.b16 %v1207
    %v2610 = vunpack.c.l.b16 %v1208
    %v2611 = vunpack.c.h.b16 %v1208
    %v2612 = vunpack.c.l.b16 %v1209
    %v2613 = vunpack.c.h.b16 %v1209
    %v2614 = vunpack.c.l.b16 %v1210
    %v2615 = vunpack.c.h.b16 %v1210
    %v2616 = vunpack.c.l.b16 %v1211
    %v2617 = vunpack.c.h.b16 %v1211
    %v2618 = vunpack.c.l.b16 %v1212
    %v2619 = vunpack.c.h.b16 %v1212
    %v2620 = vunpack.c.l.b16 %v1213
    %v2621 = vunpack.c.h.b16 %v1213
    %v2622 = vunpack.c.l.b16 %v1214
    %v2623 = vunpack.c.h.b16 %v1214
    %v2624 = vunpack.c.l.b16 %v1215
    %v2625 = vunpack.c.h.b16 %v1215
    %v2626 = vunpack.c.l.b16 %v1216
    %v2627 = vunpack.c.h.b16 %v1216
    %v2628 = vunpack.c.l.b16 %v1217
    %v2629 = vunpack.c.h.b16 %v1217
    %v2630 = vunpack.c.l.b16 %v1218
    %v2631 = vunpack.c.h.b16 %v1218
    %v2632 = vunpack.c.l.b16 %v1219
    %v2633 = vunpack.c.h.b16 %v1219
    %v2634 = vunpack.c.l.b16 %v1220
    %v2635 = vunpack.c.h.b16 %v1220
    %v2636 = vunpack.c.l.b16 %v1221
    %v2637 = vunpack.c.h.b16 %v1221
    %v2638 = vunpack.c.l.b16 %v1222
    %v2639 = vunpack.c.h.b16 %v1222
    %v2640 = vunpack.c.l.b16 %v1223
    %v2641 = vunpack.c.h.b16 %v1223
    %v2642 = vunpack.c.l.b16 %v1224
    %v2643 = vunpack.c.h.b16 %v1224
    %v2644 = vunpack.c.l.b16 %v1225
    %v2645 = vunpack.c.h.b16 %v1225
    %v2646 = vunpack.c.l.b16 %v1226
    %v2647 = vunpack.c.h.b16 %v1226
    %v2648 = vunpack.c.l.b16 %v1227
    %v2649 = vunpack.c.h.b16 %v1227
    %v2650 = vunpack.c.l.b16 %v1228
    %v2651 = vunpack.c.h.b16 %v1228
    %v2652 = vunpack.c.l.b16 %v1229
    %v2653 = vunpack.c.h.b16 %v1229
    %v2654 = vunpack.c.l.b16 %v1230
    %v2655 = vunpack.c.h.b16 %v1230
    %v2656 = vunpack.c.l.b16 %v1231
    %v2657 = vunpack.c.h.b16 %v1231
    %v2658 = vunpack.c.l.b16 %v1232
    %v2659 = vunpack.c.h.b16 %v1232
    %v2660 = vunpack.c.l.b16 %v1233
    %v2661 = vunpack.c.h.b16 %v1233
    %v2662 = vunpack.c.l.b16 %v1234
    %v2663 = vunpack.c.h.b16 %v1234
    %v2664 = vunpack.c.l.b16 %v1235
    %v2665 = vunpack.c.h.b16 %v1235
    %v2666 = vunpack.c.l.b16 %v1236
    %v2667 = vunpack.c.h.b16 %v1236
    %v2668 = vunpack.c.l.b16 %v1237
    %v2669 = vunpack.c.h.b16 %v1237
    %v2670 = vunpack.c.l.b16 %v1238
    %v2671 = vunpack.c.h.b16 %v1238
    %v2672 = vunpack.c.l.b16 %v1239
    %v2673 = vunpack.c.h.b16 %v1239
    %v2674 = vunpack.c.l.b16 %v1240
    %v2675 = vunpack.c.h.b16 %v1240
    %v2676 = vunpack.c.l.b16 %v1241
    %v2677 = vunpack.c.h.b16 %v1241
    %v2678 = vunpack.c.l.b16 %v1242
    %v2679 = vunpack.c.h.b16 %v1242
    %v2680 = vunpack.c.l.b16 %v1243
    %v2681 = vunpack.c.h.b16 %v1243
    %v2682 = vunpack.c.l.b16 %v1244
    %v2683 = vunpack.c.h.b16 %v1244
    %v2684 = vunpack.c.l.b16 %v1245
    %v2685 = vunpack.c.h.b16 %v1245
    %v2686 = vunpack.c.l.b16 %v1246
    %v2687 = vunpack.c.h.b16 %v1246
    %v2688 = vunpack.c.l.b16 %v1247
    %v2689 = vunpack.c.h.b16 %v1247
    %v2690 = vunpack.c.l.b16 %v1248
    %v2691 = vunpack.c.h.b16 %v1248
    %v2692 = vunpack.c.l.b16 %v1249
    %v2693 = vunpack.c.h.b16 %v1249
    %v2694 = vunpack.c.l.b16 %v1250
    %v2695 = vunpack.c.h.b16 %v1250
    %v2696 = vunpack.c.l.b16 %v1251
    %v2697 = vunpack.c.h.b16 %v1251
    %v2698 = vunpack.c.l.b16 %v1252
    %v2699 = vunpack.c.h.b16 %v1252
    %v2700 = vunpack.c.l.b16 %v1253
    %v2701 = vunpack.c.h.b16 %v1253
    %v2702 = vunpack.c.l.b16 %v1254
    %v2703 = vunpack.c.h.b16 %v1254
    %v2704 = vunpack.c.l.b16 %v1255
    %v2705 = vunpack.c.h.b16 %v1255
    %v2706 = vunpack.c.l.b16 %v1256
    %v2707 = vunpack.c.h.b16 %v1256
    %v2708 = vunpack.c.l.b16 %v1257
    %v2709 = vunpack.c.h.b16 %v1257
    %v2710 = vunpack.c.l.b16 %v1258
    %v2711 = vunpack.c.h.b16 %v1258
    %v2712 = vunpack.c.l.b16 %v1259
    %v2713 = vunpack.c.h.b16 %v1259
    %v2714 = vunpack.c.l.b16 %v1260
    %v2715 = vunpack.c.h.b16 %v1260
    %v2716 = vunpack.c.l.b16 %v1261
    %v2717 = vunpack.c.h.b16 %v1261
    %v2718 = vunpack.c.l.b16 %v1262
    %v2719 = vunpack.c.h.b16 %v1262
    %v2720 = vunpack.c.l.b16 %v1263
    %v2721 = vunpack.c.h.b16 %v1263
    %v2722 = vunpack.c.l.b16 %v1264
    %v2723 = vunpack.c.h.b16 %v1264
    %v2724 = vunpack.c.l.b16 %v1265
    %v2725 = vunpack.c.h.b16 %v1265
    %v2726 = vunpack.c.l.b16 %v1266
    %v2727 = vunpack.c.h.b16 %v1266
    %v2728 = vunpack.c.l.b16 %v1267
    %v2729 = vunpack.c.h.b16 %v1267
    %v2730 = vunpack.c.l.b16 %v1268
    %v2731 = vunpack.c.h.b16 %v1268
    %v2732 = vunpack.c.l.b16 %v1269
    %v2733 = vunpack.c.h.b16 %v1269
    %v2734 = vunpack.c.l.b16 %v1270
    %v2735 = vunpack.c.h.b16 %v1270
    %v2736 = vunpack.c.l.b16 %v1271
    %v2737 = vunpack.c.h.b16 %v1271
    %v2738 = vunpack.c.l.b16 %v1272
    %v2739 = vunpack.c.h.b16 %v1272
    %v2740 = vunpack.c.l.b16 %v1273
    %v2741 = vunpack.c.h.b16 %v1273
    %v2742 = vunpack.c.l.b16 %v1274
    %v2743 = vunpack.c.h.b16 %v1274
    %v2744 = vunpack.c.l.b16 %v1275
    %v2745 = vunpack.c.h.b16 %v1275
    %v2746 = vunpack.c.l.b16 %v1276
    %v2747 = vunpack.c.h.b16 %v1276
    %v2748 = vunpack.c.l.b16 %v1277
    %v2749 = vunpack.c.h.b16 %v1277
    %v2750 = vunpack.c.l.b16 %v1278
    %v2751 = vunpack.c.h.b16 %v1278
    %v2752 = vunpack.c.l.b16 %v1279
    %v2753 = vunpack.c.h.b16 %v1279
    %v2754 = vunpack.c.l.b16 %v1280
    %v2755 = vunpack.c.h.b16 %v1280
    %v2756 = vunpack.c.l.b16 %v1281
    %v2757 = vunpack.c.h.b16 %v1281
    %v2758 = vunpack.c.l.b16 %v1282
    %v2759 = vunpack.c.h.b16 %v1282
    %v2760 = vunpack.c.l.b16 %v1283
    %v2761 = vunpack.c.h.b16 %v1283
    %v2762 = vunpack.c.l.b16 %v1284
    %v2763 = vunpack.c.h.b16 %v1284
    %v2764 = vunpack.c.l.b16 %v1285
    %v2765 = vunpack.c.h.b16 %v1285
    %v2766 = vunpack.c.l.b16 %v1286
    %v2767 = vunpack.c.h.b16 %v1286
    %v2768 = vunpack.c.l.b16 %v1287
    %v2769 = vunpack.c.h.b16 %v1287
    %v2770 = vunpack.c.l.b16 %v1288
    %v2771 = vunpack.c.h.b16 %v1288
    %v2772 = vunpack.c.l.b16 %v1289
    %v2773 = vunpack.c.h.b16 %v1289
    %v2774 = vunpack.c.l.b16 %v1290
    %v2775 = vunpack.c.h.b16 %v1290
    %v2776 = vunpack.c.l.b16 %v1291
    %v2777 = vunpack.c.h.b16 %v1291
    %v2778 = vunpack.c.l.b16 %v1292
    %v2779 = vunpack.c.h.b16 %v1292
    %v2780 = vunpack.c.l.b16 %v1293
    %v2781 = vunpack.c.h.b16 %v1293
    %v2782 = vunpack.c.l.b16 %v1294
    %v2783 = vunpack.c.h.b16 %v1294
    %v2784 = vunpack.c.l.b16 %v1295
    %v2785 = vunpack.c.h.b16 %v1295
    %v2786 = vunpack.c.l.b16 %v1296
    %v2787 = vunpack.c.h.b16 %v1296
    %v2788 = vunpack.c.l.b16 %v1297
    %v2789 = vunpack.c.h.b16 %v1297
    %v2790 = vunpack.c.l.b16 %v1298
    %v2791 = vunpack.c.h.b16 %v1298
    %v2792 = vunpack.c.l.b16 %v1299
    %v2793 = vunpack.c.h.b16 %v1299
    %v2794 = vunpack.c.l.b16 %v1300
    %v2795 = vunpack.c.h.b16 %v1300
    %v2796 = vunpack.c.l.b16 %v1301
    %v2797 = vunpack.c.h.b16 %v1301
    %v2798 = vunpack.c.l.b16 %v1302
    %v2799 = vunpack.c.h.b16 %v1302
    %v2800 = vunpack.c.l.b16 %v1303
    %v2801 = vunpack.c.h.b16 %v1303
    %v2802 = vunpack.c.l.b16 %v1304
    %v2803 = vunpack.c.h.b16 %v1304
    %v2804 = vunpack.c.l.b16 %v1305
    %v2805 = vunpack.c.h.b16 %v1305
    %v2806 = vunpack.c.l.b16 %v1306
    %v2807 = vunpack.c.h.b16 %v1306
    %v2808 = vunpack.c.l.b16 %v1307
    %v2809 = vunpack.c.h.b16 %v1307
    %v2810 = vunpack.c.l.b16 %v1308
    %v2811 = vunpack.c.h.b16 %v1308
    %v2812 = vunpack.c.l.b16 %v1309
    %v2813 = vunpack.c.h.b16 %v1309
    %v2814 = vunpack.c.l.b16 %v1310
    %v2815 = vunpack.c.h.b16 %v1310
    %v2816 = vunpack.c.l.b16 %v1311
    %v2817 = vunpack.c.h.b16 %v1311
    %v2818 = vunpack.c.l.b16 %v1312
    %v2819 = vunpack.c.h.b16 %v1312
    %v2820 = vunpack.c.l.b16 %v1313
    %v2821 = vunpack.c.h.b16 %v1313
    %v2822 = vunpack.c.l.b16 %v1314
    %v2823 = vunpack.c.h.b16 %v1314
    %v2824 = vunpack.c.l.b16 %v1315
    %v2825 = vunpack.c.h.b16 %v1315
    %v2826 = vunpack.c.l.b16 %v1316
    %v2827 = vunpack.c.h.b16 %v1316
    %v2828 = vunpack.c.l.b16 %v1317
    %v2829 = vunpack.c.h.b16 %v1317
    %v2830 = vunpack.c.l.b16 %v1318
    %v2831 = vunpack.c.h.b16 %v1318
    %v2832 = vunpack.c.l.b16 %v1319
    %v2833 = vunpack.c.h.b16 %v1319
    %v2834 = vunpack.c.l.b16 %v1320
    %v2835 = vunpack.c.h.b16 %v1320
    %v2836 = vunpack.c.l.b16 %v1321
    %v2837 = vunpack.c.h.b16 %v1321
    %v2838 = vunpack.c.l.b16 %v1322
    %v2839 = vunpack.c.h.b16 %v1322
    %v2840 = vunpack.c.l.b16 %v1323
    %v2841 = vunpack.c.h.b16 %v1323
    %v2842 = vunpack.c.l.b16 %v1324
    %v2843 = vunpack.c.h.b16 %v1324
    %v2844 = vunpack.c.l.b16 %v1325
    %v2845 = vunpack.c.h.b16 %v1325
    %v2846 = vunpack.c.l.b16 %v1326
    %v2847 = vunpack.c.h.b16 %v1326
    %v2848 = vunpack.c.l.b16 %v1327
    %v2849 = vunpack.c.h.b16 %v1327
    %v2850 = vunpack.c.l.b16 %v1328
    %v2851 = vunpack.c.h.b16 %v1328
    %v2852 = vunpack.c.l.b16 %v1329
    %v2853 = vunpack.c.h.b16 %v1329
    %v2854 = vunpack.c.l.b16 %v1330
    %v2855 = vunpack.c.h.b16 %v1330
    %v2856 = vunpack.c.l.b16 %v1331
    %v2857 = vunpack.c.h.b16 %v1331
    %v2858 = vunpack.c.l.b16 %v1332
    %v2859 = vunpack.c.h.b16 %v1332
    %v2860 = vunpack.c.l.b16 %v1333
    %v2861 = vunpack.c.h.b16 %v1333
    %v2862 = vunpack.c.l.b16 %v1334
    %v2863 = vunpack.c.h.b16 %v1334
    %v2864 = vunpack.c.l.b16 %v1335
    %v2865 = vunpack.c.h.b16 %v1335
    %v2866 = vunpack.c.l.b16 %v1336
    %v2867 = vunpack.c.h.b16 %v1336
    %v2868 = vunpack.c.l.b16 %v1337
    %v2869 = vunpack.c.h.b16 %v1337
    %v2870 = vunpack.c.l.b16 %v1338
    %v2871 = vunpack.c.h.b16 %v1338
    %v2872 = vunpack.c.l.b16 %v1339
    %v2873 = vunpack.c.h.b16 %v1339
    %v2874 = vunpack.c.l.b16 %v1340
    %v2875 = vunpack.c.h.b16 %v1340
    %v2876 = vunpack.c.l.b16 %v1341
    %v2877 = vunpack.c.h.b16 %v1341
    %v2878 = vunpack.c.l.b16 %v1342
    %v2879 = vunpack.c.h.b16 %v1342
    %v2880 = vunpack.c.l.b16 %v1343
    %v2881 = vunpack.c.h.b16 %v1343
    %v2882 = vunpack.c.l.b16 %v1344
    %v2883 = vunpack.c.h.b16 %v1344
    %v2884 = vunpack.c.l.b16 %v1345
    %v2885 = vunpack.c.h.b16 %v1345
    %v2886 = vunpack.c.l.b16 %v1346
    %v2887 = vunpack.c.h.b16 %v1346
    %v2888 = vunpack.c.l.b16 %v1347
    %v2889 = vunpack.c.h.b16 %v1347
    %v2890 = vunpack.c.l.b16 %v1348
    %v2891 = vunpack.c.h.b16 %v1348
    %v2892 = vunpack.c.l.b16 %v1349
    %v2893 = vunpack.c.h.b16 %v1349
    %v2894 = vunpack.c.l.b16 %v1350
    %v2895 = vunpack.c.h.b16 %v1350
    %v2896 = vunpack.c.l.b16 %v1351
    %v2897 = vunpack.c.h.b16 %v1351
    %v2898 = vunpack.c.l.b16 %v1352
    %v2899 = vunpack.c.h.b16 %v1352
    %v2900 = vunpack.c.l.b16 %v1353
    %v2901 = vunpack.c.h.b16 %v1353
    %v2902 = vunpack.c.l.b16 %v1354
    %v2903 = vunpack.c.h.b16 %v1354
    %v2904 = vunpack.c.l.b16 %v1355
    %v2905 = vunpack.c.h.b16 %v1355
    %v2906 = vunpack.c.l.b16 %v1356
    %v2907 = vunpack.c.h.b16 %v1356
    %v2908 = vunpack.c.l.b16 %v1357
    %v2909 = vunpack.c.h.b16 %v1357
    %v2910 = vunpack.c.l.b16 %v1358
    %v2911 = vunpack.c.h.b16 %v1358
    %v2912 = vunpack.c.l.b16 %v1359
    %v2913 = vunpack.c.h.b16 %v1359
    %v2914 = vunpack.c.l.b16 %v1360
    %v2915 = vunpack.c.h.b16 %v1360
    %v2916 = vunpack.c.l.b16 %v1361
    %v2917 = vunpack.c.h.b16 %v1361
    %v2918 = vunpack.c.l.b16 %v1362
    %v2919 = vunpack.c.h.b16 %v1362
    %v2920 = vunpack.c.l.b16 %v1363
    %v2921 = vunpack.c.h.b16 %v1363
    %v2922 = vpack.c.b16 %v1902, %v1898
    %v2923 = vpack.c.b16 %v1903, %v1899
    %v2924 = vpack.c.b16 %v1904, %v1900
    %v2925 = vpack.c.b16 %v1905, %v1901
    %v2926 = vpack.c.b16 %v1910, %v1906
    %v2927 = vpack.c.b16 %v1911, %v1907
    %v2928 = vpack.c.b16 %v1912, %v1908
    %v2929 = vpack.c.b16 %v1913, %v1909
    %v2930 = vpack.c.b16 %v1918, %v1914
    %v2931 = vpack.c.b16 %v1919, %v1915
    %v2932 = vpack.c.b16 %v1920, %v1916
    %v2933 = vpack.c.b16 %v1921, %v1917
    %v2934 = vpack.c.b16 %v1926, %v1922
    %v2935 = vpack.c.b16 %v1927, %v1923
    %v2936 = vpack.c.b16 %v1928, %v1924
    %v2937 = vpack.c.b16 %v1929, %v1925
    %v2938 = vpack.c.b16 %v1934, %v1930
    %v2939 = vpack.c.b16 %v1935, %v1931
    %v2940 = vpack.c.b16 %v1936, %v1932
    %v2941 = vpack.c.b16 %v1937, %v1933
    %v2942 = vpack.c.b16 %v1942, %v1938
    %v2943 = vpack.c.b16 %v1943, %v1939
    %v2944 = vpack.c.b16 %v1944, %v1940
    %v2945 = vpack.c.b16 %v1945, %v1941
    %v2946 = vpack.c.b16 %v1950, %v1946
    %v2947 = vpack.c.b16 %v1951, %v1947
    %v2948 = vpack.c.b16 %v1952, %v1948
    %v2949 = vpack.c.b16 %v1953, %v1949
    %v2950 = vpack.c.b16 %v1958, %v1954
    %v2951 = vpack.c.b16 %v1959, %v1955
    %v2952 = vpack.c.b16 %v1960, %v1956
    %v2953 = vpack.c.b16 %v1961, %v1957
    %v2954 = vpack.c.b16 %v1966, %v1962
    %v2955 = vpack.c.b16 %v1967, %v1963
    %v2956 = vpack.c.b16 %v1968, %v1964
    %v2957 = vpack.c.b16 %v1969, %v1965
    %v2958 = vpack.c.b16 %v1974, %v1970
    %v2959 = vpack.c.b16 %v1975, %v1971
    %v2960 = vpack.c.b16 %v1976, %v1972
    %v2961 = vpack.c.b16 %v1977, %v1973
    %v2962 = vpack.c.b16 %v1982, %v1978
    %v2963 = vpack.c.b16 %v1983, %v1979
    %v2964 = vpack.c.b16 %v1984, %v1980
    %v2965 = vpack.c.b16 %v1985, %v1981
    %v2966 = vpack.c.b16 %v1990, %v1986
    %v2967 = vpack.c.b16 %v1991, %v1987
    %v2968 = vpack.c.b16 %v1992, %v1988
    %v2969 = vpack.c.b16 %v1993, %v1989
    %v2970 = vpack.c.b16 %v1998, %v1994
    %v2971 = vpack.c.b16 %v1999, %v1995
    %v2972 = vpack.c.b16 %v2000, %v1996
    %v2973 = vpack.c.b16 %v2001, %v1997
    %v2974 = vpack.c.b16 %v2006, %v2002
    %v2975 = vpack.c.b16 %v2007, %v2003
    %v2976 = vpack.c.b16 %v2008, %v2004
    %v2977 = vpack.c.b16 %v2009, %v2005
    %v2978 = vpack.c.b16 %v2014, %v2010
    %v2979 = vpack.c.b16 %v2015, %v2011
    %v2980 = vpack.c.b16 %v2016, %v2012
    %v2981 = vpack.c.b16 %v2017, %v2013
    %v2982 = vpack.c.b16 %v2022, %v2018
    %v2983 = vpack.c.b16 %v2023, %v2019
    %v2984 = vpack.c.b16 %v2024, %v2020
    %v2985 = vpack.c.b16 %v2025, %v2021
    %v2986 = vpack.c.b16 %v2030, %v2026
    %v2987 = vpack.c.b16 %v2031, %v2027
    %v2988 = vpack.c.b16 %v2032, %v2028
    %v2989 = vpack.c.b16 %v2033, %v2029
    %v2990 = vpack.c.b16 %v2038, %v2034
    %v2991 = vpack.c.b16 %v2039, %v2035
    %v2992 = vpack.c.b16 %v2040, %v2036
    %v2993 = vpack.c.b16 %v2041, %v2037
    %v2994 = vpack.c.b16 %v2046, %v2042
    %v2995 = vpack.c.b16 %v2047, %v2043
    %v2996 = vpack.c.b16 %v2048, %v2044
    %v2997 = vpack.c.b16 %v2049, %v2045
    %v2998 = vpack.c.b16 %v2054, %v2050
    %v2999 = vpack.c.b16 %v2055, %v2051
    %v3000 = vpack.c.b16 %v2056, %v2052
    %v3001 = vpack.c.b16 %v2057, %v2053
    %v3002 = vpack.c.b16 %v2062, %v2058
    %v3003 = vpack.c.b16 %v2063, %v2059
    %v3004 = vpack.c.b16 %v2064, %v2060
    %v3005 = vpack.c.b16 %v2065, %v2061
    %v3006 = vpack.c.b16 %v2070, %v2066
    %v3007 = vpack.c.b16 %v2071, %v2067
    %v3008 = vpack.c.b16 %v2072, %v2068
    %v3009 = vpack.c.b16 %v2073, %v2069
    %v3010 = vpack.c.b16 %v2078, %v2074
    %v3011 = vpack.c.b16 %v2079, %v2075
    %v3012 = vpack.c.b16 %v2080, %v2076
    %v3013 = vpack.c.b16 %v2081, %v2077
    %v3014 = vpack.c.b16 %v2086, %v2082
    %v3015 = vpack.c.b16 %v2087, %v2083
    %v3016 = vpack.c.b16 %v2088, %v2084
    %v3017 = vpack.c.b16 %v2089, %v2085
    %v3018 = vpack.c.b16 %v2094, %v2090
    %v3019 = vpack.c.b16 %v2095, %v2091
    %v3020 = vpack.c.b16 %v2096, %v2092
    %v3021 = vpack.c.b16 %v2097, %v2093
    %v3022 = vpack.c.b16 %v2102, %v2098
    %v3023 = vpack.c.b16 %v2103, %v2099
    %v3024 = vpack.c.b16 %v2104, %v2100
    %v3025 = vpack.c.b16 %v2105, %v2101
    %v3026 = vpack.c.b16 %v2110, %v2106
    %v3027 = vpack.c.b16 %v2111, %v2107
    %v3028 = vpack.c.b16 %v2112, %v2108
    %v3029 = vpack.c.b16 %v2113, %v2109
    %v3030 = vpack.c.b16 %v2118, %v2114
    %v3031 = vpack.c.b16 %v2119, %v2115
    %v3032 = vpack.c.b16 %v2120, %v2116
    %v3033 = vpack.c.b16 %v2121, %v2117
    %v3034 = vpack.c.b16 %v2126, %v2122
    %v3035 = vpack.c.b16 %v2127, %v2123
    %v3036 = vpack.c.b16 %v2128, %v2124
    %v3037 = vpack.c.b16 %v2129, %v2125
    %v3038 = vpack.c.b16 %v2134, %v2130
    %v3039 = vpack.c.b16 %v2135, %v2131
    %v3040 = vpack.c.b16 %v2136, %v2132
    %v3041 = vpack.c.b16 %v2137, %v2133
    %v3042 = vpack.c.b16 %v2142, %v2138
    %v3043 = vpack.c.b16 %v2143, %v2139
    %v3044 = vpack.c.b16 %v2144, %v2140
    %v3045 = vpack.c.b16 %v2145, %v2141
    %v3046 = vpack.c.b16 %v2150, %v2146
    %v3047 = vpack.c.b16 %v2151, %v2147
    %v3048 = vpack.c.b16 %v2152, %v2148
    %v3049 = vpack.c.b16 %v2153, %v2149
    %v3050 = vpack.c.b16 %v2158, %v2154
    %v3051 = vpack.c.b16 %v2159, %v2155
    %v3052 = vpack.c.b16 %v2160, %v2156
    %v3053 = vpack.c.b16 %v2161, %v2157
    %v3054 = vpack.c.b16 %v2166, %v2162
    %v3055 = vpack.c.b16 %v2167, %v2163
    %v3056 = vpack.c.b16 %v2168, %v2164
    %v3057 = vpack.c.b16 %v2169, %v2165
    %v3058 = vpack.c.b16 %v2174, %v2170
    %v3059 = vpack.c.b16 %v2175, %v2171
    %v3060 = vpack.c.b16 %v2176, %v2172
    %v3061 = vpack.c.b16 %v2177, %v2173
    %v3062 = vpack.c.b16 %v2182, %v2178
    %v3063 = vpack.c.b16 %v2183, %v2179
    %v3064 = vpack.c.b16 %v2184, %v2180
    %v3065 = vpack.c.b16 %v2185, %v2181
    %v3066 = vpack.c.b16 %v2190, %v2186
    %v3067 = vpack.c.b16 %v2191, %v2187
    %v3068 = vpack.c.b16 %v2192, %v2188
    %v3069 = vpack.c.b16 %v2193, %v2189
    %v3070 = vpack.c.b16 %v2198, %v2194
    %v3071 = vpack.c.b16 %v2199, %v2195
    %v3072 = vpack.c.b16 %v2200, %v2196
    %v3073 = vpack.c.b16 %v2201, %v2197
    %v3074 = vpack.c.b16 %v2206, %v2202
    %v3075 = vpack.c.b16 %v2207, %v2203
    %v3076 = vpack.c.b16 %v2208, %v2204
    %v3077 = vpack.c.b16 %v2209, %v2205
    %v3078 = vpack.c.b16 %v2214, %v2210
    %v3079 = vpack.c.b16 %v2215, %v2211
    %v3080 = vpack.c.b16 %v2216, %v2212
    %v3081 = vpack.c.b16 %v2217, %v2213
    %v3082 = vpack.c.b16 %v2222, %v2218
    %v3083 = vpack.c.b16 %v2223, %v2219
    %v3084 = vpack.c.b16 %v2224, %v2220
    %v3085 = vpack.c.b16 %v2225, %v2221
    %v3086 = vpack.c.b16 %v2230, %v2226
    %v3087 = vpack.c.b16 %v2231, %v2227
    %v3088 = vpack.c.b16 %v2232, %v2228
    %v3089 = vpack.c.b16 %v2233, %v2229
    %v3090 = vpack.c.b16 %v2238, %v2234
    %v3091 = vpack.c.b16 %v2239, %v2235
    %v3092 = vpack.c.b16 %v2240, %v2236
    %v3093 = vpack.c.b16 %v2241, %v2237
    %v3094 = vpack.c.b16 %v2246, %v2242
    %v3095 = vpack.c.b16 %v2247, %v2243
    %v3096 = vpack.c.b16 %v2248, %v2244
    %v3097 = vpack.c.b16 %v2249, %v2245
    %v3098 = vpack.c.b16 %v2254, %v2250
    %v3099 = vpack.c.b16 %v2255, %v2251
    %v3100 = vpack.c.b16 %v2256, %v2252
    %v3101 = vpack.c.b16 %v2257, %v2253
    %v3102 = vpack.c.b16 %v2262, %v2258
    %v3103 = vpack.c.b16 %v2263, %v2259
    %v3104 = vpack.c.b16 %v2264, %v2260
    %v3105 = vpack.c.b16 %v2265, %v2261
    %v3106 = vpack.c.b16 %v2270, %v2266
    %v3107 = vpack.c.b16 %v2271, %v2267
    %v3108 = vpack.c.b16 %v2272, %v2268
    %v3109 = vpack.c.b16 %v2273, %v2269
    %v3110 = vpack.c.b16 %v2278, %v2274
    %v3111 = vpack.c.b16 %v2279, %v2275
    %v3112 = vpack.c.b16 %v2280, %v2276
    %v3113 = vpack.c.b16 %v2281, %v2277
    %v3114 = vpack.c.b16 %v2286, %v2282
    %v3115 = vpack.c.b16 %v2287, %v2283
    %v3116 = vpack.c.b16 %v2288, %v2284
    %v3117 = vpack.c.b16 %v2289, %v2285
    %v3118 = vpack.c.b16 %v2294, %v2290
    %v3119 = vpack.c.b16 %v2295, %v2291
    %v3120 = vpack.c.b16 %v2296, %v2292
    %v3121 = vpack.c.b16 %v2297, %v2293
    %v3122 = vpack.c.b16 %v2302, %v2298
    %v3123 = vpack.c.b16 %v2303, %v2299
    %v3124 = vpack.c.b16 %v2304, %v2300
    %v3125 = vpack.c.b16 %v2305, %v2301
    %v3126 = vpack.c.b16 %v2310, %v2306
    %v3127 = vpack.c.b16 %v2311, %v2307
    %v3128 = vpack.c.b16 %v2312, %v2308
    %v3129 = vpack.c.b16 %v2313, %v2309
    %v3130 = vpack.c.b16 %v2318, %v2314
    %v3131 = vpack.c.b16 %v2319, %v2315
    %v3132 = vpack.c.b16 %v2320, %v2316
    %v3133 = vpack.c.b16 %v2321, %v2317
    %v3134 = vpack.c.b16 %v2326, %v2322
    %v3135 = vpack.c.b16 %v2327, %v2323
    %v3136 = vpack.c.b16 %v2328, %v2324
    %v3137 = vpack.c.b16 %v2329, %v2325
    %v3138 = vpack.c.b16 %v2334, %v2330
    %v3139 = vpack.c.b16 %v2335, %v2331
    %v3140 = vpack.c.b16 %v2336, %v2332
    %v3141 = vpack.c.b16 %v2337, %v2333
    %v3142 = vpack.c.b16 %v2342, %v2338
    %v3143 = vpack.c.b16 %v2343, %v2339
    %v3144 = vpack.c.b16 %v2344, %v2340
    %v3145 = vpack.c.b16 %v2345, %v2341
    %v3146 = vpack.c.b16 %v2350, %v2346
    %v3147 = vpack.c.b16 %v2351, %v2347
    %v3148 = vpack.c.b16 %v2352, %v2348
    %v3149 = vpack.c.b16 %v2353, %v2349
    %v3150 = vpack.c.b16 %v2358, %v2354
    %v3151 = vpack.c.b16 %v2359, %v2355
    %v3152 = vpack.c.b16 %v2360, %v2356
    %v3153 = vpack.c.b16 %v2361, %v2357
    %v3154 = vpack.c.b16 %v2366, %v2362
    %v3155 = vpack.c.b16 %v2367, %v2363
    %v3156 = vpack.c.b16 %v2368, %v2364
    %v3157 = vpack.c.b16 %v2369, %v2365
    %v3158 = vpack.c.b16 %v2374, %v2370
    %v3159 = vpack.c.b16 %v2375, %v2371
    %v3160 = vpack.c.b16 %v2376, %v2372
    %v3161 = vpack.c.b16 %v2377, %v2373
    %v3162 = vpack.c.b16 %v2382, %v2378
    %v3163 = vpack.c.b16 %v2383, %v2379
    %v3164 = vpack.c.b16 %v2384, %v2380
    %v3165 = vpack.c.b16 %v2385, %v2381
    %v3166 = vpack.c.b16 %v2390, %v2386
    %v3167 = vpack.c.b16 %v2391, %v2387
    %v3168 = vpack.c.b16 %v2392, %v2388
    %v3169 = vpack.c.b16 %v2393, %v2389
    %v3170 = vpack.c.b16 %v2398, %v2394
    %v3171 = vpack.c.b16 %v2399, %v2395
    %v3172 = vpack.c.b16 %v2400, %v2396
    %v3173 = vpack.c.b16 %v2401, %v2397
    %v3174 = vpack.c.b16 %v2406, %v2402
    %v3175 = vpack.c.b16 %v2407, %v2403
    %v3176 = vpack.c.b16 %v2408, %v2404
    %v3177 = vpack.c.b16 %v2409, %v2405
    %v3178 = vpack.c.b16 %v2414, %v2410
    %v3179 = vpack.c.b16 %v2415, %v2411
    %v3180 = vpack.c.b16 %v2416, %v2412
    %v3181 = vpack.c.b16 %v2417, %v2413
    %v3182 = vpack.c.b16 %v2422, %v2418
    %v3183 = vpack.c.b16 %v2423, %v2419
    %v3184 = vpack.c.b16 %v2424, %v2420
    %v3185 = vpack.c.b16 %v2425, %v2421
    %v3186 = vpack.c.b16 %v2430, %v2426
    %v3187 = vpack.c.b16 %v2431, %v2427
    %v3188 = vpack.c.b16 %v2432, %v2428
    %v3189 = vpack.c.b16 %v2433, %v2429
    %v3190 = vpack.c.b16 %v2438, %v2434
    %v3191 = vpack.c.b16 %v2439, %v2435
    %v3192 = vpack.c.b16 %v2440, %v2436
    %v3193 = vpack.c.b16 %v2441, %v2437
    %v3194 = vpack.c.b16 %v2446, %v2442
    %v3195 = vpack.c.b16 %v2447, %v2443
    %v3196 = vpack.c.b16 %v2448, %v2444
    %v3197 = vpack.c.b16 %v2449, %v2445
    %v3198 = vpack.c.b16 %v2454, %v2450
    %v3199 = vpack.c.b16 %v2455, %v2451
    %v3200 = vpack.c.b16 %v2456, %v2452
    %v3201 = vpack.c.b16 %v2457, %v2453
    %v3202 = vpack.c.b16 %v2462, %v2458
    %v3203 = vpack.c.b16 %v2463, %v2459
    %v3204 = vpack.c.b16 %v2464, %v2460
    %v3205 = vpack.c.b16 %v2465, %v2461
    %v3206 = vpack.c.b16 %v2470, %v2466
    %v3207 = vpack.c.b16 %v2471, %v2467
    %v3208 = vpack.c.b16 %v2472, %v2468
    %v3209 = vpack.c.b16 %v2473, %v2469
    %v3210 = vpack.c.b16 %v2478, %v2474
    %v3211 = vpack.c.b16 %v2479, %v2475
    %v3212 = vpack.c.b16 %v2480, %v2476
    %v3213 = vpack.c.b16 %v2481, %v2477
    %v3214 = vpack.c.b16 %v2486, %v2482
    %v3215 = vpack.c.b16 %v2487, %v2483
    %v3216 = vpack.c.b16 %v2488, %v2484
    %v3217 = vpack.c.b16 %v2489, %v2485
    %v3218 = vpack.c.b16 %v2494, %v2490
    %v3219 = vpack.c.b16 %v2495, %v2491
    %v3220 = vpack.c.b16 %v2496, %v2492
    %v3221 = vpack.c.b16 %v2497, %v2493
    %v3222 = vpack.c.b16 %v2502, %v2498
    %v3223 = vpack.c.b16 %v2503, %v2499
    %v3224 = vpack.c.b16 %v2504, %v2500
    %v3225 = vpack.c.b16 %v2505, %v2501
    %v3226 = vpack.c.b16 %v2510, %v2506
    %v3227 = vpack.c.b16 %v2511, %v2507
    %v3228 = vpack.c.b16 %v2512, %v2508
    %v3229 = vpack.c.b16 %v2513, %v2509
    %v3230 = vpack.c.b16 %v2518, %v2514
    %v3231 = vpack.c.b16 %v2519, %v2515
    %v3232 = vpack.c.b16 %v2520, %v2516
    %v3233 = vpack.c.b16 %v2521, %v2517
    %v3234 = vpack.c.b16 %v2526, %v2522
    %v3235 = vpack.c.b16 %v2527, %v2523
    %v3236 = vpack.c.b16 %v2528, %v2524
    %v3237 = vpack.c.b16 %v2529, %v2525
    %v3238 = vpack.c.b16 %v2534, %v2530
    %v3239 = vpack.c.b16 %v2535, %v2531
    %v3240 = vpack.c.b16 %v2536, %v2532
    %v3241 = vpack.c.b16 %v2537, %v2533
    %v3242 = vpack.c.b16 %v2542, %v2538
    %v3243 = vpack.c.b16 %v2543, %v2539
    %v3244 = vpack.c.b16 %v2544, %v2540
    %v3245 = vpack.c.b16 %v2545, %v2541
    %v3246 = vpack.c.b16 %v2550, %v2546
    %v3247 = vpack.c.b16 %v2551, %v2547
    %v3248 = vpack.c.b16 %v2552, %v2548
    %v3249 = vpack.c.b16 %v2553, %v2549
    %v3250 = vpack.c.b16 %v2558, %v2554
    %v3251 = vpack.c.b16 %v2559, %v2555
    %v3252 = vpack.c.b16 %v2560, %v2556
    %v3253 = vpack.c.b16 %v2561, %v2557
    %v3254 = vpack.c.b16 %v2566, %v2562
    %v3255 = vpack.c.b16 %v2567, %v2563
    %v3256 = vpack.c.b16 %v2568, %v2564
    %v3257 = vpack.c.b16 %v2569, %v2565
    %v3258 = vpack.c.b16 %v2574, %v2570
    %v3259 = vpack.c.b16 %v2575, %v2571
    %v3260 = vpack.c.b16 %v2576, %v2572
    %v3261 = vpack.c.b16 %v2577, %v2573
    %v3262 = vpack.c.b16 %v2582, %v2578
    %v3263 = vpack.c.b16 %v2583, %v2579
    %v3264 = vpack.c.b16 %v2584, %v2580
    %v3265 = vpack.c.b16 %v2585, %v2581
    %v3266 = vpack.c.b16 %v2590, %v2586
    %v3267 = vpack.c.b16 %v2591, %v2587
    %v3268 = vpack.c.b16 %v2592, %v2588
    %v3269 = vpack.c.b16 %v2593, %v2589
    %v3270 = vpack.c.b16 %v2598, %v2594
    %v3271 = vpack.c.b16 %v2599, %v2595
    %v3272 = vpack.c.b16 %v2600, %v2596
    %v3273 = vpack.c.b16 %v2601, %v2597
    %v3274 = vpack.c.b16 %v2606, %v2602
    %v3275 = vpack.c.b16 %v2607, %v2603
    %v3276 = vpack.c.b16 %v2608, %v2604
    %v3277 = vpack.c.b16 %v2609, %v2605
    %v3278 = vpack.c.b16 %v2614, %v2610
    %v3279 = vpack.c.b16 %v2615, %v2611
    %v3280 = vpack.c.b16 %v2616, %v2612
    %v3281 = vpack.c.b16 %v2617, %v2613
    %v3282 = vpack.c.b16 %v2622, %v2618
    %v3283 = vpack.c.b16 %v2623, %v2619
    %v3284 = vpack.c.b16 %v2624, %v2620
    %v3285 = vpack.c.b16 %v2625, %v2621
    %v3286 = vpack.c.b16 %v2630, %v2626
    %v3287 = vpack.c.b16 %v2631, %v2627
    %v3288 = vpack.c.b16 %v2632, %v2628
    %v3289 = vpack.c.b16 %v2633, %v2629
    %v3290 = vpack.c.b16 %v2638, %v2634
    %v3291 = vpack.c.b16 %v2639, %v2635
    %v3292 = vpack.c.b16 %v2640, %v2636
    %v3293 = vpack.c.b16 %v2641, %v2637
    %v3294 = vpack.c.b16 %v2646, %v2642
    %v3295 = vpack.c.b16 %v2647, %v2643
    %v3296 = vpack.c.b16 %v2648, %v2644
    %v3297 = vpack.c.b16 %v2649, %v2645
    %v3298 = vpack.c.b16 %v2654, %v2650
    %v3299 = vpack.c.b16 %v2655, %v2651
    %v3300 = vpack.c.b16 %v2656, %v2652
    %v3301 = vpack.c.b16 %v2657, %v2653
    %v3302 = vpack.c.b16 %v2662, %v2658
    %v3303 = vpack.c.b16 %v2663, %v2659
    %v3304 = vpack.c.b16 %v2664, %v2660
    %v3305 = vpack.c.b16 %v2665, %v2661
    %v3306 = vpack.c.b16 %v2670, %v2666
    %v3307 = vpack.c.b16 %v2671, %v2667
    %v3308 = vpack.c.b16 %v2672, %v2668
    %v3309 = vpack.c.b16 %v2673, %v2669
    %v3310 = vpack.c.b16 %v2678, %v2674
    %v3311 = vpack.c.b16 %v2679, %v2675
    %v3312 = vpack.c.b16 %v2680, %v2676
    %v3313 = vpack.c.b16 %v2681, %v2677
    %v3314 = vpack.c.b16 %v2686, %v2682
    %v3315 = vpack.c.b16 %v2687, %v2683
    %v3316 = vpack.c.b16 %v2688, %v2684
    %v3317 = vpack.c.b16 %v2689, %v2685
    %v3318 = vpack.c.b16 %v2694, %v2690
    %v3319 = vpack.c.b16 %v2695, %v2691
    %v3320 = vpack.c.b16 %v2696, %v2692
    %v3321 = vpack.c.b16 %v2697, %v2693
    %v3322 = vpack.c.b16 %v2702, %v2698
    %v3323 = vpack.c.b16 %v2703, %v2699
    %v3324 = vpack.c.b16 %v2704, %v2700
    %v3325 = vpack.c.b16 %v2705, %v2701
    %v3326 = vpack.c.b16 %v2710, %v2706
    %v3327 = vpack.c.b16 %v2711, %v2707
    %v3328 = vpack.c.b16 %v2712, %v2708
    %v3329 = vpack.c.b16 %v2713, %v2709
    %v3330 = vpack.c.b16 %v2718, %v2714
    %v3331 = vpack.c.b16 %v2719, %v2715
    %v3332 = vpack.c.b16 %v2720, %v2716
    %v3333 = vpack.c.b16 %v2721, %v2717
    %v3334 = vpack.c.b16 %v2726, %v2722
    %v3335 = vpack.c.b16 %v2727, %v2723
    %v3336 = vpack.c.b16 %v2728, %v2724
    %v3337 = vpack.c.b16 %v2729, %v2725
    %v3338 = vpack.c.b16 %v2734, %v2730
    %v3339 = vpack.c.b16 %v2735, %v2731
    %v3340 = vpack.c.b16 %v2736, %v2732
    %v3341 = vpack.c.b16 %v2737, %v2733
    %v3342 = vpack.c.b16 %v2742, %v2738
    %v3343 = vpack.c.b16 %v2743, %v2739
    %v3344 = vpack.c.b16 %v2744, %v2740
    %v3345 = vpack.c.b16 %v2745, %v2741
    %v3346 = vpack.c.b16 %v2750, %v2746
    %v3347 = vpack.c.b16 %v2751, %v2747
    %v3348 = vpack.c.b16 %v2752, %v2748
    %v3349 = vpack.c.b16 %v2753, %v2749
    %v3350 = vpack.c.b16 %v2758, %v2754
    %v3351 = vpack.c.b16 %v2759, %v2755
    %v3352 = vpack.c.b16 %v2760, %v2756
    %v3353 = vpack.c.b16 %v2761, %v2757
    %v3354 = vpack.c.b16 %v2766, %v2762
    %v3355 = vpack.c.b16 %v2767, %v2763
    %v3356 = vpack.c.b16 %v2768, %v2764
    %v3357 = vpack.c.b16 %v2769, %v2765
    %v3358 = vpack.c.b16 %v2774, %v2770
    %v3359 = vpack.c.b16 %v2775, %v2771
    %v3360 = vpack.c.b16 %v2776, %v2772
    %v3361 = vpack.c.b16 %v2777, %v2773
    %v3362 = vpack.c.b16 %v2782, %v2778
    %v3363 = vpack.c.b16 %v2783, %v2779
    %v3364 = vpack.c.b16 %v2784, %v2780
    %v3365 = vpack.c.b16 %v2785, %v2781
    %v3366 = vpack.c.b16 %v2790, %v2786
    %v3367 = vpack.c.b16 %v2791, %v2787
    %v3368 = vpack.c.b16 %v2792, %v2788
    %v3369 = vpack.c.b16 %v2793, %v2789
    %v3370 = vpack.c.b16 %v2798, %v2794
    %v3371 = vpack.c.b16 %v2799, %v2795
    %v3372 = vpack.c.b16 %v2800, %v2796
    %v3373 = vpack.c.b16 %v2801, %v2797
    %v3374 = vpack.c.b16 %v2806, %v2802
    %v3375 = vpack.c.b16 %v2807, %v2803
    %v3376 = vpack.c.b16 %v2808, %v2804
    %v3377 = vpack.c.b16 %v2809, %v2805
    %v3378 = vpack.c.b16 %v2814, %v2810
    %v3379 = vpack.c.b16 %v2815, %v2811
    %v3380 = vpack.c.b16 %v2816, %v2812
    %v3381 = vpack.c.b16 %v2817, %v2813
    %v3382 = vpack.c.b16 %v2822, %v2818
    %v3383 = vpack.c.b16 %v2823, %v2819
    %v3384 = vpack.c.b16 %v2824, %v2820
    %v3385 = vpack.c.b16 %v2825, %v2821
    %v3386 = vpack.c.b16 %v2830, %v2826
    %v3387 = vpack.c.b16 %v2831, %v2827
    %v3388 = vpack.c.b16 %v2832, %v2828
    %v3389 = vpack.c.b16 %v2833, %v2829
    %v3390 = vpack.c.b16 %v2838, %v2834
    %v3391 = vpack.c.b16 %v2839, %v2835
    %v3392 = vpack.c.b16 %v2840, %v2836
    %v3393 = vpack.c.b16 %v2841, %v2837
    %v3394 = vpack.c.b16 %v2846, %v2842
    %v3395 = vpack.c.b16 %v2847, %v2843
    %v3396 = vpack.c.b16 %v2848, %v2844
    %v3397 = vpack.c.b16 %v2849, %v2845
    %v3398 = vpack.c.b16 %v2854, %v2850
    %v3399 = vpack.c.b16 %v2855, %v2851
    %v3400 = vpack.c.b16 %v2856, %v2852
    %v3401 = vpack.c.b16 %v2857, %v2853
    %v3402 = vpack.c.b16 %v2862, %v2858
    %v3403 = vpack.c.b16 %v2863, %v2859
    %v3404 = vpack.c.b16 %v2864, %v2860
    %v3405 = vpack.c.b16 %v2865, %v2861
    %v3406 = vpack.c.b16 %v2870, %v2866
    %v3407 = vpack.c.b16 %v2871, %v2867
    %v3408 = vpack.c.b16 %v2872, %v2868
    %v3409 = vpack.c.b16 %v2873, %v2869
    %v3410 = vpack.c.b16 %v2878, %v2874
    %v3411 = vpack.c.b16 %v2879, %v2875
    %v3412 = vpack.c.b16 %v2880, %v2876
    %v3413 = vpack.c.b16 %v2881, %v2877
    %v3414 = vpack.c.b16 %v2886, %v2882
    %v3415 = vpack.c.b16 %v2887, %v2883
    %v3416 = vpack.c.b16 %v2888, %v2884
    %v3417 = vpack.c.b16 %v2889, %v2885
    %v3418 = vpack.c.b16 %v2894, %v2890
    %v3419 = vpack.c.b16 %v2895, %v2891
    %v3420 = vpack.c.b16 %v2896, %v2892
    %v3421 = vpack.c.b16 %v2897, %v2893
    %v3422 = vpack.c.b16 %v2902, %v2898
    %v3423 = vpack.c.b16 %v2903, %v2899
    %v3424 = vpack.c.b16 %v2904, %v2900
    %v3425 = vpack.c.b16 %v2905, %v2901
    %v3426 = vpack.c.b16 %v2910, %v2906
    %v3427 = vpack.c.b16 %v2911, %v2907
    %v3428 = vpack.c.b16 %v2912, %v2908
    %v3429 = vpack.c.b16 %v2913, %v2909
    %v3430 = vpack.c.b16 %v2918, %v2914
    %v3431 = vpack.c.b16 %v2919, %v2915
    %v3432 = vpack.c.b16 %v2920, %v2916
    %v3433 = vpack.c.b16 %v2921, %v2917
    %3946 = vmatprep.subr.bf16.mxu0 %v2923
    %3947 = vmatpush1.bf16.msra.mxu0 %v2922
    %3948 = vmatprep.subr.bf16.mxu0 %v2927
    %3949 = vmatpush1.bf16.msra.mxu0 %v2926
    %3950 = vmatprep.subr.bf16.mxu0 %v2931
    %3951 = vmatpush1.bf16.msra.mxu0 %v2930
    %3952 = vmatprep.subr.bf16.mxu0 %v2935
    %3953 = vmatpush1.bf16.msra.mxu0 %v2934
    %3954 = vmatprep.subr.bf16.mxu0 %v2939
    %3955 = vmatpush1.bf16.msra.mxu0 %v2938
    %3956 = vmatprep.subr.bf16.mxu0 %v2943
    %3957 = vmatpush1.bf16.msra.mxu0 %v2942
    %3958 = vmatprep.subr.bf16.mxu0 %v2947
    %3959 = vmatpush1.bf16.msra.mxu0 %v2946
    %3960 = vmatprep.subr.bf16.mxu0 %v2951
    %3961 = vmatpush1.bf16.msra.mxu0 %v2950
    %3962 = vmatprep.subr.bf16.mxu0 %v2955
    %3963 = vmatpush1.bf16.msra.mxu0 %v2954
    %3964 = vmatprep.subr.bf16.mxu0 %v2959
    %3965 = vmatpush1.bf16.msra.mxu0 %v2958
    %3966 = vmatprep.subr.bf16.mxu0 %v2963
    %3967 = vmatpush1.bf16.msra.mxu0 %v2962
    %3968 = vmatprep.subr.bf16.mxu0 %v2967
    %3969 = vmatpush1.bf16.msra.mxu0 %v2966
    %3970 = vmatprep.subr.bf16.mxu0 %v2971
    %3971 = vmatpush1.bf16.msra.mxu0 %v2970
    %3972 = vmatprep.subr.bf16.mxu0 %v2975
    %3973 = vmatpush1.bf16.msra.mxu0 %v2974
    %3974 = vmatprep.subr.bf16.mxu0 %v2979
    %3975 = vmatpush1.bf16.msra.mxu0 %v2978
    %3976 = vmatprep.subr.bf16.mxu0 %v2983
    %3977 = vmatpush1.bf16.msra.mxu0 %v2982
    %3978 = vmatprep.mubr.bf16.mxu0 %v837
    %3979 = vmatmul.mubr.bf16.gmra.mrb[0].mxu0 %v836
    %v3980 = vpop.f32.mrb[0].mxu0
    %v3981 = vadd.f32 %v1369, %v3980
    %v3982 = vpop.f32.mrb[0].mxu0
    %v3983 = vadd.f32 %v1373, %v3982
    %v3984 = vpop.f32.mrb[0].mxu0
    %v3985 = vpop.f32.mrb[0].mxu0
    %3986 = vdwg.mxu0
    %3987 = vmatprep.subr.bf16.mxu0 %v2987
    %3988 = vmatpush1.bf16.msra.mxu0 %v2986
    %3989 = vmatprep.subr.bf16.mxu0 %v2991
    %3990 = vmatpush1.bf16.msra.mxu0 %v2990
    %3991 = vmatprep.subr.bf16.mxu0 %v2995
    %3992 = vmatpush1.bf16.msra.mxu0 %v2994
    %3993 = vmatprep.subr.bf16.mxu0 %v2999
    %3994 = vmatpush1.bf16.msra.mxu0 %v2998
    %3995 = vmatprep.subr.bf16.mxu0 %v3003
    %3996 = vmatpush1.bf16.msra.mxu0 %v3002
    %3997 = vmatprep.subr.bf16.mxu0 %v3007
    %3998 = vmatpush1.bf16.msra.mxu0 %v3006
    %3999 = vmatprep.subr.bf16.mxu0 %v3011
    %4000 = vmatpush1.bf16.msra.mxu0 %v3010
    %4001 = vmatprep.subr.bf16.mxu0 %v3015
    %4002 = vmatpush1.bf16.msra.mxu0 %v3014
    %4003 = vmatprep.subr.bf16.mxu0 %v3019
    %4004 = vmatpush1.bf16.msra.mxu0 %v3018
    %4005 = vmatprep.subr.bf16.mxu0 %v3023
    %4006 = vmatpush1.bf16.msra.mxu0 %v3022
    %4007 = vmatprep.subr.bf16.mxu0 %v3027
    %4008 = vmatpush1.bf16.msra.mxu0 %v3026
    %4009 = vmatprep.subr.bf16.mxu0 %v3031
    %4010 = vmatpush1.bf16.msra.mxu0 %v3030
    %4011 = vmatprep.subr.bf16.mxu0 %v3035
    %4012 = vmatpush1.bf16.msra.mxu0 %v3034
    %4013 = vmatprep.subr.bf16.mxu0 %v3039
    %4014 = vmatpush1.bf16.msra.mxu0 %v3038
    %4015 = vmatprep.subr.bf16.mxu0 %v3043
    %4016 = vmatpush1.bf16.msra.mxu0 %v3042
    %4017 = vmatprep.subr.bf16.mxu0 %v3047
    %4018 = vmatpush1.bf16.msra.mxu0 %v3046
    %4019 = vmatprep.mubr.bf16.mxu0 %v839
    %4020 = vmatmul.mubr.bf16.gmra.mrb[0].mxu0 %v838
    %v4021 = vpop.f32.mrb[0].mxu0
    %v4022 = vadd.f32 %v3981, %v4021
    %v4023 = vpop.f32.mrb[0].mxu0
    %v4024 = vadd.f32 %v3983, %v4023
    %v4025 = vpop.f32.mrb[0].mxu0
    %v4026 = vpop.f32.mrb[0].mxu0
    %4027 = vdwg.mxu0
    %4028 = vmatprep.subr.bf16.mxu0 %v3051
    %4029 = vmatpush1.bf16.msra.mxu0 %v3050
    %4030 = vmatprep.subr.bf16.mxu0 %v3055
    %4031 = vmatpush1.bf16.msra.mxu0 %v3054
    %4032 = vmatprep.subr.bf16.mxu0 %v3059
    %4033 = vmatpush1.bf16.msra.mxu0 %v3058
    %4034 = vmatprep.subr.bf16.mxu0 %v3063
    %4035 = vmatpush1.bf16.msra.mxu0 %v3062
    %4036 = vmatprep.subr.bf16.mxu0 %v3067
    %4037 = vmatpush1.bf16.msra.mxu0 %v3066
    %4038 = vmatprep.subr.bf16.mxu0 %v3071
    %4039 = vmatpush1.bf16.msra.mxu0 %v3070
    %4040 = vmatprep.subr.bf16.mxu0 %v3075
    %4041 = vmatpush1.bf16.msra.mxu0 %v3074
    %4042 = vmatprep.subr.bf16.mxu0 %v3079
    %4043 = vmatpush1.bf16.msra.mxu0 %v3078
    %4044 = vmatprep.subr.bf16.mxu0 %v3083
    %4045 = vmatpush1.bf16.msra.mxu0 %v3082
    %4046 = vmatprep.subr.bf16.mxu0 %v3087
    %4047 = vmatpush1.bf16.msra.mxu0 %v3086
    %4048 = vmatprep.subr.bf16.mxu0 %v3091
    %4049 = vmatpush1.bf16.msra.mxu0 %v3090
    %4050 = vmatprep.subr.bf16.mxu0 %v3095
    %4051 = vmatpush1.bf16.msra.mxu0 %v3094
    %4052 = vmatprep.subr.bf16.mxu0 %v3099
    %4053 = vmatpush1.bf16.msra.mxu0 %v3098
    %4054 = vmatprep.subr.bf16.mxu0 %v3103
    %4055 = vmatpush1.bf16.msra.mxu0 %v3102
    %4056 = vmatprep.subr.bf16.mxu0 %v3107
    %4057 = vmatpush1.bf16.msra.mxu0 %v3106
    %4058 = vmatprep.subr.bf16.mxu0 %v3111
    %4059 = vmatpush1.bf16.msra.mxu0 %v3110
    %4060 = vmatprep.mubr.bf16.mxu0 %v841
    %4061 = vmatmul.mubr.bf16.gmra.mrb[0].mxu0 %v840
    %v4062 = vpop.f32.mrb[0].mxu0
    %v4063 = vadd.f32 %v4022, %v4062
    %v4064 = vpop.f32.mrb[0].mxu0
    %v4065 = vadd.f32 %v4024, %v4064
    %v4066 = vpop.f32.mrb[0].mxu0
    %v4067 = vpop.f32.mrb[0].mxu0
    %4068 = vdwg.mxu0
    %4069 = vmatprep.subr.bf16.mxu0 %v3115
    %4070 = vmatpush1.bf16.msra.mxu0 %v3114
    %4071 = vmatprep.subr.bf16.mxu0 %v3119
    %4072 = vmatpush1.bf16.msra.mxu0 %v3118
    %4073 = vmatprep.subr.bf16.mxu0 %v3123
    %4074 = vmatpush1.bf16.msra.mxu0 %v3122
    %4075 = vmatprep.subr.bf16.mxu0 %v3127
    %4076 = vmatpush1.bf16.msra.mxu0 %v3126
    %4077 = vmatprep.subr.bf16.mxu0 %v3131
    %4078 = vmatpush1.bf16.msra.mxu0 %v3130
    %4079 = vmatprep.subr.bf16.mxu0 %v3135
    %4080 = vmatpush1.bf16.msra.mxu0 %v3134
    %4081 = vmatprep.subr.bf16.mxu0 %v3139
    %4082 = vmatpush1.bf16.msra.mxu0 %v3138
    %4083 = vmatprep.subr.bf16.mxu0 %v3143
    %4084 = vmatpush1.bf16.msra.mxu0 %v3142
    %4085 = vmatprep.subr.bf16.mxu0 %v3147
    %4086 = vmatpush1.bf16.msra.mxu0 %v3146
    %4087 = vmatprep.subr.bf16.mxu0 %v3151
    %4088 = vmatpush1.bf16.msra.mxu0 %v3150
    %4089 = vmatprep.subr.bf16.mxu0 %v3155
    %4090 = vmatpush1.bf16.msra.mxu0 %v3154
    %4091 = vmatprep.subr.bf16.mxu0 %v3159
    %4092 = vmatpush1.bf16.msra.mxu0 %v3158
    %4093 = vmatprep.subr.bf16.mxu0 %v3163
    %4094 = vmatpush1.bf16.msra.mxu0 %v3162
    %4095 = vmatprep.subr.bf16.mxu0 %v3167
    %4096 = vmatpush1.bf16.msra.mxu0 %v3166
    %4097 = vmatprep.subr.bf16.mxu0 %v3171
    %4098 = vmatpush1.bf16.msra.mxu0 %v3170
    %4099 = vmatprep.subr.bf16.mxu0 %v3175
    %4100 = vmatpush1.bf16.msra.mxu0 %v3174
    %4101 = vmatprep.mubr.bf16.mxu0 %v843
    %4102 = vmatmul.mubr.bf16.gmra.mrb[0].mxu0 %v842
    %v4103 = vpop.f32.mrb[0].mxu0
    %v4104 = vadd.f32 %v4063, %v4103
    %v4105 = vpop.f32.mrb[0].mxu0
    %v4106 = vadd.f32 %v4065, %v4105
    %v4107 = vpop.f32.mrb[0].mxu0
    %v4108 = vpop.f32.mrb[0].mxu0
    %4109 = vdwg.mxu0
    %4110 = vmatprep.subr.bf16.mxu0 %v3179
    %4111 = vmatpush1.bf16.msra.mxu0 %v3178
    %4112 = vmatprep.subr.bf16.mxu0 %v3183
    %4113 = vmatpush1.bf16.msra.mxu0 %v3182
    %4114 = vmatprep.subr.bf16.mxu0 %v3187
    %4115 = vmatpush1.bf16.msra.mxu0 %v3186
    %4116 = vmatprep.subr.bf16.mxu0 %v3191
    %4117 = vmatpush1.bf16.msra.mxu0 %v3190
    %4118 = vmatprep.subr.bf16.mxu0 %v3195
    %4119 = vmatpush1.bf16.msra.mxu0 %v3194
    %4120 = vmatprep.subr.bf16.mxu0 %v3199
    %4121 = vmatpush1.bf16.msra.mxu0 %v3198
    %4122 = vmatprep.subr.bf16.mxu0 %v3203
    %4123 = vmatpush1.bf16.msra.mxu0 %v3202
    %4124 = vmatprep.subr.bf16.mxu0 %v3207
    %4125 = vmatpush1.bf16.msra.mxu0 %v3206
    %4126 = vmatprep.subr.bf16.mxu0 %v3211
    %4127 = vmatpush1.bf16.msra.mxu0 %v3210
    %4128 = vmatprep.subr.bf16.mxu0 %v3215
    %4129 = vmatpush1.bf16.msra.mxu0 %v3214
    %4130 = vmatprep.subr.bf16.mxu0 %v3219
    %4131 = vmatpush1.bf16.msra.mxu0 %v3218
    %4132 = vmatprep.subr.bf16.mxu0 %v3223
    %4133 = vmatpush1.bf16.msra.mxu0 %v3222
    %4134 = vmatprep.subr.bf16.mxu0 %v3227
    %4135 = vmatpush1.bf16.msra.mxu0 %v3226
    %4136 = vmatprep.subr.bf16.mxu0 %v3231
    %4137 = vmatpush1.bf16.msra.mxu0 %v3230
    %4138 = vmatprep.subr.bf16.mxu0 %v3235
    %4139 = vmatpush1.bf16.msra.mxu0 %v3234
    %4140 = vmatprep.subr.bf16.mxu0 %v3239
    %4141 = vmatpush1.bf16.msra.mxu0 %v3238
    %4142 = vmatprep.mubr.bf16.mxu0 %v845
    %4143 = vmatmul.mubr.bf16.gmra.mrb[0].mxu0 %v844
    %v4144 = vpop.f32.mrb[0].mxu0
    %v4145 = vadd.f32 %v4104, %v4144
    %v4146 = vpop.f32.mrb[0].mxu0
    %v4147 = vadd.f32 %v4106, %v4146
    %v4148 = vpop.f32.mrb[0].mxu0
    %v4149 = vpop.f32.mrb[0].mxu0
    %4150 = vdwg.mxu0
    %4151 = vmatprep.subr.bf16.mxu0 %v3243
    %4152 = vmatpush1.bf16.msra.mxu0 %v3242
    %4153 = vmatprep.subr.bf16.mxu0 %v3247
    %4154 = vmatpush1.bf16.msra.mxu0 %v3246
    %4155 = vmatprep.subr.bf16.mxu0 %v3251
    %4156 = vmatpush1.bf16.msra.mxu0 %v3250
    %4157 = vmatprep.subr.bf16.mxu0 %v3255
    %4158 = vmatpush1.bf16.msra.mxu0 %v3254
    %4159 = vmatprep.subr.bf16.mxu0 %v3259
    %4160 = vmatpush1.bf16.msra.mxu0 %v3258
    %4161 = vmatprep.subr.bf16.mxu0 %v3263
    %4162 = vmatpush1.bf16.msra.mxu0 %v3262
    %4163 = vmatprep.subr.bf16.mxu0 %v3267
    %4164 = vmatpush1.bf16.msra.mxu0 %v3266
    %4165 = vmatprep.subr.bf16.mxu0 %v3271
    %4166 = vmatpush1.bf16.msra.mxu0 %v3270
    %4167 = vmatprep.subr.bf16.mxu0 %v3275
    %4168 = vmatpush1.bf16.msra.mxu0 %v3274
    %4169 = vmatprep.subr.bf16.mxu0 %v3279
    %4170 = vmatpush1.bf16.msra.mxu0 %v3278
    %4171 = vmatprep.subr.bf16.mxu0 %v3283
    %4172 = vmatpush1.bf16.msra.mxu0 %v3282
    %4173 = vmatprep.subr.bf16.mxu0 %v3287
    %4174 = vmatpush1.bf16.msra.mxu0 %v3286
    %4175 = vmatprep.subr.bf16.mxu0 %v3291
    %4176 = vmatpush1.bf16.msra.mxu0 %v3290
    %4177 = vmatprep.subr.bf16.mxu0 %v3295
    %4178 = vmatpush1.bf16.msra.mxu0 %v3294
    %4179 = vmatprep.subr.bf16.mxu0 %v3299
    %4180 = vmatpush1.bf16.msra.mxu0 %v3298
    %4181 = vmatprep.subr.bf16.mxu0 %v3303
    %4182 = vmatpush1.bf16.msra.mxu0 %v3302
    %4183 = vmatprep.mubr.bf16.mxu0 %v847
    %4184 = vmatmul.mubr.bf16.gmra.mrb[0].mxu0 %v846
    %v4185 = vpop.f32.mrb[0].mxu0
    %v4186 = vadd.f32 %v4145, %v4185
    %v4187 = vpop.f32.mrb[0].mxu0
    %v4188 = vadd.f32 %v4147, %v4187
    %v4189 = vpop.f32.mrb[0].mxu0
    %v4190 = vpop.f32.mrb[0].mxu0
    %4191 = vdwg.mxu0
    %4192 = vmatprep.subr.bf16.mxu0 %v3307
    %4193 = vmatpush1.bf16.msra.mxu0 %v3306
    %4194 = vmatprep.subr.bf16.mxu0 %v3311
    %4195 = vmatpush1.bf16.msra.mxu0 %v3310
    %4196 = vmatprep.subr.bf16.mxu0 %v3315
    %4197 = vmatpush1.bf16.msra.mxu0 %v3314
    %4198 = vmatprep.subr.bf16.mxu0 %v3319
    %4199 = vmatpush1.bf16.msra.mxu0 %v3318
    %4200 = vmatprep.subr.bf16.mxu0 %v3323
    %4201 = vmatpush1.bf16.msra.mxu0 %v3322
    %4202 = vmatprep.subr.bf16.mxu0 %v3327
    %4203 = vmatpush1.bf16.msra.mxu0 %v3326
    %4204 = vmatprep.subr.bf16.mxu0 %v3331
    %4205 = vmatpush1.bf16.msra.mxu0 %v3330
    %4206 = vmatprep.subr.bf16.mxu0 %v3335
    %4207 = vmatpush1.bf16.msra.mxu0 %v3334
    %4208 = vmatprep.subr.bf16.mxu0 %v3339
    %4209 = vmatpush1.bf16.msra.mxu0 %v3338
    %4210 = vmatprep.subr.bf16.mxu0 %v3343
    %4211 = vmatpush1.bf16.msra.mxu0 %v3342
    %4212 = vmatprep.subr.bf16.mxu0 %v3347
    %4213 = vmatpush1.bf16.msra.mxu0 %v3346
    %4214 = vmatprep.subr.bf16.mxu0 %v3351
    %4215 = vmatpush1.bf16.msra.mxu0 %v3350
    %4216 = vmatprep.subr.bf16.mxu0 %v3355
    %4217 = vmatpush1.bf16.msra.mxu0 %v3354
    %4218 = vmatprep.subr.bf16.mxu0 %v3359
    %4219 = vmatpush1.bf16.msra.mxu0 %v3358
    %4220 = vmatprep.subr.bf16.mxu0 %v3363
    %4221 = vmatpush1.bf16.msra.mxu0 %v3362
    %4222 = vmatprep.subr.bf16.mxu0 %v3367
    %4223 = vmatpush1.bf16.msra.mxu0 %v3366
    %4224 = vmatprep.mubr.bf16.mxu0 %v849
    %4225 = vmatmul.mubr.bf16.gmra.mrb[0].mxu0 %v848
    %v4226 = vpop.f32.mrb[0].mxu0
    %v4227 = vadd.f32 %v4186, %v4226
    %v4228 = vpop.f32.mrb[0].mxu0
    %v4229 = vadd.f32 %v4188, %v4228
    %v4230 = vpop.f32.mrb[0].mxu0
    %v4231 = vpop.f32.mrb[0].mxu0
    %4232 = vdwg.mxu0
    %4233 = vmatprep.subr.bf16.mxu0 %v3371
    %4234 = vmatpush1.bf16.msra.mxu0 %v3370
    %4235 = vmatprep.subr.bf16.mxu0 %v3375
    %4236 = vmatpush1.bf16.msra.mxu0 %v3374
    %4237 = vmatprep.subr.bf16.mxu0 %v3379
    %4238 = vmatpush1.bf16.msra.mxu0 %v3378
    %4239 = vmatprep.subr.bf16.mxu0 %v3383
    %4240 = vmatpush1.bf16.msra.mxu0 %v3382
    %4241 = vmatprep.subr.bf16.mxu0 %v3387
    %4242 = vmatpush1.bf16.msra.mxu0 %v3386
    %4243 = vmatprep.subr.bf16.mxu0 %v3391
    %4244 = vmatpush1.bf16.msra.mxu0 %v3390
    %4245 = vmatprep.subr.bf16.mxu0 %v3395
    %4246 = vmatpush1.bf16.msra.mxu0 %v3394
    %4247 = vmatprep.subr.bf16.mxu0 %v3399
    %4248 = vmatpush1.bf16.msra.mxu0 %v3398
    %4249 = vmatprep.subr.bf16.mxu0 %v3403
    %4250 = vmatpush1.bf16.msra.mxu0 %v3402
    %4251 = vmatprep.subr.bf16.mxu0 %v3407
    %4252 = vmatpush1.bf16.msra.mxu0 %v3406
    %4253 = vmatprep.subr.bf16.mxu0 %v3411
    %4254 = vmatpush1.bf16.msra.mxu0 %v3410
    %4255 = vmatprep.subr.bf16.mxu0 %v3415
    %4256 = vmatpush1.bf16.msra.mxu0 %v3414
    %4257 = vmatprep.subr.bf16.mxu0 %v3419
    %4258 = vmatpush1.bf16.msra.mxu0 %v3418
    %4259 = vmatprep.subr.bf16.mxu0 %v3423
    %4260 = vmatpush1.bf16.msra.mxu0 %v3422
    %4261 = vmatprep.subr.bf16.mxu0 %v3427
    %4262 = vmatpush1.bf16.msra.mxu0 %v3426
    %4263 = vmatprep.subr.bf16.mxu0 %v3431
    %4264 = vmatpush1.bf16.msra.mxu0 %v3430
    %4265 = vmatprep.mubr.bf16.mxu0 %v851
    %4266 = vmatmul.mubr.bf16.gmra.mrb[0].mxu0 %v850
    %v4267 = vpop.f32.mrb[0].mxu0
    %v4268 = vadd.f32 %v4227, %v4267
    %v4269 = vpop.f32.mrb[0].mxu0
    %v4270 = vadd.f32 %v4229, %v4269
    %v4271 = vpop.f32.mrb[0].mxu0
    %v4272 = vpop.f32.mrb[0].mxu0
    %4273 = vdwg.mxu0
    %4274 = vmatprep.subr.bf16.mxu0 %v2925
    %4275 = vmatpush1.bf16.msra.mxu0 %v2924
    %4276 = vmatprep.subr.bf16.mxu0 %v2929
    %4277 = vmatpush1.bf16.msra.mxu0 %v2928
    %4278 = vmatprep.subr.bf16.mxu0 %v2933
    %4279 = vmatpush1.bf16.msra.mxu0 %v2932
    %4280 = vmatprep.subr.bf16.mxu0 %v2937
    %4281 = vmatpush1.bf16.msra.mxu0 %v2936
    %4282 = vmatprep.subr.bf16.mxu0 %v2941
    %4283 = vmatpush1.bf16.msra.mxu0 %v2940
    %4284 = vmatprep.subr.bf16.mxu0 %v2945
    %4285 = vmatpush1.bf16.msra.mxu0 %v2944
    %4286 = vmatprep.subr.bf16.mxu0 %v2949
    %4287 = vmatpush1.bf16.msra.mxu0 %v2948
    %4288 = vmatprep.subr.bf16.mxu0 %v2953
    %4289 = vmatpush1.bf16.msra.mxu0 %v2952
    %4290 = vmatprep.subr.bf16.mxu0 %v2957
    %4291 = vmatpush1.bf16.msra.mxu0 %v2956
    %4292 = vmatprep.subr.bf16.mxu0 %v2961
    %4293 = vmatpush1.bf16.msra.mxu0 %v2960
    %4294 = vmatprep.subr.bf16.mxu0 %v2965
    %4295 = vmatpush1.bf16.msra.mxu0 %v2964
    %4296 = vmatprep.subr.bf16.mxu0 %v2969
    %4297 = vmatpush1.bf16.msra.mxu0 %v2968
    %4298 = vmatprep.subr.bf16.mxu0 %v2973
    %4299 = vmatpush1.bf16.msra.mxu0 %v2972
    %4300 = vmatprep.subr.bf16.mxu0 %v2977
    %4301 = vmatpush1.bf16.msra.mxu0 %v2976
    %4302 = vmatprep.subr.bf16.mxu0 %v2981
    %4303 = vmatpush1.bf16.msra.mxu0 %v2980
    %4304 = vmatprep.subr.bf16.mxu0 %v2985
    %4305 = vmatpush1.bf16.msra.mxu0 %v2984
    %4306 = vmatprep.mubr.bf16.mxu0 %v837
    %4307 = vmatmul.mubr.bf16.gmra.mrb[0].mxu0 %v836
    %v4308 = vpop.f32.mrb[0].mxu0
    %v4309 = vadd.f32 %v1377, %v4308
    %v4310 = vpop.f32.mrb[0].mxu0
    %v4311 = vadd.f32 %v1381, %v4310
    %v4312 = vpop.f32.mrb[0].mxu0
    %v4313 = vpop.f32.mrb[0].mxu0
    %4314 = vdwg.mxu0
    %4315 = vmatprep.subr.bf16.mxu0 %v2989
    %4316 = vmatpush1.bf16.msra.mxu0 %v2988
    %4317 = vmatprep.subr.bf16.mxu0 %v2993
    %4318 = vmatpush1.bf16.msra.mxu0 %v2992
    %4319 = vmatprep.subr.bf16.mxu0 %v2997
    %4320 = vmatpush1.bf16.msra.mxu0 %v2996
    %4321 = vmatprep.subr.bf16.mxu0 %v3001
    %4322 = vmatpush1.bf16.msra.mxu0 %v3000
    %4323 = vmatprep.subr.bf16.mxu0 %v3005
    %4324 = vmatpush1.bf16.msra.mxu0 %v3004
    %4325 = vmatprep.subr.bf16.mxu0 %v3009
    %4326 = vmatpush1.bf16.msra.mxu0 %v3008
    %4327 = vmatprep.subr.bf16.mxu0 %v3013
    %4328 = vmatpush1.bf16.msra.mxu0 %v3012
    %4329 = vmatprep.subr.bf16.mxu0 %v3017
    %4330 = vmatpush1.bf16.msra.mxu0 %v3016
    %4331 = vmatprep.subr.bf16.mxu0 %v3021
    %4332 = vmatpush1.bf16.msra.mxu0 %v3020
    %4333 = vmatprep.subr.bf16.mxu0 %v3025
    %4334 = vmatpush1.bf16.msra.mxu0 %v3024
    %4335 = vmatprep.subr.bf16.mxu0 %v3029
    %4336 = vmatpush1.bf16.msra.mxu0 %v3028
    %4337 = vmatprep.subr.bf16.mxu0 %v3033
    %4338 = vmatpush1.bf16.msra.mxu0 %v3032
    %4339 = vmatprep.subr.bf16.mxu0 %v3037
    %4340 = vmatpush1.bf16.msra.mxu0 %v3036
    %4341 = vmatprep.subr.bf16.mxu0 %v3041
    %4342 = vmatpush1.bf16.msra.mxu0 %v3040
    %4343 = vmatprep.subr.bf16.mxu0 %v3045
    %4344 = vmatpush1.bf16.msra.mxu0 %v3044
    %4345 = vmatprep.subr.bf16.mxu0 %v3049
    %4346 = vmatpush1.bf16.msra.mxu0 %v3048
    %4347 = vmatprep.mubr.bf16.mxu0 %v839
    %4348 = vmatmul.mubr.bf16.gmra.mrb[0].mxu0 %v838
    %v4349 = vpop.f32.mrb[0].mxu0
    %v4350 = vadd.f32 %v4309, %v4349
    %v4351 = vpop.f32.mrb[0].mxu0
    %v4352 = vadd.f32 %v4311, %v4351
    %v4353 = vpop.f32.mrb[0].mxu0
    %v4354 = vpop.f32.mrb[0].mxu0
    %4355 = vdwg.mxu0
    %4356 = vmatprep.subr.bf16.mxu0 %v3053
    %4357 = vmatpush1.bf16.msra.mxu0 %v3052
    %4358 = vmatprep.subr.bf16.mxu0 %v3057
    %4359 = vmatpush1.bf16.msra.mxu0 %v3056
    %4360 = vmatprep.subr.bf16.mxu0 %v3061
    %4361 = vmatpush1.bf16.msra.mxu0 %v3060
    %4362 = vmatprep.subr.bf16.mxu0 %v3065
    %4363 = vmatpush1.bf16.msra.mxu0 %v3064
    %4364 = vmatprep.subr.bf16.mxu0 %v3069
    %4365 = vmatpush1.bf16.msra.mxu0 %v3068
    %4366 = vmatprep.subr.bf16.mxu0 %v3073
    %4367 = vmatpush1.bf16.msra.mxu0 %v3072
    %4368 = vmatprep.subr.bf16.mxu0 %v3077
    %4369 = vmatpush1.bf16.msra.mxu0 %v3076
    %4370 = vmatprep.subr.bf16.mxu0 %v3081
    %4371 = vmatpush1.bf16.msra.mxu0 %v3080
    %4372 = vmatprep.subr.bf16.mxu0 %v3085
    %4373 = vmatpush1.bf16.msra.mxu0 %v3084
    %4374 = vmatprep.subr.bf16.mxu0 %v3089
    %4375 = vmatpush1.bf16.msra.mxu0 %v3088
    %4376 = vmatprep.subr.bf16.mxu0 %v3093
    %4377 = vmatpush1.bf16.msra.mxu0 %v3092
    %4378 = vmatprep.subr.bf16.mxu0 %v3097
    %4379 = vmatpush1.bf16.msra.mxu0 %v3096
    %4380 = vmatprep.subr.bf16.mxu0 %v3101
    %4381 = vmatpush1.bf16.msra.mxu0 %v3100
    %4382 = vmatprep.subr.bf16.mxu0 %v3105
    %4383 = vmatpush1.bf16.msra.mxu0 %v3104
    %4384 = vmatprep.subr.bf16.mxu0 %v3109
    %4385 = vmatpush1.bf16.msra.mxu0 %v3108
    %4386 = vmatprep.subr.bf16.mxu0 %v3113
    %4387 = vmatpush1.bf16.msra.mxu0 %v3112
    %4388 = vmatprep.mubr.bf16.mxu0 %v841
    %4389 = vmatmul.mubr.bf16.gmra.mrb[0].mxu0 %v840
    %v4390 = vpop.f32.mrb[0].mxu0
    %v4391 = vadd.f32 %v4350, %v4390
    %v4392 = vpop.f32.mrb[0].mxu0
    %v4393 = vadd.f32 %v4352, %v4392
    %v4394 = vpop.f32.mrb[0].mxu0
    %v4395 = vpop.f32.mrb[0].mxu0
    %4396 = vdwg.mxu0
    %4397 = vmatprep.subr.bf16.mxu0 %v3117
    %4398 = vmatpush1.bf16.msra.mxu0 %v3116
    %4399 = vmatprep.subr.bf16.mxu0 %v3121
    %4400 = vmatpush1.bf16.msra.mxu0 %v3120
    %4401 = vmatprep.subr.bf16.mxu0 %v3125
    %4402 = vmatpush1.bf16.msra.mxu0 %v3124
    %4403 = vmatprep.subr.bf16.mxu0 %v3129
    %4404 = vmatpush1.bf16.msra.mxu0 %v3128
    %4405 = vmatprep.subr.bf16.mxu0 %v3133
    %4406 = vmatpush1.bf16.msra.mxu0 %v3132
    %4407 = vmatprep.subr.bf16.mxu0 %v3137
    %4408 = vmatpush1.bf16.msra.mxu0 %v3136
    %4409 = vmatprep.subr.bf16.mxu0 %v3141
    %4410 = vmatpush1.bf16.msra.mxu0 %v3140
    %4411 = vmatprep.subr.bf16.mxu0 %v3145
    %4412 = vmatpush1.bf16.msra.mxu0 %v3144
    %4413 = vmatprep.subr.bf16.mxu0 %v3149
    %4414 = vmatpush1.bf16.msra.mxu0 %v3148
    %4415 = vmatprep.subr.bf16.mxu0 %v3153
    %4416 = vmatpush1.bf16.msra.mxu0 %v3152
    %4417 = vmatprep.subr.bf16.mxu0 %v3157
    %4418 = vmatpush1.bf16.msra.mxu0 %v3156
    %4419 = vmatprep.subr.bf16.mxu0 %v3161
    %4420 = vmatpush1.bf16.msra.mxu0 %v3160
    %4421 = vmatprep.subr.bf16.mxu0 %v3165
    %4422 = vmatpush1.bf16.msra.mxu0 %v3164
    %4423 = vmatprep.subr.bf16.mxu0 %v3169
    %4424 = vmatpush1.bf16.msra.mxu0 %v3168
    %4425 = vmatprep.subr.bf16.mxu0 %v3173
    %4426 = vmatpush1.bf16.msra.mxu0 %v3172
    %4427 = vmatprep.subr.bf16.mxu0 %v3177
    %4428 = vmatpush1.bf16.msra.mxu0 %v3176
    %4429 = vmatprep.mubr.bf16.mxu0 %v843
    %4430 = vmatmul.mubr.bf16.gmra.mrb[0].mxu0 %v842
    %v4431 = vpop.f32.mrb[0].mxu0
    %v4432 = vadd.f32 %v4391, %v4431
    %v4433 = vpop.f32.mrb[0].mxu0
    %v4434 = vadd.f32 %v4393, %v4433
    %v4435 = vpop.f32.mrb[0].mxu0
    %v4436 = vpop.f32.mrb[0].mxu0
    %4437 = vdwg.mxu0
    %4438 = vmatprep.subr.bf16.mxu0 %v3181
    %4439 = vmatpush1.bf16.msra.mxu0 %v3180
    %4440 = vmatprep.subr.bf16.mxu0 %v3185
    %4441 = vmatpush1.bf16.msra.mxu0 %v3184
    %4442 = vmatprep.subr.bf16.mxu0 %v3189
    %4443 = vmatpush1.bf16.msra.mxu0 %v3188
    %4444 = vmatprep.subr.bf16.mxu0 %v3193
    %4445 = vmatpush1.bf16.msra.mxu0 %v3192
    %4446 = vmatprep.subr.bf16.mxu0 %v3197
    %4447 = vmatpush1.bf16.msra.mxu0 %v3196
    %4448 = vmatprep.subr.bf16.mxu0 %v3201
    %4449 = vmatpush1.bf16.msra.mxu0 %v3200
    %4450 = vmatprep.subr.bf16.mxu0 %v3205
    %4451 = vmatpush1.bf16.msra.mxu0 %v3204
    %4452 = vmatprep.subr.bf16.mxu0 %v3209
    %4453 = vmatpush1.bf16.msra.mxu0 %v3208
    %4454 = vmatprep.subr.bf16.mxu0 %v3213
    %4455 = vmatpush1.bf16.msra.mxu0 %v3212
    %4456 = vmatprep.subr.bf16.mxu0 %v3217
    %4457 = vmatpush1.bf16.msra.mxu0 %v3216
    %4458 = vmatprep.subr.bf16.mxu0 %v3221
    %4459 = vmatpush1.bf16.msra.mxu0 %v3220
    %4460 = vmatprep.subr.bf16.mxu0 %v3225
    %4461 = vmatpush1.bf16.msra.mxu0 %v3224
    %4462 = vmatprep.subr.bf16.mxu0 %v3229
    %4463 = vmatpush1.bf16.msra.mxu0 %v3228
    %4464 = vmatprep.subr.bf16.mxu0 %v3233
    %4465 = vmatpush1.bf16.msra.mxu0 %v3232
    %4466 = vmatprep.subr.bf16.mxu0 %v3237
    %4467 = vmatpush1.bf16.msra.mxu0 %v3236
    %4468 = vmatprep.subr.bf16.mxu0 %v3241
    %4469 = vmatpush1.bf16.msra.mxu0 %v3240
    %4470 = vmatprep.mubr.bf16.mxu0 %v845
    %4471 = vmatmul.mubr.bf16.gmra.mrb[0].mxu0 %v844
    %v4472 = vpop.f32.mrb[0].mxu0
    %v4473 = vadd.f32 %v4432, %v4472
    %v4474 = vpop.f32.mrb[0].mxu0
    %v4475 = vadd.f32 %v4434, %v4474
    %v4476 = vpop.f32.mrb[0].mxu0
    %v4477 = vpop.f32.mrb[0].mxu0
    %4478 = vdwg.mxu0
    %4479 = vmatprep.subr.bf16.mxu0 %v3245
    %4480 = vmatpush1.bf16.msra.mxu0 %v3244
    %4481 = vmatprep.subr.bf16.mxu0 %v3249
    %4482 = vmatpush1.bf16.msra.mxu0 %v3248
    %4483 = vmatprep.subr.bf16.mxu0 %v3253
    %4484 = vmatpush1.bf16.msra.mxu0 %v3252
    %4485 = vmatprep.subr.bf16.mxu0 %v3257
    %4486 = vmatpush1.bf16.msra.mxu0 %v3256
    %4487 = vmatprep.subr.bf16.mxu0 %v3261
    %4488 = vmatpush1.bf16.msra.mxu0 %v3260
    %4489 = vmatprep.subr.bf16.mxu0 %v3265
    %4490 = vmatpush1.bf16.msra.mxu0 %v3264
    %4491 = vmatprep.subr.bf16.mxu0 %v3269
    %4492 = vmatpush1.bf16.msra.mxu0 %v3268
    %4493 = vmatprep.subr.bf16.mxu0 %v3273
    %4494 = vmatpush1.bf16.msra.mxu0 %v3272
    %4495 = vmatprep.subr.bf16.mxu0 %v3277
    %4496 = vmatpush1.bf16.msra.mxu0 %v3276
    %4497 = vmatprep.subr.bf16.mxu0 %v3281
    %4498 = vmatpush1.bf16.msra.mxu0 %v3280
    %4499 = vmatprep.subr.bf16.mxu0 %v3285
    %4500 = vmatpush1.bf16.msra.mxu0 %v3284
    %4501 = vmatprep.subr.bf16.mxu0 %v3289
    %4502 = vmatpush1.bf16.msra.mxu0 %v3288
    %4503 = vmatprep.subr.bf16.mxu0 %v3293
    %4504 = vmatpush1.bf16.msra.mxu0 %v3292
    %4505 = vmatprep.subr.bf16.mxu0 %v3297
    %4506 = vmatpush1.bf16.msra.mxu0 %v3296
    %4507 = vmatprep.subr.bf16.mxu0 %v3301
    %4508 = vmatpush1.bf16.msra.mxu0 %v3300
    %4509 = vmatprep.subr.bf16.mxu0 %v3305
    %4510 = vmatpush1.bf16.msra.mxu0 %v3304
    %4511 = vmatprep.mubr.bf16.mxu0 %v847
    %4512 = vmatmul.mubr.bf16.gmra.mrb[0].mxu0 %v846
    %v4513 = vpop.f32.mrb[0].mxu0
    %v4514 = vadd.f32 %v4473, %v4513
    %v4515 = vpop.f32.mrb[0].mxu0
    %v4516 = vadd.f32 %v4475, %v4515
    %v4517 = vpop.f32.mrb[0].mxu0
    %v4518 = vpop.f32.mrb[0].mxu0
    %4519 = vdwg.mxu0
    %4520 = vmatprep.subr.bf16.mxu0 %v3309
    %4521 = vmatpush1.bf16.msra.mxu0 %v3308
    %4522 = vmatprep.subr.bf16.mxu0 %v3313
    %4523 = vmatpush1.bf16.msra.mxu0 %v3312
    %4524 = vmatprep.subr.bf16.mxu0 %v3317
    %4525 = vmatpush1.bf16.msra.mxu0 %v3316
    %4526 = vmatprep.subr.bf16.mxu0 %v3321
    %4527 = vmatpush1.bf16.msra.mxu0 %v3320
    %4528 = vmatprep.subr.bf16.mxu0 %v3325
    %4529 = vmatpush1.bf16.msra.mxu0 %v3324
    %4530 = vmatprep.subr.bf16.mxu0 %v3329
    %4531 = vmatpush1.bf16.msra.mxu0 %v3328
    %4532 = vmatprep.subr.bf16.mxu0 %v3333
    %4533 = vmatpush1.bf16.msra.mxu0 %v3332
    %4534 = vmatprep.subr.bf16.mxu0 %v3337
    %4535 = vmatpush1.bf16.msra.mxu0 %v3336
    %4536 = vmatprep.subr.bf16.mxu0 %v3341
    %4537 = vmatpush1.bf16.msra.mxu0 %v3340
    %4538 = vmatprep.subr.bf16.mxu0 %v3345
    %4539 = vmatpush1.bf16.msra.mxu0 %v3344
    %4540 = vmatprep.subr.bf16.mxu0 %v3349
    %4541 = vmatpush1.bf16.msra.mxu0 %v3348
    %4542 = vmatprep.subr.bf16.mxu0 %v3353
    %4543 = vmatpush1.bf16.msra.mxu0 %v3352
    %4544 = vmatprep.subr.bf16.mxu0 %v3357
    %4545 = vmatpush1.bf16.msra.mxu0 %v3356
    %4546 = vmatprep.subr.bf16.mxu0 %v3361
    %4547 = vmatpush1.bf16.msra.mxu0 %v3360
    %4548 = vmatprep.subr.bf16.mxu0 %v3365
    %4549 = vmatpush1.bf16.msra.mxu0 %v3364
    %4550 = vmatprep.subr.bf16.mxu0 %v3369
    %4551 = vmatpush1.bf16.msra.mxu0 %v3368
    %4552 = vmatprep.mubr.bf16.mxu0 %v849
    %4553 = vmatmul.mubr.bf16.gmra.mrb[0].mxu0 %v848
    %v4554 = vpop.f32.mrb[0].mxu0
    %v4555 = vadd.f32 %v4514, %v4554
    %v4556 = vpop.f32.mrb[0].mxu0
    %v4557 = vadd.f32 %v4516, %v4556
    %v4558 = vpop.f32.mrb[0].mxu0
    %v4559 = vpop.f32.mrb[0].mxu0
    %4560 = vdwg.mxu0
    %4561 = vmatprep.subr.bf16.mxu0 %v3373
    %4562 = vmatpush1.bf16.msra.mxu0 %v3372
    %4563 = vmatprep.subr.bf16.mxu0 %v3377
    %4564 = vmatpush1.bf16.msra.mxu0 %v3376
    %4565 = vmatprep.subr.bf16.mxu0 %v3381
    %4566 = vmatpush1.bf16.msra.mxu0 %v3380
    %4567 = vmatprep.subr.bf16.mxu0 %v3385
    %4568 = vmatpush1.bf16.msra.mxu0 %v3384
    %4569 = vmatprep.subr.bf16.mxu0 %v3389
    %4570 = vmatpush1.bf16.msra.mxu0 %v3388
    %4571 = vmatprep.subr.bf16.mxu0 %v3393
    %4572 = vmatpush1.bf16.msra.mxu0 %v3392
    %4573 = vmatprep.subr.bf16.mxu0 %v3397
    %4574 = vmatpush1.bf16.msra.mxu0 %v3396
    %4575 = vmatprep.subr.bf16.mxu0 %v3401
    %4576 = vmatpush1.bf16.msra.mxu0 %v3400
    %4577 = vmatprep.subr.bf16.mxu0 %v3405
    %4578 = vmatpush1.bf16.msra.mxu0 %v3404
    %4579 = vmatprep.subr.bf16.mxu0 %v3409
    %4580 = vmatpush1.bf16.msra.mxu0 %v3408
    %4581 = vmatprep.subr.bf16.mxu0 %v3413
    %4582 = vmatpush1.bf16.msra.mxu0 %v3412
    %4583 = vmatprep.subr.bf16.mxu0 %v3417
    %4584 = vmatpush1.bf16.msra.mxu0 %v3416
    %4585 = vmatprep.subr.bf16.mxu0 %v3421
    %4586 = vmatpush1.bf16.msra.mxu0 %v3420
    %4587 = vmatprep.subr.bf16.mxu0 %v3425
    %4588 = vmatpush1.bf16.msra.mxu0 %v3424
    %4589 = vmatprep.subr.bf16.mxu0 %v3429
    %4590 = vmatpush1.bf16.msra.mxu0 %v3428
    %4591 = vmatprep.subr.bf16.mxu0 %v3433
    %4592 = vmatpush1.bf16.msra.mxu0 %v3432
    %4593 = vmatprep.mubr.bf16.mxu0 %v851
    %4594 = vmatmul.mubr.bf16.gmra.mrb[0].mxu0 %v850
    %v4595 = vpop.f32.mrb[0].mxu0
    %v4596 = vadd.f32 %v4555, %v4595
    %v4597 = vpop.f32.mrb[0].mxu0
    %v4598 = vadd.f32 %v4557, %v4597
    %v4599 = vpop.f32.mrb[0].mxu0
    %v4600 = vpop.f32.mrb[0].mxu0
    %4601 = vdwg.mxu0
    %v4602 = vmax.f32 %v4268, 0.0
    %v4603 = vmax.f32 %v4270, 0.0
    %v4604 = vmax.f32 %v4596, 0.0
    %v4605 = vmax.f32 %v4598, 0.0
    %v4606 = vpack.c.bf16 %v4602, %v4602
    %v4607 = vpack.c.bf16 %v4603, %v4603
    %v4608 = vpack.c.bf16 %v4604, %v4604
    %v4609 = vpack.c.bf16 %v4605, %v4605
    %v4610 = vld [vmem:[#allocation11] sm:$0xf]
    %v4611 = vld [vmem:[#allocation11 + $0x4] sm:$0xf]
    %v4612 = vld [vmem:[#allocation11 + $0x8] sm:$0xf]
    %v4613 = vld [vmem:[#allocation11 + $0xc] sm:$0xf]
    %v4614 = vld [vmem:[#allocation11 + $0x10] sm:$0xf]
    %v4615 = vld [vmem:[#allocation11 + $0x14] sm:$0xf]
    %v4616 = vld [vmem:[#allocation11 + $0x18] sm:$0xf]
    %v4617 = vld [vmem:[#allocation11 + $0x1c] sm:$0xf]
    %v4618 = vld [vmem:[#allocation11 + $0x20] sm:$0xf]
    %v4619 = vld [vmem:[#allocation11 + $0x24] sm:$0xf]
    %v4620 = vld [vmem:[#allocation11 + $0x28] sm:$0xf]
    %v4621 = vld [vmem:[#allocation11 + $0x2c] sm:$0xf]
    %v4622 = vld [vmem:[#allocation11 + $0x30] sm:$0xf]
    %v4623 = vld [vmem:[#allocation11 + $0x34] sm:$0xf]
    %v4624 = vld [vmem:[#allocation11 + $0x38] sm:$0xf]
    %v4625 = vld [vmem:[#allocation11 + $0x3c] sm:$0xf]
    %v4626 = vld [vmem:[#allocation11 + $0x40] sm:$0xf]
    %v4627 = vld [vmem:[#allocation11 + $0x44] sm:$0xf]
    %v4628 = vld [vmem:[#allocation11 + $0x48] sm:$0xf]
    %v4629 = vld [vmem:[#allocation11 + $0x4c] sm:$0xf]
    %v4630 = vld [vmem:[#allocation11 + $0x50] sm:$0xf]
    %v4631 = vld [vmem:[#allocation11 + $0x54] sm:$0xf]
    %v4632 = vld [vmem:[#allocation11 + $0x58] sm:$0xf]
    %v4633 = vld [vmem:[#allocation11 + $0x5c] sm:$0xf]
    %v4634 = vld [vmem:[#allocation11 + $0x60] sm:$0xf]
    %v4635 = vld [vmem:[#allocation11 + $0x64] sm:$0xf]
    %v4636 = vld [vmem:[#allocation11 + $0x68] sm:$0xf]
    %v4637 = vld [vmem:[#allocation11 + $0x6c] sm:$0xf]
    %v4638 = vld [vmem:[#allocation11 + $0x70] sm:$0xf]
    %v4639 = vld [vmem:[#allocation11 + $0x74] sm:$0xf]
    %v4640 = vld [vmem:[#allocation11 + $0x78] sm:$0xf]
    %v4641 = vld [vmem:[#allocation11 + $0x7c] sm:$0xf]
    %v4642 = vld [vmem:[#allocation11 + $0x80] sm:$0xf]
    %v4643 = vld [vmem:[#allocation11 + $0x84] sm:$0xf]
    %v4644 = vld [vmem:[#allocation11 + $0x88] sm:$0xf]
    %v4645 = vld [vmem:[#allocation11 + $0x8c] sm:$0xf]
    %v4646 = vld [vmem:[#allocation11 + $0x90] sm:$0xf]
    %v4647 = vld [vmem:[#allocation11 + $0x94] sm:$0xf]
    %v4648 = vld [vmem:[#allocation11 + $0x98] sm:$0xf]
    %v4649 = vld [vmem:[#allocation11 + $0x9c] sm:$0xf]
    %v4650 = vld [vmem:[#allocation11 + $0xa0] sm:$0xf]
    %v4651 = vld [vmem:[#allocation11 + $0xa4] sm:$0xf]
    %v4652 = vld [vmem:[#allocation11 + $0xa8] sm:$0xf]
    %v4653 = vld [vmem:[#allocation11 + $0xac] sm:$0xf]
    %v4654 = vld [vmem:[#allocation11 + $0xb0] sm:$0xf]
    %v4655 = vld [vmem:[#allocation11 + $0xb4] sm:$0xf]
    %v4656 = vld [vmem:[#allocation11 + $0xb8] sm:$0xf]
    %v4657 = vld [vmem:[#allocation11 + $0xbc] sm:$0xf]
    %v4658 = vld [vmem:[#allocation11 + $0xc0] sm:$0xf]
    %v4659 = vld [vmem:[#allocation11 + $0xc4] sm:$0xf]
    %v4660 = vld [vmem:[#allocation11 + $0xc8] sm:$0xf]
    %v4661 = vld [vmem:[#allocation11 + $0xcc] sm:$0xf]
    %v4662 = vld [vmem:[#allocation11 + $0xd0] sm:$0xf]
    %v4663 = vld [vmem:[#allocation11 + $0xd4] sm:$0xf]
    %v4664 = vld [vmem:[#allocation11 + $0xd8] sm:$0xf]
    %v4665 = vld [vmem:[#allocation11 + $0xdc] sm:$0xf]
    %v4666 = vld [vmem:[#allocation11 + $0xe0] sm:$0xf]
    %v4667 = vld [vmem:[#allocation11 + $0xe4] sm:$0xf]
    %v4668 = vld [vmem:[#allocation11 + $0xe8] sm:$0xf]
    %v4669 = vld [vmem:[#allocation11 + $0xec] sm:$0xf]
    %v4670 = vld [vmem:[#allocation11 + $0xf0] sm:$0xf]
    %v4671 = vld [vmem:[#allocation11 + $0xf4] sm:$0xf]
    %v4672 = vld [vmem:[#allocation11 + $0xf8] sm:$0xf]
    %v4673 = vld [vmem:[#allocation11 + $0xfc] sm:$0xf]
    %v4674 = vld [vmem:[#allocation13] sm:$0x1]
    %v4676 = vlaneseq
    %v4677 = vshrl.u32 %v4676, 7
    %v4678 = vsub.s32 0, %v4677
    %v4679 = vrot.slane %v4674, %v4678
    %v4745 = vunpack.c.l.b16 %v4610
    %v4746 = vunpack.c.l.b16 %v4611
    %v4747 = vunpack.c.l.b16 %v4612
    %v4748 = vunpack.c.l.b16 %v4613
    %v4749 = vunpack.c.l.b16 %v4614
    %v4750 = vunpack.c.l.b16 %v4615
    %v4751 = vunpack.c.l.b16 %v4616
    %v4752 = vunpack.c.l.b16 %v4617
    %v4753 = vunpack.c.l.b16 %v4618
    %v4754 = vunpack.c.l.b16 %v4619
    %v4755 = vunpack.c.l.b16 %v4620
    %v4756 = vunpack.c.l.b16 %v4621
    %v4757 = vunpack.c.l.b16 %v4622
    %v4758 = vunpack.c.l.b16 %v4623
    %v4759 = vunpack.c.l.b16 %v4624
    %v4760 = vunpack.c.l.b16 %v4625
    %v4761 = vunpack.c.l.b16 %v4626
    %v4762 = vunpack.c.l.b16 %v4627
    %v4763 = vunpack.c.l.b16 %v4628
    %v4764 = vunpack.c.l.b16 %v4629
    %v4765 = vunpack.c.l.b16 %v4630
    %v4766 = vunpack.c.l.b16 %v4631
    %v4767 = vunpack.c.l.b16 %v4632
    %v4768 = vunpack.c.l.b16 %v4633
    %v4769 = vunpack.c.l.b16 %v4634
    %v4770 = vunpack.c.l.b16 %v4635
    %v4771 = vunpack.c.l.b16 %v4636
    %v4772 = vunpack.c.l.b16 %v4637
    %v4773 = vunpack.c.l.b16 %v4638
    %v4774 = vunpack.c.l.b16 %v4639
    %v4775 = vunpack.c.l.b16 %v4640
    %v4776 = vunpack.c.l.b16 %v4641
    %v4777 = vunpack.c.l.b16 %v4642
    %v4778 = vunpack.c.l.b16 %v4643
    %v4779 = vunpack.c.l.b16 %v4644
    %v4780 = vunpack.c.l.b16 %v4645
    %v4781 = vunpack.c.l.b16 %v4646
    %v4782 = vunpack.c.l.b16 %v4647
    %v4783 = vunpack.c.l.b16 %v4648
    %v4784 = vunpack.c.l.b16 %v4649
    %v4785 = vunpack.c.l.b16 %v4650
    %v4786 = vunpack.c.l.b16 %v4651
    %v4787 = vunpack.c.l.b16 %v4652
    %v4788 = vunpack.c.l.b16 %v4653
    %v4789 = vunpack.c.l.b16 %v4654
    %v4790 = vunpack.c.l.b16 %v4655
    %v4791 = vunpack.c.l.b16 %v4656
    %v4792 = vunpack.c.l.b16 %v4657
    %v4793 = vunpack.c.l.b16 %v4658
    %v4794 = vunpack.c.l.b16 %v4659
    %v4795 = vunpack.c.l.b16 %v4660
    %v4796 = vunpack.c.l.b16 %v4661
    %v4797 = vunpack.c.l.b16 %v4662
    %v4798 = vunpack.c.l.b16 %v4663
    %v4799 = vunpack.c.l.b16 %v4664
    %v4800 = vunpack.c.l.b16 %v4665
    %v4801 = vunpack.c.l.b16 %v4666
    %v4802 = vunpack.c.l.b16 %v4667
    %v4803 = vunpack.c.l.b16 %v4668
    %v4804 = vunpack.c.l.b16 %v4669
    %v4805 = vunpack.c.l.b16 %v4670
    %v4806 = vunpack.c.l.b16 %v4671
    %v4807 = vunpack.c.l.b16 %v4672
    %v4808 = vunpack.c.l.b16 %v4673
    %v4809 = vpack.c.b16 %v4746, %v4745
    %v4810 = vpack.c.b16 %v4748, %v4747
    %v4811 = vpack.c.b16 %v4750, %v4749
    %v4812 = vpack.c.b16 %v4752, %v4751
    %v4813 = vpack.c.b16 %v4754, %v4753
    %v4814 = vpack.c.b16 %v4756, %v4755
    %v4815 = vpack.c.b16 %v4758, %v4757
    %v4816 = vpack.c.b16 %v4760, %v4759
    %v4817 = vpack.c.b16 %v4762, %v4761
    %v4818 = vpack.c.b16 %v4764, %v4763
    %v4819 = vpack.c.b16 %v4766, %v4765
    %v4820 = vpack.c.b16 %v4768, %v4767
    %v4821 = vpack.c.b16 %v4770, %v4769
    %v4822 = vpack.c.b16 %v4772, %v4771
    %v4823 = vpack.c.b16 %v4774, %v4773
    %v4824 = vpack.c.b16 %v4776, %v4775
    %v4825 = vpack.c.b16 %v4778, %v4777
    %v4826 = vpack.c.b16 %v4780, %v4779
    %v4827 = vpack.c.b16 %v4782, %v4781
    %v4828 = vpack.c.b16 %v4784, %v4783
    %v4829 = vpack.c.b16 %v4786, %v4785
    %v4830 = vpack.c.b16 %v4788, %v4787
    %v4831 = vpack.c.b16 %v4790, %v4789
    %v4832 = vpack.c.b16 %v4792, %v4791
    %v4833 = vpack.c.b16 %v4794, %v4793
    %v4834 = vpack.c.b16 %v4796, %v4795
    %v4835 = vpack.c.b16 %v4798, %v4797
    %v4836 = vpack.c.b16 %v4800, %v4799
    %v4837 = vpack.c.b16 %v4802, %v4801
    %v4838 = vpack.c.b16 %v4804, %v4803
    %v4839 = vpack.c.b16 %v4806, %v4805
    %v4840 = vpack.c.b16 %v4808, %v4807
    %4873 = vmatprep.subr.bf16.mxu0 0
    %4874 = vmatpush1.bf16.msra.mxu0 %v4809
    %4875 = vmatprep.subr.bf16.mxu0 0
    %4876 = vmatpush1.bf16.msra.mxu0 %v4810
    %4877 = vmatprep.subr.bf16.mxu0 0
    %4878 = vmatpush1.bf16.msra.mxu0 %v4811
    %4879 = vmatprep.subr.bf16.mxu0 0
    %4880 = vmatpush1.bf16.msra.mxu0 %v4812
    %4881 = vmatprep.subr.bf16.mxu0 0
    %4882 = vmatpush1.bf16.msra.mxu0 %v4813
    %4883 = vmatprep.subr.bf16.mxu0 0
    %4884 = vmatpush1.bf16.msra.mxu0 %v4814
    %4885 = vmatprep.subr.bf16.mxu0 0
    %4886 = vmatpush1.bf16.msra.mxu0 %v4815
    %4887 = vmatprep.subr.bf16.mxu0 0
    %4888 = vmatpush1.bf16.msra.mxu0 %v4816
    %4889 = vmatprep.subr.bf16.mxu0 0
    %4890 = vmatpush1.bf16.msra.mxu0 %v4817
    %4891 = vmatprep.subr.bf16.mxu0 0
    %4892 = vmatpush1.bf16.msra.mxu0 %v4818
    %4893 = vmatprep.subr.bf16.mxu0 0
    %4894 = vmatpush1.bf16.msra.mxu0 %v4819
    %4895 = vmatprep.subr.bf16.mxu0 0
    %4896 = vmatpush1.bf16.msra.mxu0 %v4820
    %4897 = vmatprep.subr.bf16.mxu0 0
    %4898 = vmatpush1.bf16.msra.mxu0 %v4821
    %4899 = vmatprep.subr.bf16.mxu0 0
    %4900 = vmatpush1.bf16.msra.mxu0 %v4822
    %4901 = vmatprep.subr.bf16.mxu0 0
    %4902 = vmatpush1.bf16.msra.mxu0 %v4823
    %4903 = vmatprep.subr.bf16.mxu0 0
    %4904 = vmatpush1.bf16.msra.mxu0 %v4824
    %4905 = vmatprep.mubr.bf16.mxu0 %v4607
    %4906 = vmatmul.mubr.bf16.gmra.mrb[0].mxu0 %v4606
    %v4907 = vpop.f32.mrb[0].mxu0
    %v4908 = vadd.f32 %v4679, %v4907
    %v4909 = vpop.f32.mrb[0].mxu0
    %v4910 = vpop.f32.mrb[0].mxu0
    %v4911 = vpop.f32.mrb[0].mxu0
    %4912 = vdwg.mxu0
    %4913 = vmatprep.subr.bf16.mxu0 0
    %4914 = vmatpush1.bf16.msra.mxu0 %v4825
    %4915 = vmatprep.subr.bf16.mxu0 0
    %4916 = vmatpush1.bf16.msra.mxu0 %v4826
    %4917 = vmatprep.subr.bf16.mxu0 0
    %4918 = vmatpush1.bf16.msra.mxu0 %v4827
    %4919 = vmatprep.subr.bf16.mxu0 0
    %4920 = vmatpush1.bf16.msra.mxu0 %v4828
    %4921 = vmatprep.subr.bf16.mxu0 0
    %4922 = vmatpush1.bf16.msra.mxu0 %v4829
    %4923 = vmatprep.subr.bf16.mxu0 0
    %4924 = vmatpush1.bf16.msra.mxu0 %v4830
    %4925 = vmatprep.subr.bf16.mxu0 0
    %4926 = vmatpush1.bf16.msra.mxu0 %v4831
    %4927 = vmatprep.subr.bf16.mxu0 0
    %4928 = vmatpush1.bf16.msra.mxu0 %v4832
    %4929 = vmatprep.subr.bf16.mxu0 0
    %4930 = vmatpush1.bf16.msra.mxu0 %v4833
    %4931 = vmatprep.subr.bf16.mxu0 0
    %4932 = vmatpush1.bf16.msra.mxu0 %v4834
    %4933 = vmatprep.subr.bf16.mxu0 0
    %4934 = vmatpush1.bf16.msra.mxu0 %v4835
    %4935 = vmatprep.subr.bf16.mxu0 0
    %4936 = vmatpush1.bf16.msra.mxu0 %v4836
    %4937 = vmatprep.subr.bf16.mxu0 0
    %4938 = vmatpush1.bf16.msra.mxu0 %v4837
    %4939 = vmatprep.subr.bf16.mxu0 0
    %4940 = vmatpush1.bf16.msra.mxu0 %v4838
    %4941 = vmatprep.subr.bf16.mxu0 0
    %4942 = vmatpush1.bf16.msra.mxu0 %v4839
    %4943 = vmatprep.subr.bf16.mxu0 0
    %4944 = vmatpush1.bf16.msra.mxu0 %v4840
    %4945 = vmatprep.mubr.bf16.mxu0 %v4609
    %4946 = vmatmul.mubr.bf16.gmra.mrb[0].mxu0 %v4608
    %v4947 = vpop.f32.mrb[0].mxu0
    %v4948 = vadd.f32 %v4908, %v4947
    %v4949 = vpop.f32.mrb[0].mxu0
    %v4950 = vpop.f32.mrb[0].mxu0
    %v4951 = vpop.f32.mrb[0].mxu0
    %4952 = vdwg.mxu0
    %v4953 = vmax.f32 %v4948, 0.0
    %v4954 = vpack.c.bf16 %v4953, %v4953
    %v4955 = vld [vmem:[#allocation14] sm:$0xf]
    %v4956 = vld [vmem:[#allocation14 + $0x4] sm:$0xf]
    %v4957 = vld [vmem:[#allocation14 + $0x8] sm:$0xf]
    %v4958 = vld [vmem:[#allocation14 + $0xc] sm:$0xf]
    %v4959 = vld [vmem:[#allocation14 + $0x10] sm:$0xf]
    %v4960 = vld [vmem:[#allocation14 + $0x14] sm:$0xf]
    %v4961 = vld [vmem:[#allocation14 + $0x18] sm:$0xf]
    %v4962 = vld [vmem:[#allocation14 + $0x1c] sm:$0xf]
    %v4963 = vld [vmem:[#allocation14 + $0x20] sm:$0xf]
    %v4964 = vld [vmem:[#allocation14 + $0x24] sm:$0xf]
    %v4965 = vld [vmem:[#allocation14 + $0x28] sm:$0xf]
    %v4966 = vld [vmem:[#allocation14 + $0x2c] sm:$0xf]
    %v4967 = vld [vmem:[#allocation14 + $0x30] sm:$0xf]
    %v4968 = vld [vmem:[#allocation14 + $0x34] sm:$0xf]
    %v4969 = vld [vmem:[#allocation14 + $0x38] sm:$0xf]
    %v4970 = vld [vmem:[#allocation14 + $0x3c] sm:$0xf]
    %v4971 = vld [vmem:[#allocation16] sm:$0x1]
    %v4973 = vlaneseq
    %v4974 = vshrl.u32 %v4973, 7
    %v4975 = vsub.s32 0, %v4974
    %v4976 = vrot.slane %v4971, %v4975
    %v4994 = vunpack.c.l.b16 %v4955
    %v4995 = vunpack.c.l.b16 %v4956
    %v4996 = vunpack.c.l.b16 %v4957
    %v4997 = vunpack.c.l.b16 %v4958
    %v4998 = vunpack.c.l.b16 %v4959
    %v4999 = vunpack.c.l.b16 %v4960
    %v5000 = vunpack.c.l.b16 %v4961
    %v5001 = vunpack.c.l.b16 %v4962
    %v5002 = vunpack.c.l.b16 %v4963
    %v5003 = vunpack.c.l.b16 %v4964
    %v5004 = vunpack.c.l.b16 %v4965
    %v5005 = vunpack.c.l.b16 %v4966
    %v5006 = vunpack.c.l.b16 %v4967
    %v5007 = vunpack.c.l.b16 %v4968
    %v5008 = vunpack.c.l.b16 %v4969
    %v5009 = vunpack.c.l.b16 %v4970
    %v5010 = vpack.c.b16 %v4995, %v4994
    %v5011 = vpack.c.b16 %v4997, %v4996
    %v5012 = vpack.c.b16 %v4999, %v4998
    %v5013 = vpack.c.b16 %v5001, %v5000
    %v5014 = vpack.c.b16 %v5003, %v5002
    %v5015 = vpack.c.b16 %v5005, %v5004
    %v5016 = vpack.c.b16 %v5007, %v5006
    %v5017 = vpack.c.b16 %v5009, %v5008
    %5026 = vmatprep.subr.bf16.mxu0 0
    %5027 = vmatpush1.bf16.msra.mxu0 %v5010
    %5028 = vmatprep.subr.bf16.mxu0 0
    %5029 = vmatpush1.bf16.msra.mxu0 %v5011
    %5030 = vmatprep.subr.bf16.mxu0 0
    %5031 = vmatpush1.bf16.msra.mxu0 %v5012
    %5032 = vmatprep.subr.bf16.mxu0 0
    %5033 = vmatpush1.bf16.msra.mxu0 %v5013
    %5034 = vmatprep.subr.bf16.mxu0 0
    %5035 = vmatpush1.bf16.msra.mxu0 %v5014
    %5036 = vmatprep.subr.bf16.mxu0 0
    %5037 = vmatpush1.bf16.msra.mxu0 %v5015
    %5038 = vmatprep.subr.bf16.mxu0 0
    %5039 = vmatpush1.bf16.msra.mxu0 %v5016
    %5040 = vmatprep.subr.bf16.mxu0 0
    %5041 = vmatpush1.bf16.msra.mxu0 %v5017
    %5042 = vmatprep.subr.bf16.mxu0 0
    %5043 = vmatpush1.bf16.msra.mxu0 0
    %5044 = vmatprep.subr.bf16.mxu0 0
    %5045 = vmatpush1.bf16.msra.mxu0 0
    %5046 = vmatprep.subr.bf16.mxu0 0
    %5047 = vmatpush1.bf16.msra.mxu0 0
    %5048 = vmatprep.subr.bf16.mxu0 0
    %5049 = vmatpush1.bf16.msra.mxu0 0
    %5050 = vmatprep.subr.bf16.mxu0 0
    %5051 = vmatpush1.bf16.msra.mxu0 0
    %5052 = vmatprep.subr.bf16.mxu0 0
    %5053 = vmatpush1.bf16.msra.mxu0 0
    %5054 = vmatprep.subr.bf16.mxu0 0
    %5055 = vmatpush1.bf16.msra.mxu0 0
    %5056 = vmatprep.subr.bf16.mxu0 0
    %5057 = vmatpush1.bf16.msra.mxu0 0
    %5058 = vmatprep.mubr.bf16.mxu0 0
    %5059 = vmatmul.mubr.bf16.gmra.mrb[0].mxu0 %v4954
    %v5060 = vpop.f32.mrb[0].mxu0
    %v5061 = vadd.f32 %v4976, %v5060
    %v5062 = vpop.f32.mrb[0].mxu0
    %v5063 = vpop.f32.mrb[0].mxu0
    %v5064 = vpop.f32.mrb[0].mxu0
    %5065 = vdwg.mxu0
    %5066 = vst [vmem:[#allocation17] sm:$0xff] %v4953
    %5067 = vst [vmem:[#allocation18] sm:$0xff] %v5061
    // Predicated region
    $region74: #{tpu_custom_call.1} parent=1 // pred_check
      _
    $region75: #{tpu_custom_call.1} parent=1 // pred_check_branch
      %5069 = sbr.rel (0) target = $region77
    $region76: #{tpu_custom_call.1} parent=1 // pred_region
      %s5071 = ssub.s32 128, 128
      %5072 = vsyncadd [#allocation4], %s5071
      %s5074 = sshll.u32 [#allocation17], 4
      %s5075 = int_to_ptr.vmem [resolvable:$true] %s5074
      %5077 = dma.vmem_to_hbm [thread:$0]  %s5075, 128, %s9, [#allocation4]
    $region77: #{tpu_custom_call.1} parent=1 // pred_fallthru
      _
    // Predicated region
    $region78: #{tpu_custom_call.1} parent=1 // pred_check
      _
    $region79: #{tpu_custom_call.1} parent=1 // pred_check_branch
      %5079 = sbr.rel (0) target = $region81
    $region80: #{tpu_custom_call.1} parent=1 // pred_region
      %s5081 = ssub.s32 128, 128
      %5082 = vsyncadd [#allocation19], %s5081
      %s5084 = sshll.u32 [#allocation18], 4
      %s5085 = int_to_ptr.vmem [resolvable:$true] %s5084
      %5087 = dma.vmem_to_hbm [thread:$0]  %s5085, 128, %s10, [#allocation19]
    $region81: #{tpu_custom_call.1} parent=1 // pred_fallthru
      _
    // Predicated region
    $region82: #{tpu_custom_call.1} parent=1 // pred_check
      _
    $region83: #{tpu_custom_call.1} parent=1 // pred_check_branch
      %5089 = sbr.rel (0) target = $region85
    $region84: #{tpu_custom_call.1} parent=1 // pred_region
      %5090 = dma.done [#allocation4], 128
    $region85: #{tpu_custom_call.1} parent=1 // pred_fallthru
      _
    // Predicated region
    $region86: #{tpu_custom_call.1} parent=1 // pred_check
      _
    $region87: #{tpu_custom_call.1} parent=1 // pred_check_branch
      %5092 = sbr.rel (0) target = $region89
    $region88: #{tpu_custom_call.1} parent=1 // pred_region
      %5093 = dma.done [#allocation19], 128
    $region89: #{tpu_custom_call.1} parent=1 // pred_fallthru
      _
    %5094 = vsyncpa [#allocation3], 1
    %5095 = vsyncpa [#allocation6], 1
    %5096 = vsyncpa [#allocation9], 1
    %5097 = vsyncpa [#allocation12], 1
    %5098 = vsyncpa [#allocation15], 1
    %5099 = vsyncpa [#allocation4], 1
    %5100 = vsyncpa [#allocation19], 1

</llo_original>
